<compile_context>
chip_gen: v7x
topology: tpu7x:2x2x1
jax: 0.10.0
libtpu: 0.0.40
codegen_flags: <defaults>
</compile_context>

<pallas_src>
import functools

import jax
import jax.numpy as jnp
from jax.experimental import pallas as pl
from jax.experimental.pallas import tpu as pltpu

LN_EPS = 1e-6          # SublayerConnection LayerNorm eps
NEG_BIG = -1e30        # finite "minus infinity" for masked keys


def encoder_layer_kernel(mask_ref, x_ref,
                         wqkv_ref, bqkv_ref, wo_ref, bo_ref,
                         g1_ref, be1_ref, g2_ref, be2_ref,
                         w1_ref, b1_ref, w2_ref, b2_ref,
                         out_ref, ctx_scratch, *, n_heads):
    block_b, S, H = x_ref.shape
    head_dim = H // n_heads
    M = block_b * S

    x = x_ref[...].reshape(M, H)                                  # (M, H) f32
    neg_b = jnp.where(mask_ref[...] > 0.5, NEG_BIG, 0.0)          # (block_b, 1, S)

    # ---------- sublayer 0: x + MHA(LayerNorm(x)) ----------
    mu = jnp.mean(x, axis=-1, keepdims=True)
    var = jnp.mean((x - mu) ** 2, axis=-1, keepdims=True)
    xn = (x - mu) * jax.lax.rsqrt(var + LN_EPS) * g1_ref[...] + be1_ref[...]
    xn_b = xn.astype(jnp.bfloat16)

    # fused QKV: one MXU matmul with a 3H-wide N dimension, f32 accumulation
    qkv = (jnp.dot(xn_b, wqkv_ref[...], preferred_element_type=jnp.float32)
           + bqkv_ref[...])                                       # (M, 3H) f32
    scale = 1.0 / (head_dim ** 0.5)
    q = (qkv[:, 0:H] * scale).astype(jnp.bfloat16).reshape(block_b, S, H)
    k = qkv[:, H:2 * H].astype(jnp.bfloat16).reshape(block_b, S, H)
    v = qkv[:, 2 * H:3 * H].astype(jnp.bfloat16).reshape(block_b, S, H)

    # Attention: batched over the batch dim; short static loop over heads only.
    # Each head's context is staged bf16 into its lane range of ctx_scratch so
    # the out-projection runs as ONE (M,H)x(H,H) matmul afterwards.
    # TODO(synk): for production S / n_heads, tile the KV axis (flash-style
    # online softmax) and move heads onto a grid axis / batched einsum instead
    # of this unrolled loop.
    for h in range(n_heads):
        cols = slice(h * head_dim, (h + 1) * head_dim)
        qh, kh, vh = q[:, :, cols], k[:, :, cols], v[:, :, cols]  # (b, S, d) bf16
        s = jnp.einsum('bqd,bkd->bqk', qh, kh,
                       preferred_element_type=jnp.float32)        # (b, S, S) f32
        s = s + neg_b                                             # key-padding bias
        m = jnp.max(s, axis=-1, keepdims=True)
        e = jnp.exp(s - m)
        p = e * pl.reciprocal(jnp.sum(e, axis=-1, keepdims=True), approx=True)
        ctx = jnp.einsum('bqk,bkd->bqd', p.astype(jnp.bfloat16), vh,
                         preferred_element_type=jnp.float32)      # (b, S, d) f32
        ctx_scratch[:, :, cols] = ctx.astype(jnp.bfloat16)        # write-only stage

    attn = (jnp.dot(ctx_scratch[...].reshape(M, H), wo_ref[...],
                    preferred_element_type=jnp.float32) + bo_ref[...])
    x1 = x + attn                                                 # residual (dropout=id)

    # ---------- sublayer 1: x1 + PFF(LayerNorm(x1)) ----------
    mu2 = jnp.mean(x1, axis=-1, keepdims=True)
    var2 = jnp.mean((x1 - mu2) ** 2, axis=-1, keepdims=True)
    x1n = (x1 - mu2) * jax.lax.rsqrt(var2 + LN_EPS) * g2_ref[...] + be2_ref[...]

    h1 = jnp.maximum(
        jnp.dot(x1n.astype(jnp.bfloat16), w1_ref[...],
                preferred_element_type=jnp.float32) + b1_ref[...], 0.0)
    ff = jnp.dot(h1.astype(jnp.bfloat16), w2_ref[...],
                 preferred_element_type=jnp.float32) + b2_ref[...]

    out_ref[...] = (x1 + ff).reshape(block_b, S, H).astype(out_ref.dtype)


def _pick_block_b(B, S):
    """Largest divisor of B with block_b*S <= ~256 rows (fills the 256-wide MXU
    M dimension on v6e/v7x). Grid may be a single step: on 1-TC chips the grid
    is just a serial loop, so forcing >=2 steps only shrinks the matmul M dim.
    (On v7x with 2 TCs, prefer B//block_b >= 2 if B allows at production size.)"""
    target = max(1, pl.cdiv(256, S))
    best = 1
    for cand in range(1, B + 1):
        if B % cand == 0 and cand <= target:
            best = cand
    return best


def encoder_layer(x, key_padding_mask, params, n_heads, *, block_b=None):
    """x: (B, S, H) f32; key_padding_mask: (B, S) bool (True = ignore key)."""
    B, S, H = x.shape
    F = params["w1"].shape[1]
    if block_b is None:
        block_b = _pick_block_b(B, S)
    assert B % block_b == 0
    grid_b = B // block_b
    M = block_b * S

    maskf = key_padding_mask.astype(jnp.float32)[:, None, :]      # (B, 1, S)
    # host-side fusion of the QKV projection (one weight load, 3H-wide N)
    wqkv = jnp.concatenate([params["wq"], params["wk"], params["wv"]], axis=1)
    bqkv = jnp.concatenate([params["bq"], params["bk"], params["bv"]], axis=1)

    args = (maskf, x,
            wqkv, bqkv, params["wo"], params["bo"],
            params["g1"], params["be1"], params["g2"], params["be2"],
            params["w1"], params["b1"], params["w2"], params["b2"])

    # VMEM request: single-buffered weights + double-buffered x/out blocks +
    # a conservative activation working-set estimate, capped by the device's
    # physical VMEM (64 MiB/TC on v7x) minus headroom.
    weight_bytes = sum(int(a.size) * a.dtype.itemsize for a in args[2:])
    io_bytes = 2 * (2 * block_b * S * H * 4 + block_b * S * 4)
    act_bytes = (M * 3 * H * 6          # fused qkv f32 + bf16 slices
                 + M * H * 12           # x / xn / x1 / attn f32 temporaries
                 + M * F * 6            # pff hidden f32 + bf16
                 + block_b * S * S * 12 # per-head scores / exp / p
                 + block_b * S * H * 2) # bf16 ctx staging scratch
    try:
        vmem_cap = int(pltpu.get_tpu_info().vmem_capacity_bytes)
    except Exception:
        vmem_cap = 64 * 2 ** 20         # safe floor across v5e/v6e/v7x
    vmem_limit = int(min(vmem_cap - 4 * 2 ** 20,
                         max(32 * 2 ** 20, weight_bytes + io_bytes + 2 * act_bytes)))

    kernel = functools.partial(encoder_layer_kernel, n_heads=n_heads)

    def build(weight_pipeline_mode):
        def const_spec(shape):
            kw = ({} if weight_pipeline_mode is None
                  else {"pipeline_mode": weight_pipeline_mode})
            return pl.BlockSpec(shape, lambda b: (0,) * len(shape), **kw)

        in_specs = [
            pl.BlockSpec((block_b, 1, S), lambda b: (b, 0, 0)),    # mask
            pl.BlockSpec((block_b, S, H), lambda b: (b, 0, 0)),    # x
            const_spec((H, 3 * H)), const_spec((1, 3 * H)),        # fused qkv (bf16), bias
            const_spec((H, H)), const_spec((1, H)),                # wo (bf16), bo
            const_spec((1, H)), const_spec((1, H)),                # ln1 gamma/beta
            const_spec((1, H)), const_spec((1, H)),                # ln2 gamma/beta
            const_spec((H, F)), const_spec((1, F)),                # pff w1 (bf16), b1
            const_spec((F, H)), const_spec((1, H)),                # pff w2 (bf16), b2
        ]
        return pl.pallas_call(
            kernel,
            out_shape=jax.ShapeDtypeStruct((B, S, H), x.dtype),
            grid=(grid_b,),
            in_specs=in_specs,
            out_specs=pl.BlockSpec((block_b, S, H), lambda b: (b, 0, 0)),
            scratch_shapes=[pltpu.VMEM((block_b, S, H), jnp.bfloat16)],
            compiler_params=pltpu.CompilerParams(
                dimension_semantics=("parallel",),
                vmem_limit_bytes=vmem_limit),
        )

    try:
        # single-buffer the grid-invariant weights (no point double-buffering
        # constant-index inputs; ~halves weight VMEM on v7x)
        return build(pl.Buffered(1))(*args)
    except Exception:
        # fall back to default pipelining if Buffered(1) is unsupported
        return build(None)(*args)


def init_params(key, H, F):
    ks = jax.random.split(key, 10)
    s = 0.05
    bf16 = lambda a: a.astype(jnp.bfloat16)
    return {
        # attention weights stored transposed for x @ W use, in bf16 (MXU input dtype)
        "wq": bf16(jax.random.normal(ks[0], (H, H), jnp.float32) * s),
        "wk": bf16(jax.random.normal(ks[1], (H, H), jnp.float32) * s),
        "wv": bf16(jax.random.normal(ks[2], (H, H), jnp.float32) * s),
        "bq": jax.random.normal(ks[3], (1, H), jnp.float32) * s,
        "bk": jnp.zeros((1, H), jnp.float32),
        "bv": jax.random.normal(ks[4], (1, H), jnp.float32) * s,
        "wo": bf16(jax.random.normal(ks[5], (H, H), jnp.float32) * s),
        "bo": jax.random.normal(ks[6], (1, H), jnp.float32) * s,
        # layer norms (f32)
        "g1": jnp.ones((1, H), jnp.float32),
        "be1": jnp.zeros((1, H), jnp.float32),
        "g2": jnp.ones((1, H), jnp.float32),
        "be2": jnp.zeros((1, H), jnp.float32),
        # positionwise feed-forward (bf16 weights, f32 biases)
        "w1": bf16(jax.random.normal(ks[7], (H, F), jnp.float32) * s),
        "b1": jax.random.normal(ks[8], (1, F), jnp.float32) * s,
        "w2": bf16(jax.random.normal(ks[9], (F, H), jnp.float32) * s),
        "b2": jnp.zeros((1, H), jnp.float32),
    }


def reference(x, key_padding_mask, p, n_heads):
    """Pure-JAX f32 reference with identical semantics (bf16 weights cast to f32)."""
    B, S, H = x.shape
    d = H // n_heads
    f32 = lambda a: a.astype(jnp.float32)
    neg = jnp.where(key_padding_mask, NEG_BIG, 0.0)[:, None, None, :]   # (B,1,1,S)

    def ln(z, g, b):
        mu = jnp.mean(z, -1, keepdims=True)
        var = jnp.mean((z - mu) ** 2, -1, keepdims=True)
        return (z - mu) * jax.lax.rsqrt(var + LN_EPS) * g + b

    xn = ln(x, p["g1"], p["be1"])
    q = (xn @ f32(p["wq"]) + p["bq"]).reshape(B, S, n_heads, d).transpose(0, 2, 1, 3)
    k = (xn @ f32(p["wk"]) + p["bk"]).reshape(B, S, n_heads, d).transpose(0, 2, 1, 3)
    v = (xn @ f32(p["wv"]) + p["bv"]).reshape(B, S, n_heads, d).transpose(0, 2, 1, 3)
    s = jnp.einsum("bhqd,bhkd->bhqk", q, k) / (d ** 0.5) + neg
    w = jax.nn.softmax(s, axis=-1)
    ctx = jnp.einsum("bhqk,bhkd->bhqd", w, v).transpose(0, 2, 1, 3).reshape(B, S, H)
    x1 = x + ctx @ f32(p["wo"]) + p["bo"]

    x1n = ln(x1, p["g2"], p["be2"])
    ff = jnp.maximum(x1n @ f32(p["w1"]) + p["b1"], 0.0) @ f32(p["w2"]) + p["b2"]
    return x1 + ff


if __name__ == "__main__":
    B, S, H, NH, F = 2, 8, 32, 4, 64
    key = jax.random.PRNGKey(0)
    kx, kp = jax.random.split(key)
    x = jax.random.normal(kx, (B, S, H), jnp.float32)
    # key_padding_mask: True => that key position is ignored (PyTorch convention)
    mask = jnp.zeros((B, S), dtype=bool).at[1, 6:].set(True)
    params = init_params(kp, H, F)

    out = encoder_layer(x, mask, params, NH)
    out = jax.block_until_ready(out)

    ref = reference(x, mask, params, NH)
    assert out.shape == (B, S, H)
    max_err = float(jnp.max(jnp.abs(out - ref)))
    assert jnp.allclose(out, ref, atol=3e-2, rtol=3e-2), f"max abs err {max_err}"

    print("KERNEL_OK")
</pallas_src>

<mosaic_0001>
module attributes {stable_mosaic.version = 11 : i64} {
  func.func @encoder_layer_kernel(%arg0: i32, %arg1: memref<2x1x8xf32, #tpu.memory_space<vmem>>, %arg2: memref<2x8x32xf32, #tpu.memory_space<vmem>>, %arg3: memref<32x96xbf16, #tpu.memory_space<vmem>>, %arg4: memref<1x96xf32, #tpu.memory_space<vmem>>, %arg5: memref<32x32xbf16, #tpu.memory_space<vmem>>, %arg6: memref<1x32xf32, #tpu.memory_space<vmem>>, %arg7: memref<1x32xf32, #tpu.memory_space<vmem>>, %arg8: memref<1x32xf32, #tpu.memory_space<vmem>>, %arg9: memref<1x32xf32, #tpu.memory_space<vmem>>, %arg10: memref<1x32xf32, #tpu.memory_space<vmem>>, %arg11: memref<32x64xbf16, #tpu.memory_space<vmem>>, %arg12: memref<1x64xf32, #tpu.memory_space<vmem>>, %arg13: memref<64x32xbf16, #tpu.memory_space<vmem>>, %arg14: memref<1x32xf32, #tpu.memory_space<vmem>>, %arg15: memref<2x8x32xf32, #tpu.memory_space<vmem>>, %arg16: memref<2x8x32xbf16, #tpu.memory_space<vmem>>) attributes {dimension_semantics = [#tpu.dimension_semantics<parallel>], iteration_bounds = array<i64: 1>, scalar_prefetch = 0 : i64, scratch_operands = 1 : i64, tpu.core_type = #tpu.core_type<tc>, window_params = [{transform_indices = @transform_0, window_bounds = array<i64: 2, 1, 8>}, {transform_indices = @transform_1, window_bounds = array<i64: 2, 8, 32>}, {pipeline_mode = #tpu.pipeline_mode<synchronous>, transform_indices = @transform_2, window_bounds = array<i64: 32, 96>}, {pipeline_mode = #tpu.pipeline_mode<synchronous>, transform_indices = @transform_3, window_bounds = array<i64: 1, 96>}, {pipeline_mode = #tpu.pipeline_mode<synchronous>, transform_indices = @transform_4, window_bounds = array<i64: 32, 32>}, {pipeline_mode = #tpu.pipeline_mode<synchronous>, transform_indices = @transform_5, window_bounds = array<i64: 1, 32>}, {pipeline_mode = #tpu.pipeline_mode<synchronous>, transform_indices = @transform_6, window_bounds = array<i64: 1, 32>}, {pipeline_mode = #tpu.pipeline_mode<synchronous>, transform_indices = @transform_7, window_bounds = array<i64: 1, 32>}, {pipeline_mode = #tpu.pipeline_mode<synchronous>, transform_indices = @transform_8, window_bounds = array<i64: 1, 32>}, {pipeline_mode = #tpu.pipeline_mode<synchronous>, transform_indices = @transform_9, window_bounds = array<i64: 1, 32>}, {pipeline_mode = #tpu.pipeline_mode<synchronous>, transform_indices = @transform_10, window_bounds = array<i64: 32, 64>}, {pipeline_mode = #tpu.pipeline_mode<synchronous>, transform_indices = @transform_11, window_bounds = array<i64: 1, 64>}, {pipeline_mode = #tpu.pipeline_mode<synchronous>, transform_indices = @transform_12, window_bounds = array<i64: 64, 32>}, {pipeline_mode = #tpu.pipeline_mode<synchronous>, transform_indices = @transform_13, window_bounds = array<i64: 1, 32>}, {transform_indices = @transform_14, window_bounds = array<i64: 2, 8, 32>}]} {
    %c0 = arith.constant 0 : index
    %c0_0 = arith.constant 0 : index
    %c0_1 = arith.constant 0 : index
    %0 = vector.load %arg2[%c0, %c0_0, %c0_1] : memref<2x8x32xf32, #tpu.memory_space<vmem>>, vector<2x8x32xf32>
    %1 = vector.shape_cast %0 : vector<2x8x32xf32> to vector<16x32xf32>
    %c0_2 = arith.constant 0 : index
    %c0_3 = arith.constant 0 : index
    %c0_4 = arith.constant 0 : index
    %2 = vector.load %arg1[%c0_2, %c0_3, %c0_4] : memref<2x1x8xf32, #tpu.memory_space<vmem>>, vector<2x1x8xf32>
    %cst = arith.constant 5.000000e-01 : f32
    %3 = vector.broadcast %cst : f32 to vector<2x1x8xf32>
    %4 = arith.cmpf ogt, %2, %3 : vector<2x1x8xf32>
    %cst_5 = arith.constant -1.000000e+30 : f32
    %cst_6 = arith.constant 0.000000e+00 : f32
    %5 = vector.broadcast %cst_5 : f32 to vector<2x1x8xf32>
    %6 = vector.broadcast %cst_6 : f32 to vector<2x1x8xf32>
    %7 = arith.select %4, %5, %6 : vector<2x1x8xi1>, vector<2x1x8xf32>
    %cst_7 = arith.constant dense<0.000000e+00> : vector<16xf32>
    %8 = vector.multi_reduction <add>, %1, %cst_7 [1] : vector<16x32xf32> to vector<16xf32>
    %9 = vector.shape_cast %8 : vector<16xf32> to vector<16x1xf32>
    %cst_8 = arith.constant 3.200000e+01 : f32
    %10 = vector.broadcast %cst_8 : f32 to vector<16x1xf32>
    %11 = arith.divf %9, %10 : vector<16x1xf32>
    %12 = vector.broadcast %11 : vector<16x1xf32> to vector<16x32xf32>
    %13 = arith.subf %1, %12 : vector<16x32xf32>
    %14 = arith.mulf %13, %13 : vector<16x32xf32>
    %cst_9 = arith.constant dense<0.000000e+00> : vector<16xf32>
    %15 = vector.multi_reduction <add>, %14, %cst_9 [1] : vector<16x32xf32> to vector<16xf32>
    %16 = vector.shape_cast %15 : vector<16xf32> to vector<16x1xf32>
    %cst_10 = arith.constant 3.200000e+01 : f32
    %17 = vector.broadcast %cst_10 : f32 to vector<16x1xf32>
    %18 = arith.divf %16, %17 : vector<16x1xf32>
    %19 = vector.broadcast %11 : vector<16x1xf32> to vector<16x32xf32>
    %20 = arith.subf %1, %19 : vector<16x32xf32>
    %cst_11 = arith.constant 9.99999997E-7 : f32
    %21 = vector.broadcast %cst_11 : f32 to vector<16x1xf32>
    %22 = arith.addf %18, %21 : vector<16x1xf32>
    %23 = math.rsqrt %22 : vector<16x1xf32>
    %24 = vector.broadcast %23 : vector<16x1xf32> to vector<16x32xf32>
    %25 = arith.mulf %20, %24 : vector<16x32xf32>
    %c0_12 = arith.constant 0 : index
    %c0_13 = arith.constant 0 : index
    %26 = vector.load %arg7[%c0_12, %c0_13] : memref<1x32xf32, #tpu.memory_space<vmem>>, vector<1x32xf32>
    %27 = vector.broadcast %26 : vector<1x32xf32> to vector<16x32xf32>
    %28 = arith.mulf %25, %27 : vector<16x32xf32>
    %c0_14 = arith.constant 0 : index
    %c0_15 = arith.constant 0 : index
    %29 = vector.load %arg8[%c0_14, %c0_15] : memref<1x32xf32, #tpu.memory_space<vmem>>, vector<1x32xf32>
    %30 = vector.broadcast %29 : vector<1x32xf32> to vector<16x32xf32>
    %31 = arith.addf %28, %30 : vector<16x32xf32>
    %32 = arith.truncf %31 : vector<16x32xf32> to vector<16x32xbf16>
    %c0_16 = arith.constant 0 : index
    %c0_17 = arith.constant 0 : index
    %33 = vector.load %arg3[%c0_16, %c0_17] : memref<32x96xbf16, #tpu.memory_space<vmem>>, vector<32x96xbf16>
    %cst_18 = arith.constant dense<0.000000e+00> : vector<16x96xf32>
    %34 = tpu.matmul %32, %33, %cst_18 {dimension_numbers = #tpu.dot_dimension_numbers<[1], [0], [0], [1], [0, 0, 1, 1], [], []>} : vector<16x32xbf16>, vector<32x96xbf16>, vector<16x96xf32> -> vector<16x96xf32>
    %c0_19 = arith.constant 0 : index
    %c0_20 = arith.constant 0 : index
    %35 = vector.load %arg4[%c0_19, %c0_20] : memref<1x96xf32, #tpu.memory_space<vmem>>, vector<1x96xf32>
    %36 = vector.broadcast %35 : vector<1x96xf32> to vector<16x96xf32>
    %37 = arith.addf %34, %36 : vector<16x96xf32>
    %38 = vector.extract_strided_slice %37 {offsets = [0, 0], sizes = [16, 32], strides = [1, 1]} : vector<16x96xf32> to vector<16x32xf32>
    %cst_21 = arith.constant 0.353553385 : f32
    %39 = vector.broadcast %cst_21 : f32 to vector<16x32xf32>
    %40 = arith.mulf %38, %39 : vector<16x32xf32>
    %41 = arith.truncf %40 : vector<16x32xf32> to vector<16x32xbf16>
    %42 = vector.shape_cast %41 : vector<16x32xbf16> to vector<2x8x32xbf16>
    %43 = vector.extract_strided_slice %37 {offsets = [0, 32], sizes = [16, 32], strides = [1, 1]} : vector<16x96xf32> to vector<16x32xf32>
    %44 = arith.truncf %43 : vector<16x32xf32> to vector<16x32xbf16>
    %45 = vector.shape_cast %44 : vector<16x32xbf16> to vector<2x8x32xbf16>
    %46 = vector.extract_strided_slice %37 {offsets = [0, 64], sizes = [16, 32], strides = [1, 1]} : vector<16x96xf32> to vector<16x32xf32>
    %47 = arith.truncf %46 : vector<16x32xf32> to vector<16x32xbf16>
    %48 = vector.shape_cast %47 : vector<16x32xbf16> to vector<2x8x32xbf16>
    %49 = vector.extract_strided_slice %42 {offsets = [0, 0, 0], sizes = [2, 8, 8], strides = [1, 1, 1]} : vector<2x8x32xbf16> to vector<2x8x8xbf16>
    %50 = vector.extract_strided_slice %45 {offsets = [0, 0, 0], sizes = [2, 8, 8], strides = [1, 1, 1]} : vector<2x8x32xbf16> to vector<2x8x8xbf16>
    %51 = vector.extract_strided_slice %48 {offsets = [0, 0, 0], sizes = [2, 8, 8], strides = [1, 1, 1]} : vector<2x8x32xbf16> to vector<2x8x8xbf16>
    "tpu.trace_start"() <{level = 10 : i32, message = "bqd,bkd->bqk"}> : () -> ()
    %cst_22 = arith.constant dense<0.000000e+00> : vector<2x8x8xf32>
    %52 = tpu.matmul %49, %50, %cst_22 {dimension_numbers = #tpu.dot_dimension_numbers<[2], [2], [1], [1], [0, 0, 0, 1, 1, 1], [0], [0]>} : vector<2x8x8xbf16>, vector<2x8x8xbf16>, vector<2x8x8xf32> -> vector<2x8x8xf32>
    "tpu.trace_stop"() : () -> ()
    %53 = vector.broadcast %7 : vector<2x1x8xf32> to vector<2x8x8xf32>
    %54 = arith.addf %52, %53 : vector<2x8x8xf32>
    %cst_23 = arith.constant dense<0xFF800000> : vector<2x8xf32>
    %55 = vector.multi_reduction <maximumf>, %54, %cst_23 [2] : vector<2x8x8xf32> to vector<2x8xf32>
    %56 = vector.shape_cast %55 : vector<2x8xf32> to vector<2x8x1xf32>
    %57 = vector.broadcast %56 : vector<2x8x1xf32> to vector<2x8x8xf32>
    %58 = arith.subf %54, %57 : vector<2x8x8xf32>
    %59 = math.exp %58 : vector<2x8x8xf32>
    %cst_24 = arith.constant dense<0.000000e+00> : vector<2x8xf32>
    %60 = vector.multi_reduction <add>, %59, %cst_24 [2] : vector<2x8x8xf32> to vector<2x8xf32>
    %61 = vector.shape_cast %60 : vector<2x8xf32> to vector<2x8x1xf32>
    %62 = tpu.reciprocal %61 {approx = true} : vector<2x8x1xf32> -> vector<2x8x1xf32>
    %63 = vector.broadcast %62 : vector<2x8x1xf32> to vector<2x8x8xf32>
    %64 = arith.mulf %59, %63 : vector<2x8x8xf32>
    %65 = arith.truncf %64 : vector<2x8x8xf32> to vector<2x8x8xbf16>
    "tpu.trace_start"() <{level = 10 : i32, message = "bqk,bkd->bqd"}> : () -> ()
    %cst_25 = arith.constant dense<0.000000e+00> : vector<2x8x8xf32>
    %66 = tpu.matmul %65, %51, %cst_25 {dimension_numbers = #tpu.dot_dimension_numbers<[2], [1], [1], [2], [0, 0, 0, 1, 1, 2], [0], [0]>} : vector<2x8x8xbf16>, vector<2x8x8xbf16>, vector<2x8x8xf32> -> vector<2x8x8xf32>
    "tpu.trace_stop"() : () -> ()
    %67 = arith.truncf %66 : vector<2x8x8xf32> to vector<2x8x8xbf16>
    %c0_26 = arith.constant 0 : index
    %c0_27 = arith.constant 0 : index
    %c0_28 = arith.constant 0 : index
    %68 = vector.load %arg16[%c0_26, %c0_27, %c0_28] : memref<2x8x32xbf16, #tpu.memory_space<vmem>>, vector<2x8x8xbf16>
    tpu.vector_store %arg16[%c0_26, %c0_27, %c0_28], %67 {strides = array<i32>} : memref<2x8x32xbf16, #tpu.memory_space<vmem>>, vector<2x8x8xbf16>,
    %69 = vector.extract_strided_slice %42 {offsets = [0, 0, 8], sizes = [2, 8, 8], strides = [1, 1, 1]} : vector<2x8x32xbf16> to vector<2x8x8xbf16>
    %70 = vector.extract_strided_slice %45 {offsets = [0, 0, 8], sizes = [2, 8, 8], strides = [1, 1, 1]} : vector<2x8x32xbf16> to vector<2x8x8xbf16>
    %71 = vector.extract_strided_slice %48 {offsets = [0, 0, 8], sizes = [2, 8, 8], strides = [1, 1, 1]} : vector<2x8x32xbf16> to vector<2x8x8xbf16>
    "tpu.trace_start"() <{level = 10 : i32, message = "bqd,bkd->bqk"}> : () -> ()
    %cst_29 = arith.constant dense<0.000000e+00> : vector<2x8x8xf32>
    %72 = tpu.matmul %69, %70, %cst_29 {dimension_numbers = #tpu.dot_dimension_numbers<[2], [2], [1], [1], [0, 0, 0, 1, 1, 1], [0], [0]>} : vector<2x8x8xbf16>, vector<2x8x8xbf16>, vector<2x8x8xf32> -> vector<2x8x8xf32>
    "tpu.trace_stop"() : () -> ()
    %73 = vector.broadcast %7 : vector<2x1x8xf32> to vector<2x8x8xf32>
    %74 = arith.addf %72, %73 : vector<2x8x8xf32>
    %cst_30 = arith.constant dense<0xFF800000> : vector<2x8xf32>
    %75 = vector.multi_reduction <maximumf>, %74, %cst_30 [2] : vector<2x8x8xf32> to vector<2x8xf32>
    %76 = vector.shape_cast %75 : vector<2x8xf32> to vector<2x8x1xf32>
    %77 = vector.broadcast %76 : vector<2x8x1xf32> to vector<2x8x8xf32>
    %78 = arith.subf %74, %77 : vector<2x8x8xf32>
    %79 = math.exp %78 : vector<2x8x8xf32>
    %cst_31 = arith.constant dense<0.000000e+00> : vector<2x8xf32>
    %80 = vector.multi_reduction <add>, %79, %cst_31 [2] : vector<2x8x8xf32> to vector<2x8xf32>
    %81 = vector.shape_cast %80 : vector<2x8xf32> to vector<2x8x1xf32>
    %82 = tpu.reciprocal %81 {approx = true} : vector<2x8x1xf32> -> vector<2x8x1xf32>
    %83 = vector.broadcast %82 : vector<2x8x1xf32> to vector<2x8x8xf32>
    %84 = arith.mulf %79, %83 : vector<2x8x8xf32>
    %85 = arith.truncf %84 : vector<2x8x8xf32> to vector<2x8x8xbf16>
    "tpu.trace_start"() <{level = 10 : i32, message = "bqk,bkd->bqd"}> : () -> ()
    %cst_32 = arith.constant dense<0.000000e+00> : vector<2x8x8xf32>
    %86 = tpu.matmul %85, %71, %cst_32 {dimension_numbers = #tpu.dot_dimension_numbers<[2], [1], [1], [2], [0, 0, 0, 1, 1, 2], [0], [0]>} : vector<2x8x8xbf16>, vector<2x8x8xbf16>, vector<2x8x8xf32> -> vector<2x8x8xf32>
    "tpu.trace_stop"() : () -> ()
    %87 = arith.truncf %86 : vector<2x8x8xf32> to vector<2x8x8xbf16>
    %c0_33 = arith.constant 0 : index
    %c0_34 = arith.constant 0 : index
    %c8 = arith.constant 8 : index
    %88 = vector.load %arg16[%c0_33, %c0_34, %c8] : memref<2x8x32xbf16, #tpu.memory_space<vmem>>, vector<2x8x8xbf16>
    tpu.vector_store %arg16[%c0_33, %c0_34, %c8], %87 {strides = array<i32>} : memref<2x8x32xbf16, #tpu.memory_space<vmem>>, vector<2x8x8xbf16>,
    %89 = vector.extract_strided_slice %42 {offsets = [0, 0, 16], sizes = [2, 8, 8], strides = [1, 1, 1]} : vector<2x8x32xbf16> to vector<2x8x8xbf16>
    %90 = vector.extract_strided_slice %45 {offsets = [0, 0, 16], sizes = [2, 8, 8], strides = [1, 1, 1]} : vector<2x8x32xbf16> to vector<2x8x8xbf16>
    %91 = vector.extract_strided_slice %48 {offsets = [0, 0, 16], sizes = [2, 8, 8], strides = [1, 1, 1]} : vector<2x8x32xbf16> to vector<2x8x8xbf16>
    "tpu.trace_start"() <{level = 10 : i32, message = "bqd,bkd->bqk"}> : () -> ()
    %cst_35 = arith.constant dense<0.000000e+00> : vector<2x8x8xf32>
    %92 = tpu.matmul %89, %90, %cst_35 {dimension_numbers = #tpu.dot_dimension_numbers<[2], [2], [1], [1], [0, 0, 0, 1, 1, 1], [0], [0]>} : vector<2x8x8xbf16>, vector<2x8x8xbf16>, vector<2x8x8xf32> -> vector<2x8x8xf32>
    "tpu.trace_stop"() : () -> ()
    %93 = vector.broadcast %7 : vector<2x1x8xf32> to vector<2x8x8xf32>
    %94 = arith.addf %92, %93 : vector<2x8x8xf32>
    %cst_36 = arith.constant dense<0xFF800000> : vector<2x8xf32>
    %95 = vector.multi_reduction <maximumf>, %94, %cst_36 [2] : vector<2x8x8xf32> to vector<2x8xf32>
    %96 = vector.shape_cast %95 : vector<2x8xf32> to vector<2x8x1xf32>
    %97 = vector.broadcast %96 : vector<2x8x1xf32> to vector<2x8x8xf32>
    %98 = arith.subf %94, %97 : vector<2x8x8xf32>
    %99 = math.exp %98 : vector<2x8x8xf32>
    %cst_37 = arith.constant dense<0.000000e+00> : vector<2x8xf32>
    %100 = vector.multi_reduction <add>, %99, %cst_37 [2] : vector<2x8x8xf32> to vector<2x8xf32>
    %101 = vector.shape_cast %100 : vector<2x8xf32> to vector<2x8x1xf32>
    %102 = tpu.reciprocal %101 {approx = true} : vector<2x8x1xf32> -> vector<2x8x1xf32>
    %103 = vector.broadcast %102 : vector<2x8x1xf32> to vector<2x8x8xf32>
    %104 = arith.mulf %99, %103 : vector<2x8x8xf32>
    %105 = arith.truncf %104 : vector<2x8x8xf32> to vector<2x8x8xbf16>
    "tpu.trace_start"() <{level = 10 : i32, message = "bqk,bkd->bqd"}> : () -> ()
    %cst_38 = arith.constant dense<0.000000e+00> : vector<2x8x8xf32>
    %106 = tpu.matmul %105, %91, %cst_38 {dimension_numbers = #tpu.dot_dimension_numbers<[2], [1], [1], [2], [0, 0, 0, 1, 1, 2], [0], [0]>} : vector<2x8x8xbf16>, vector<2x8x8xbf16>, vector<2x8x8xf32> -> vector<2x8x8xf32>
    "tpu.trace_stop"() : () -> ()
    %107 = arith.truncf %106 : vector<2x8x8xf32> to vector<2x8x8xbf16>
    %c0_39 = arith.constant 0 : index
    %c0_40 = arith.constant 0 : index
    %c16 = arith.constant 16 : index
    %108 = vector.load %arg16[%c0_39, %c0_40, %c16] : memref<2x8x32xbf16, #tpu.memory_space<vmem>>, vector<2x8x8xbf16>
    tpu.vector_store %arg16[%c0_39, %c0_40, %c16], %107 {strides = array<i32>} : memref<2x8x32xbf16, #tpu.memory_space<vmem>>, vector<2x8x8xbf16>,
    %109 = vector.extract_strided_slice %42 {offsets = [0, 0, 24], sizes = [2, 8, 8], strides = [1, 1, 1]} : vector<2x8x32xbf16> to vector<2x8x8xbf16>
    %110 = vector.extract_strided_slice %45 {offsets = [0, 0, 24], sizes = [2, 8, 8], strides = [1, 1, 1]} : vector<2x8x32xbf16> to vector<2x8x8xbf16>
    %111 = vector.extract_strided_slice %48 {offsets = [0, 0, 24], sizes = [2, 8, 8], strides = [1, 1, 1]} : vector<2x8x32xbf16> to vector<2x8x8xbf16>
    "tpu.trace_start"() <{level = 10 : i32, message = "bqd,bkd->bqk"}> : () -> ()
    %cst_41 = arith.constant dense<0.000000e+00> : vector<2x8x8xf32>
    %112 = tpu.matmul %109, %110, %cst_41 {dimension_numbers = #tpu.dot_dimension_numbers<[2], [2], [1], [1], [0, 0, 0, 1, 1, 1], [0], [0]>} : vector<2x8x8xbf16>, vector<2x8x8xbf16>, vector<2x8x8xf32> -> vector<2x8x8xf32>
    "tpu.trace_stop"() : () -> ()
    %113 = vector.broadcast %7 : vector<2x1x8xf32> to vector<2x8x8xf32>
    %114 = arith.addf %112, %113 : vector<2x8x8xf32>
    %cst_42 = arith.constant dense<0xFF800000> : vector<2x8xf32>
    %115 = vector.multi_reduction <maximumf>, %114, %cst_42 [2] : vector<2x8x8xf32> to vector<2x8xf32>
    %116 = vector.shape_cast %115 : vector<2x8xf32> to vector<2x8x1xf32>
    %117 = vector.broadcast %116 : vector<2x8x1xf32> to vector<2x8x8xf32>
    %118 = arith.subf %114, %117 : vector<2x8x8xf32>
    %119 = math.exp %118 : vector<2x8x8xf32>
    %cst_43 = arith.constant dense<0.000000e+00> : vector<2x8xf32>
    %120 = vector.multi_reduction <add>, %119, %cst_43 [2] : vector<2x8x8xf32> to vector<2x8xf32>
    %121 = vector.shape_cast %120 : vector<2x8xf32> to vector<2x8x1xf32>
    %122 = tpu.reciprocal %121 {approx = true} : vector<2x8x1xf32> -> vector<2x8x1xf32>
    %123 = vector.broadcast %122 : vector<2x8x1xf32> to vector<2x8x8xf32>
    %124 = arith.mulf %119, %123 : vector<2x8x8xf32>
    %125 = arith.truncf %124 : vector<2x8x8xf32> to vector<2x8x8xbf16>
    "tpu.trace_start"() <{level = 10 : i32, message = "bqk,bkd->bqd"}> : () -> ()
    %cst_44 = arith.constant dense<0.000000e+00> : vector<2x8x8xf32>
    %126 = tpu.matmul %125, %111, %cst_44 {dimension_numbers = #tpu.dot_dimension_numbers<[2], [1], [1], [2], [0, 0, 0, 1, 1, 2], [0], [0]>} : vector<2x8x8xbf16>, vector<2x8x8xbf16>, vector<2x8x8xf32> -> vector<2x8x8xf32>
    "tpu.trace_stop"() : () -> ()
    %127 = arith.truncf %126 : vector<2x8x8xf32> to vector<2x8x8xbf16>
    %c0_45 = arith.constant 0 : index
    %c0_46 = arith.constant 0 : index
    %c24 = arith.constant 24 : index
    %128 = vector.load %arg16[%c0_45, %c0_46, %c24] : memref<2x8x32xbf16, #tpu.memory_space<vmem>>, vector<2x8x8xbf16>
    tpu.vector_store %arg16[%c0_45, %c0_46, %c24], %127 {strides = array<i32>} : memref<2x8x32xbf16, #tpu.memory_space<vmem>>, vector<2x8x8xbf16>,
    %c0_47 = arith.constant 0 : index
    %c0_48 = arith.constant 0 : index
    %c0_49 = arith.constant 0 : index
    %129 = vector.load %arg16[%c0_47, %c0_48, %c0_49] : memref<2x8x32xbf16, #tpu.memory_space<vmem>>, vector<2x8x32xbf16>
    %130 = vector.shape_cast %129 : vector<2x8x32xbf16> to vector<16x32xbf16>
    %c0_50 = arith.constant 0 : index
    %c0_51 = arith.constant 0 : index
    %131 = vector.load %arg5[%c0_50, %c0_51] : memref<32x32xbf16, #tpu.memory_space<vmem>>, vector<32x32xbf16>
    %cst_52 = arith.constant dense<0.000000e+00> : vector<16x32xf32>
    %132 = tpu.matmul %130, %131, %cst_52 {dimension_numbers = #tpu.dot_dimension_numbers<[1], [0], [0], [1], [0, 0, 1, 1], [], []>} : vector<16x32xbf16>, vector<32x32xbf16>, vector<16x32xf32> -> vector<16x32xf32>
    %c0_53 = arith.constant 0 : index
    %c0_54 = arith.constant 0 : index
    %133 = vector.load %arg6[%c0_53, %c0_54] : memref<1x32xf32, #tpu.memory_space<vmem>>, vector<1x32xf32>
    %134 = vector.broadcast %133 : vector<1x32xf32> to vector<16x32xf32>
    %135 = arith.addf %132, %134 : vector<16x32xf32>
    %136 = arith.addf %1, %135 : vector<16x32xf32>
    %cst_55 = arith.constant dense<0.000000e+00> : vector<16xf32>
    %137 = vector.multi_reduction <add>, %136, %cst_55 [1] : vector<16x32xf32> to vector<16xf32>
    %138 = vector.shape_cast %137 : vector<16xf32> to vector<16x1xf32>
    %cst_56 = arith.constant 3.200000e+01 : f32
    %139 = vector.broadcast %cst_56 : f32 to vector<16x1xf32>
    %140 = arith.divf %138, %139 : vector<16x1xf32>
    %141 = vector.broadcast %140 : vector<16x1xf32> to vector<16x32xf32>
    %142 = arith.subf %136, %141 : vector<16x32xf32>
    %143 = arith.mulf %142, %142 : vector<16x32xf32>
    %cst_57 = arith.constant dense<0.000000e+00> : vector<16xf32>
    %144 = vector.multi_reduction <add>, %143, %cst_57 [1] : vector<16x32xf32> to vector<16xf32>
    %145 = vector.shape_cast %144 : vector<16xf32> to vector<16x1xf32>
    %cst_58 = arith.constant 3.200000e+01 : f32
    %146 = vector.broadcast %cst_58 : f32 to vector<16x1xf32>
    %147 = arith.divf %145, %146 : vector<16x1xf32>
    %148 = vector.broadcast %140 : vector<16x1xf32> to vector<16x32xf32>
    %149 = arith.subf %136, %148 : vector<16x32xf32>
    %cst_59 = arith.constant 9.99999997E-7 : f32
    %150 = vector.broadcast %cst_59 : f32 to vector<16x1xf32>
    %151 = arith.addf %147, %150 : vector<16x1xf32>
    %152 = math.rsqrt %151 : vector<16x1xf32>
    %153 = vector.broadcast %152 : vector<16x1xf32> to vector<16x32xf32>
    %154 = arith.mulf %149, %153 : vector<16x32xf32>
    %c0_60 = arith.constant 0 : index
    %c0_61 = arith.constant 0 : index
    %155 = vector.load %arg9[%c0_60, %c0_61] : memref<1x32xf32, #tpu.memory_space<vmem>>, vector<1x32xf32>
    %156 = vector.broadcast %155 : vector<1x32xf32> to vector<16x32xf32>
    %157 = arith.mulf %154, %156 : vector<16x32xf32>
    %c0_62 = arith.constant 0 : index
    %c0_63 = arith.constant 0 : index
    %158 = vector.load %arg10[%c0_62, %c0_63] : memref<1x32xf32, #tpu.memory_space<vmem>>, vector<1x32xf32>
    %159 = vector.broadcast %158 : vector<1x32xf32> to vector<16x32xf32>
    %160 = arith.addf %157, %159 : vector<16x32xf32>
    %161 = arith.truncf %160 : vector<16x32xf32> to vector<16x32xbf16>
    %c0_64 = arith.constant 0 : index
    %c0_65 = arith.constant 0 : index
    %162 = vector.load %arg11[%c0_64, %c0_65] : memref<32x64xbf16, #tpu.memory_space<vmem>>, vector<32x64xbf16>
    %cst_66 = arith.constant dense<0.000000e+00> : vector<16x64xf32>
    %163 = tpu.matmul %161, %162, %cst_66 {dimension_numbers = #tpu.dot_dimension_numbers<[1], [0], [0], [1], [0, 0, 1, 1], [], []>} : vector<16x32xbf16>, vector<32x64xbf16>, vector<16x64xf32> -> vector<16x64xf32>
    %c0_67 = arith.constant 0 : index
    %c0_68 = arith.constant 0 : index
    %164 = vector.load %arg12[%c0_67, %c0_68] : memref<1x64xf32, #tpu.memory_space<vmem>>, vector<1x64xf32>
    %165 = vector.broadcast %164 : vector<1x64xf32> to vector<16x64xf32>
    %166 = arith.addf %163, %165 : vector<16x64xf32>
    %cst_69 = arith.constant 0.000000e+00 : f32
    %167 = vector.broadcast %cst_69 : f32 to vector<16x64xf32>
    %168 = arith.maximumf %166, %167 : vector<16x64xf32>
    %169 = arith.truncf %168 : vector<16x64xf32> to vector<16x64xbf16>
    %c0_70 = arith.constant 0 : index
    %c0_71 = arith.constant 0 : index
    %170 = vector.load %arg13[%c0_70, %c0_71] : memref<64x32xbf16, #tpu.memory_space<vmem>>, vector<64x32xbf16>
    %cst_72 = arith.constant dense<0.000000e+00> : vector<16x32xf32>
    %171 = tpu.matmul %169, %170, %cst_72 {dimension_numbers = #tpu.dot_dimension_numbers<[1], [0], [0], [1], [0, 0, 1, 1], [], []>} : vector<16x64xbf16>, vector<64x32xbf16>, vector<16x32xf32> -> vector<16x32xf32>
    %c0_73 = arith.constant 0 : index
    %c0_74 = arith.constant 0 : index
    %172 = vector.load %arg14[%c0_73, %c0_74] : memref<1x32xf32, #tpu.memory_space<vmem>>, vector<1x32xf32>
    %173 = vector.broadcast %172 : vector<1x32xf32> to vector<16x32xf32>
    %174 = arith.addf %171, %173 : vector<16x32xf32>
    %175 = arith.addf %136, %174 : vector<16x32xf32>
    %176 = vector.shape_cast %175 : vector<16x32xf32> to vector<2x8x32xf32>
    %c0_75 = arith.constant 0 : index
    %c0_76 = arith.constant 0 : index
    %c0_77 = arith.constant 0 : index
    %177 = vector.load %arg15[%c0_75, %c0_76, %c0_77] : memref<2x8x32xf32, #tpu.memory_space<vmem>>, vector<2x8x32xf32>
    tpu.vector_store %arg15[%c0_75, %c0_76, %c0_77], %176 {strides = array<i32>} : memref<2x8x32xf32, #tpu.memory_space<vmem>>, vector<2x8x32xf32>,
    return
  }
  func.func @transform_0(%arg0: i32) -> (i32, i32, i32) {
    %c0_i32 = arith.constant 0 : i32
    %c0_i32_0 = arith.constant 0 : i32
    %c0_i32_1 = arith.constant 0 : i32
    return %arg0, %c0_i32, %c0_i32_0 : i32, i32, i32
  }
  func.func @transform_1(%arg0: i32) -> (i32, i32, i32) {
    %c0_i32 = arith.constant 0 : i32
    %c0_i32_0 = arith.constant 0 : i32
    %c0_i32_1 = arith.constant 0 : i32
    return %arg0, %c0_i32, %c0_i32_0 : i32, i32, i32
  }
  func.func @transform_2(%arg0: i32) -> (i32, i32) {
    %c0_i32 = arith.constant 0 : i32
    %c0_i32_0 = arith.constant 0 : i32
    %c0_i32_1 = arith.constant 0 : i32
    return %c0_i32, %c0_i32_0 : i32, i32
  }
  func.func @transform_3(%arg0: i32) -> (i32, i32) {
    %c0_i32 = arith.constant 0 : i32
    %c0_i32_0 = arith.constant 0 : i32
    %c0_i32_1 = arith.constant 0 : i32
    return %c0_i32, %c0_i32_0 : i32, i32
  }
  func.func @transform_4(%arg0: i32) -> (i32, i32) {
    %c0_i32 = arith.constant 0 : i32
    %c0_i32_0 = arith.constant 0 : i32
    %c0_i32_1 = arith.constant 0 : i32
    return %c0_i32, %c0_i32_0 : i32, i32
  }
  func.func @transform_5(%arg0: i32) -> (i32, i32) {
    %c0_i32 = arith.constant 0 : i32
    %c0_i32_0 = arith.constant 0 : i32
    %c0_i32_1 = arith.constant 0 : i32
    return %c0_i32, %c0_i32_0 : i32, i32
  }
  func.func @transform_6(%arg0: i32) -> (i32, i32) {
    %c0_i32 = arith.constant 0 : i32
    %c0_i32_0 = arith.constant 0 : i32
    %c0_i32_1 = arith.constant 0 : i32
    return %c0_i32, %c0_i32_0 : i32, i32
  }
  func.func @transform_7(%arg0: i32) -> (i32, i32) {
    %c0_i32 = arith.constant 0 : i32
    %c0_i32_0 = arith.constant 0 : i32
    %c0_i32_1 = arith.constant 0 : i32
    return %c0_i32, %c0_i32_0 : i32, i32
  }
  func.func @transform_8(%arg0: i32) -> (i32, i32) {
    %c0_i32 = arith.constant 0 : i32
    %c0_i32_0 = arith.constant 0 : i32
    %c0_i32_1 = arith.constant 0 : i32
    return %c0_i32, %c0_i32_0 : i32, i32
  }
  func.func @transform_9(%arg0: i32) -> (i32, i32) {
    %c0_i32 = arith.constant 0 : i32
    %c0_i32_0 = arith.constant 0 : i32
    %c0_i32_1 = arith.constant 0 : i32
    return %c0_i32, %c0_i32_0 : i32, i32
  }
  func.func @transform_10(%arg0: i32) -> (i32, i32) {
    %c0_i32 = arith.constant 0 : i32
    %c0_i32_0 = arith.constant 0 : i32
    %c0_i32_1 = arith.constant 0 : i32
    return %c0_i32, %c0_i32_0 : i32, i32
  }
  func.func @transform_11(%arg0: i32) -> (i32, i32) {
    %c0_i32 = arith.constant 0 : i32
    %c0_i32_0 = arith.constant 0 : i32
    %c0_i32_1 = arith.constant 0 : i32
    return %c0_i32, %c0_i32_0 : i32, i32
  }
  func.func @transform_12(%arg0: i32) -> (i32, i32) {
    %c0_i32 = arith.constant 0 : i32
    %c0_i32_0 = arith.constant 0 : i32
    %c0_i32_1 = arith.constant 0 : i32
    return %c0_i32, %c0_i32_0 : i32, i32
  }
  func.func @transform_13(%arg0: i32) -> (i32, i32) {
    %c0_i32 = arith.constant 0 : i32
    %c0_i32_0 = arith.constant 0 : i32
    %c0_i32_1 = arith.constant 0 : i32
    return %c0_i32, %c0_i32_0 : i32, i32
  }
  func.func @transform_14(%arg0: i32) -> (i32, i32, i32) {
    %c0_i32 = arith.constant 0 : i32
    %c0_i32_0 = arith.constant 0 : i32
    %c0_i32_1 = arith.constant 0 : i32
    return %arg0, %c0_i32, %c0_i32_0 : i32, i32, i32
  }
}

module attributes {stable_mosaic.version = 11 : i64} {
  func.func @encoder_layer_kernel(%arg0: i32, %arg1: memref<2x1x8xf32, #tpu.memory_space<vmem>>, %arg2: memref<2x8x32xf32, #tpu.memory_space<vmem>>, %arg3: memref<32x96xbf16, #tpu.memory_space<vmem>>, %arg4: memref<1x96xf32, #tpu.memory_space<vmem>>, %arg5: memref<32x32xbf16, #tpu.memory_space<vmem>>, %arg6: memref<1x32xf32, #tpu.memory_space<vmem>>, %arg7: memref<1x32xf32, #tpu.memory_space<vmem>>, %arg8: memref<1x32xf32, #tpu.memory_space<vmem>>, %arg9: memref<1x32xf32, #tpu.memory_space<vmem>>, %arg10: memref<1x32xf32, #tpu.memory_space<vmem>>, %arg11: memref<32x64xbf16, #tpu.memory_space<vmem>>, %arg12: memref<1x64xf32, #tpu.memory_space<vmem>>, %arg13: memref<64x32xbf16, #tpu.memory_space<vmem>>, %arg14: memref<1x32xf32, #tpu.memory_space<vmem>>, %arg15: memref<2x8x32xf32, #tpu.memory_space<vmem>>, %arg16: memref<2x8x32xbf16, #tpu.memory_space<vmem>>) attributes {dimension_semantics = [#tpu.dimension_semantics<parallel>], iteration_bounds = array<i64: 1>, scalar_prefetch = 0 : i64, scratch_operands = 1 : i64, tpu.core_type = #tpu.core_type<tc>, window_params = [{transform_indices = @transform_0, window_bounds = array<i64: 2, 1, 8>}, {transform_indices = @transform_1, window_bounds = array<i64: 2, 8, 32>}, {pipeline_mode = #tpu.pipeline_mode<synchronous>, transform_indices = @transform_2, window_bounds = array<i64: 32, 96>}, {pipeline_mode = #tpu.pipeline_mode<synchronous>, transform_indices = @transform_3, window_bounds = array<i64: 1, 96>}, {pipeline_mode = #tpu.pipeline_mode<synchronous>, transform_indices = @transform_4, window_bounds = array<i64: 32, 32>}, {pipeline_mode = #tpu.pipeline_mode<synchronous>, transform_indices = @transform_5, window_bounds = array<i64: 1, 32>}, {pipeline_mode = #tpu.pipeline_mode<synchronous>, transform_indices = @transform_6, window_bounds = array<i64: 1, 32>}, {pipeline_mode = #tpu.pipeline_mode<synchronous>, transform_indices = @transform_7, window_bounds = array<i64: 1, 32>}, {pipeline_mode = #tpu.pipeline_mode<synchronous>, transform_indices = @transform_8, window_bounds = array<i64: 1, 32>}, {pipeline_mode = #tpu.pipeline_mode<synchronous>, transform_indices = @transform_9, window_bounds = array<i64: 1, 32>}, {pipeline_mode = #tpu.pipeline_mode<synchronous>, transform_indices = @transform_10, window_bounds = array<i64: 32, 64>}, {pipeline_mode = #tpu.pipeline_mode<synchronous>, transform_indices = @transform_11, window_bounds = array<i64: 1, 64>}, {pipeline_mode = #tpu.pipeline_mode<synchronous>, transform_indices = @transform_12, window_bounds = array<i64: 64, 32>}, {pipeline_mode = #tpu.pipeline_mode<synchronous>, transform_indices = @transform_13, window_bounds = array<i64: 1, 32>}, {transform_indices = @transform_14, window_bounds = array<i64: 2, 8, 32>}]} {
    %c0 = arith.constant 0 : index
    %c0_0 = arith.constant 0 : index
    %c0_1 = arith.constant 0 : index
    %0 = vector.load %arg2[%c0, %c0_0, %c0_1] : memref<2x8x32xf32, #tpu.memory_space<vmem>>, vector<2x8x32xf32>
    %1 = vector.shape_cast %0 : vector<2x8x32xf32> to vector<16x32xf32>
    %c0_2 = arith.constant 0 : index
    %c0_3 = arith.constant 0 : index
    %c0_4 = arith.constant 0 : index
    %2 = vector.load %arg1[%c0_2, %c0_3, %c0_4] : memref<2x1x8xf32, #tpu.memory_space<vmem>>, vector<2x1x8xf32>
    %cst = arith.constant 5.000000e-01 : f32
    %3 = vector.broadcast %cst : f32 to vector<2x1x8xf32>
    %4 = arith.cmpf ogt, %2, %3 : vector<2x1x8xf32>
    %cst_5 = arith.constant -1.000000e+30 : f32
    %cst_6 = arith.constant 0.000000e+00 : f32
    %5 = vector.broadcast %cst_5 : f32 to vector<2x1x8xf32>
    %6 = vector.broadcast %cst_6 : f32 to vector<2x1x8xf32>
    %7 = arith.select %4, %5, %6 : vector<2x1x8xi1>, vector<2x1x8xf32>
    %cst_7 = arith.constant dense<0.000000e+00> : vector<16xf32>
    %8 = vector.multi_reduction <add>, %1, %cst_7 [1] : vector<16x32xf32> to vector<16xf32>
    %9 = vector.shape_cast %8 : vector<16xf32> to vector<16x1xf32>
    %cst_8 = arith.constant 3.200000e+01 : f32
    %10 = vector.broadcast %cst_8 : f32 to vector<16x1xf32>
    %11 = arith.divf %9, %10 : vector<16x1xf32>
    %12 = vector.broadcast %11 : vector<16x1xf32> to vector<16x32xf32>
    %13 = arith.subf %1, %12 : vector<16x32xf32>
    %14 = arith.mulf %13, %13 : vector<16x32xf32>
    %cst_9 = arith.constant dense<0.000000e+00> : vector<16xf32>
    %15 = vector.multi_reduction <add>, %14, %cst_9 [1] : vector<16x32xf32> to vector<16xf32>
    %16 = vector.shape_cast %15 : vector<16xf32> to vector<16x1xf32>
    %cst_10 = arith.constant 3.200000e+01 : f32
    %17 = vector.broadcast %cst_10 : f32 to vector<16x1xf32>
    %18 = arith.divf %16, %17 : vector<16x1xf32>
    %19 = vector.broadcast %11 : vector<16x1xf32> to vector<16x32xf32>
    %20 = arith.subf %1, %19 : vector<16x32xf32>
    %cst_11 = arith.constant 9.99999997E-7 : f32
    %21 = vector.broadcast %cst_11 : f32 to vector<16x1xf32>
    %22 = arith.addf %18, %21 : vector<16x1xf32>
    %23 = math.rsqrt %22 : vector<16x1xf32>
    %24 = vector.broadcast %23 : vector<16x1xf32> to vector<16x32xf32>
    %25 = arith.mulf %20, %24 : vector<16x32xf32>
    %c0_12 = arith.constant 0 : index
    %c0_13 = arith.constant 0 : index
    %26 = vector.load %arg7[%c0_12, %c0_13] : memref<1x32xf32, #tpu.memory_space<vmem>>, vector<1x32xf32>
    %27 = vector.broadcast %26 : vector<1x32xf32> to vector<16x32xf32>
    %28 = arith.mulf %25, %27 : vector<16x32xf32>
    %c0_14 = arith.constant 0 : index
    %c0_15 = arith.constant 0 : index
    %29 = vector.load %arg8[%c0_14, %c0_15] : memref<1x32xf32, #tpu.memory_space<vmem>>, vector<1x32xf32>
    %30 = vector.broadcast %29 : vector<1x32xf32> to vector<16x32xf32>
    %31 = arith.addf %28, %30 : vector<16x32xf32>
    %32 = arith.truncf %31 : vector<16x32xf32> to vector<16x32xbf16>
    %c0_16 = arith.constant 0 : index
    %c0_17 = arith.constant 0 : index
    %33 = vector.load %arg3[%c0_16, %c0_17] : memref<32x96xbf16, #tpu.memory_space<vmem>>, vector<32x96xbf16>
    %cst_18 = arith.constant dense<0.000000e+00> : vector<16x96xf32>
    %34 = tpu.matmul %32, %33, %cst_18 {dimension_numbers = #tpu.dot_dimension_numbers<[1], [0], [0], [1], [0, 0, 1, 1], [], []>} : vector<16x32xbf16>, vector<32x96xbf16>, vector<16x96xf32> -> vector<16x96xf32>
    %c0_19 = arith.constant 0 : index
    %c0_20 = arith.constant 0 : index
    %35 = vector.load %arg4[%c0_19, %c0_20] : memref<1x96xf32, #tpu.memory_space<vmem>>, vector<1x96xf32>
    %36 = vector.broadcast %35 : vector<1x96xf32> to vector<16x96xf32>
    %37 = arith.addf %34, %36 : vector<16x96xf32>
    %38 = vector.extract_strided_slice %37 {offsets = [0, 0], sizes = [16, 32], strides = [1, 1]} : vector<16x96xf32> to vector<16x32xf32>
    %cst_21 = arith.constant 0.353553385 : f32
    %39 = vector.broadcast %cst_21 : f32 to vector<16x32xf32>
    %40 = arith.mulf %38, %39 : vector<16x32xf32>
    %41 = arith.truncf %40 : vector<16x32xf32> to vector<16x32xbf16>
    %42 = vector.shape_cast %41 : vector<16x32xbf16> to vector<2x8x32xbf16>
    %43 = vector.extract_strided_slice %37 {offsets = [0, 32], sizes = [16, 32], strides = [1, 1]} : vector<16x96xf32> to vector<16x32xf32>
    %44 = arith.truncf %43 : vector<16x32xf32> to vector<16x32xbf16>
    %45 = vector.shape_cast %44 : vector<16x32xbf16> to vector<2x8x32xbf16>
    %46 = vector.extract_strided_slice %37 {offsets = [0, 64], sizes = [16, 32], strides = [1, 1]} : vector<16x96xf32> to vector<16x32xf32>
    %47 = arith.truncf %46 : vector<16x32xf32> to vector<16x32xbf16>
    %48 = vector.shape_cast %47 : vector<16x32xbf16> to vector<2x8x32xbf16>
    %49 = vector.extract_strided_slice %42 {offsets = [0, 0, 0], sizes = [2, 8, 8], strides = [1, 1, 1]} : vector<2x8x32xbf16> to vector<2x8x8xbf16>
    %50 = vector.extract_strided_slice %45 {offsets = [0, 0, 0], sizes = [2, 8, 8], strides = [1, 1, 1]} : vector<2x8x32xbf16> to vector<2x8x8xbf16>
    %51 = vector.extract_strided_slice %48 {offsets = [0, 0, 0], sizes = [2, 8, 8], strides = [1, 1, 1]} : vector<2x8x32xbf16> to vector<2x8x8xbf16>
    "tpu.trace_start"() <{level = 10 : i32, message = "bqd,bkd->bqk"}> : () -> ()
    %cst_22 = arith.constant dense<0.000000e+00> : vector<2x8x8xf32>
    %52 = tpu.matmul %49, %50, %cst_22 {dimension_numbers = #tpu.dot_dimension_numbers<[2], [2], [1], [1], [0, 0, 0, 1, 1, 1], [0], [0]>} : vector<2x8x8xbf16>, vector<2x8x8xbf16>, vector<2x8x8xf32> -> vector<2x8x8xf32>
    "tpu.trace_stop"() : () -> ()
    %53 = vector.broadcast %7 : vector<2x1x8xf32> to vector<2x8x8xf32>
    %54 = arith.addf %52, %53 : vector<2x8x8xf32>
    %cst_23 = arith.constant dense<0xFF800000> : vector<2x8xf32>
    %55 = vector.multi_reduction <maximumf>, %54, %cst_23 [2] : vector<2x8x8xf32> to vector<2x8xf32>
    %56 = vector.shape_cast %55 : vector<2x8xf32> to vector<2x8x1xf32>
    %57 = vector.broadcast %56 : vector<2x8x1xf32> to vector<2x8x8xf32>
    %58 = arith.subf %54, %57 : vector<2x8x8xf32>
    %59 = math.exp %58 : vector<2x8x8xf32>
    %cst_24 = arith.constant dense<0.000000e+00> : vector<2x8xf32>
    %60 = vector.multi_reduction <add>, %59, %cst_24 [2] : vector<2x8x8xf32> to vector<2x8xf32>
    %61 = vector.shape_cast %60 : vector<2x8xf32> to vector<2x8x1xf32>
    %62 = tpu.reciprocal %61 {approx = true} : vector<2x8x1xf32> -> vector<2x8x1xf32>
    %63 = vector.broadcast %62 : vector<2x8x1xf32> to vector<2x8x8xf32>
    %64 = arith.mulf %59, %63 : vector<2x8x8xf32>
    %65 = arith.truncf %64 : vector<2x8x8xf32> to vector<2x8x8xbf16>
    "tpu.trace_start"() <{level = 10 : i32, message = "bqk,bkd->bqd"}> : () -> ()
    %cst_25 = arith.constant dense<0.000000e+00> : vector<2x8x8xf32>
    %66 = tpu.matmul %65, %51, %cst_25 {dimension_numbers = #tpu.dot_dimension_numbers<[2], [1], [1], [2], [0, 0, 0, 1, 1, 2], [0], [0]>} : vector<2x8x8xbf16>, vector<2x8x8xbf16>, vector<2x8x8xf32> -> vector<2x8x8xf32>
    "tpu.trace_stop"() : () -> ()
    %67 = arith.truncf %66 : vector<2x8x8xf32> to vector<2x8x8xbf16>
    %c0_26 = arith.constant 0 : index
    %c0_27 = arith.constant 0 : index
    %c0_28 = arith.constant 0 : index
    %68 = vector.load %arg16[%c0_26, %c0_27, %c0_28] : memref<2x8x32xbf16, #tpu.memory_space<vmem>>, vector<2x8x8xbf16>
    tpu.vector_store %arg16[%c0_26, %c0_27, %c0_28], %67 {strides = array<i32>} : memref<2x8x32xbf16, #tpu.memory_space<vmem>>, vector<2x8x8xbf16>,
    %69 = vector.extract_strided_slice %42 {offsets = [0, 0, 8], sizes = [2, 8, 8], strides = [1, 1, 1]} : vector<2x8x32xbf16> to vector<2x8x8xbf16>
    %70 = vector.extract_strided_slice %45 {offsets = [0, 0, 8], sizes = [2, 8, 8], strides = [1, 1, 1]} : vector<2x8x32xbf16> to vector<2x8x8xbf16>
    %71 = vector.extract_strided_slice %48 {offsets = [0, 0, 8], sizes = [2, 8, 8], strides = [1, 1, 1]} : vector<2x8x32xbf16> to vector<2x8x8xbf16>
    "tpu.trace_start"() <{level = 10 : i32, message = "bqd,bkd->bqk"}> : () -> ()
    %cst_29 = arith.constant dense<0.000000e+00> : vector<2x8x8xf32>
    %72 = tpu.matmul %69, %70, %cst_29 {dimension_numbers = #tpu.dot_dimension_numbers<[2], [2], [1], [1], [0, 0, 0, 1, 1, 1], [0], [0]>} : vector<2x8x8xbf16>, vector<2x8x8xbf16>, vector<2x8x8xf32> -> vector<2x8x8xf32>
    "tpu.trace_stop"() : () -> ()
    %73 = vector.broadcast %7 : vector<2x1x8xf32> to vector<2x8x8xf32>
    %74 = arith.addf %72, %73 : vector<2x8x8xf32>
    %cst_30 = arith.constant dense<0xFF800000> : vector<2x8xf32>
    %75 = vector.multi_reduction <maximumf>, %74, %cst_30 [2] : vector<2x8x8xf32> to vector<2x8xf32>
    %76 = vector.shape_cast %75 : vector<2x8xf32> to vector<2x8x1xf32>
    %77 = vector.broadcast %76 : vector<2x8x1xf32> to vector<2x8x8xf32>
    %78 = arith.subf %74, %77 : vector<2x8x8xf32>
    %79 = math.exp %78 : vector<2x8x8xf32>
    %cst_31 = arith.constant dense<0.000000e+00> : vector<2x8xf32>
    %80 = vector.multi_reduction <add>, %79, %cst_31 [2] : vector<2x8x8xf32> to vector<2x8xf32>
    %81 = vector.shape_cast %80 : vector<2x8xf32> to vector<2x8x1xf32>
    %82 = tpu.reciprocal %81 {approx = true} : vector<2x8x1xf32> -> vector<2x8x1xf32>
    %83 = vector.broadcast %82 : vector<2x8x1xf32> to vector<2x8x8xf32>
    %84 = arith.mulf %79, %83 : vector<2x8x8xf32>
    %85 = arith.truncf %84 : vector<2x8x8xf32> to vector<2x8x8xbf16>
    "tpu.trace_start"() <{level = 10 : i32, message = "bqk,bkd->bqd"}> : () -> ()
    %cst_32 = arith.constant dense<0.000000e+00> : vector<2x8x8xf32>
    %86 = tpu.matmul %85, %71, %cst_32 {dimension_numbers = #tpu.dot_dimension_numbers<[2], [1], [1], [2], [0, 0, 0, 1, 1, 2], [0], [0]>} : vector<2x8x8xbf16>, vector<2x8x8xbf16>, vector<2x8x8xf32> -> vector<2x8x8xf32>
    "tpu.trace_stop"() : () -> ()
    %87 = arith.truncf %86 : vector<2x8x8xf32> to vector<2x8x8xbf16>
    %c0_33 = arith.constant 0 : index
    %c0_34 = arith.constant 0 : index
    %c8 = arith.constant 8 : index
    %88 = vector.load %arg16[%c0_33, %c0_34, %c8] : memref<2x8x32xbf16, #tpu.memory_space<vmem>>, vector<2x8x8xbf16>
    tpu.vector_store %arg16[%c0_33, %c0_34, %c8], %87 {strides = array<i32>} : memref<2x8x32xbf16, #tpu.memory_space<vmem>>, vector<2x8x8xbf16>,
    %89 = vector.extract_strided_slice %42 {offsets = [0, 0, 16], sizes = [2, 8, 8], strides = [1, 1, 1]} : vector<2x8x32xbf16> to vector<2x8x8xbf16>
    %90 = vector.extract_strided_slice %45 {offsets = [0, 0, 16], sizes = [2, 8, 8], strides = [1, 1, 1]} : vector<2x8x32xbf16> to vector<2x8x8xbf16>
    %91 = vector.extract_strided_slice %48 {offsets = [0, 0, 16], sizes = [2, 8, 8], strides = [1, 1, 1]} : vector<2x8x32xbf16> to vector<2x8x8xbf16>
    "tpu.trace_start"() <{level = 10 : i32, message = "bqd,bkd->bqk"}> : () -> ()
    %cst_35 = arith.constant dense<0.000000e+00> : vector<2x8x8xf32>
    %92 = tpu.matmul %89, %90, %cst_35 {dimension_numbers = #tpu.dot_dimension_numbers<[2], [2], [1], [1], [0, 0, 0, 1, 1, 1], [0], [0]>} : vector<2x8x8xbf16>, vector<2x8x8xbf16>, vector<2x8x8xf32> -> vector<2x8x8xf32>
    "tpu.trace_stop"() : () -> ()
    %93 = vector.broadcast %7 : vector<2x1x8xf32> to vector<2x8x8xf32>
    %94 = arith.addf %92, %93 : vector<2x8x8xf32>
    %cst_36 = arith.constant dense<0xFF800000> : vector<2x8xf32>
    %95 = vector.multi_reduction <maximumf>, %94, %cst_36 [2] : vector<2x8x8xf32> to vector<2x8xf32>
    %96 = vector.shape_cast %95 : vector<2x8xf32> to vector<2x8x1xf32>
    %97 = vector.broadcast %96 : vector<2x8x1xf32> to vector<2x8x8xf32>
    %98 = arith.subf %94, %97 : vector<2x8x8xf32>
    %99 = math.exp %98 : vector<2x8x8xf32>
    %cst_37 = arith.constant dense<0.000000e+00> : vector<2x8xf32>
    %100 = vector.multi_reduction <add>, %99, %cst_37 [2] : vector<2x8x8xf32> to vector<2x8xf32>
    %101 = vector.shape_cast %100 : vector<2x8xf32> to vector<2x8x1xf32>
    %102 = tpu.reciprocal %101 {approx = true} : vector<2x8x1xf32> -> vector<2x8x1xf32>
    %103 = vector.broadcast %102 : vector<2x8x1xf32> to vector<2x8x8xf32>
    %104 = arith.mulf %99, %103 : vector<2x8x8xf32>
    %105 = arith.truncf %104 : vector<2x8x8xf32> to vector<2x8x8xbf16>
    "tpu.trace_start"() <{level = 10 : i32, message = "bqk,bkd->bqd"}> : () -> ()
    %cst_38 = arith.constant dense<0.000000e+00> : vector<2x8x8xf32>
    %106 = tpu.matmul %105, %91, %cst_38 {dimension_numbers = #tpu.dot_dimension_numbers<[2], [1], [1], [2], [0, 0, 0, 1, 1, 2], [0], [0]>} : vector<2x8x8xbf16>, vector<2x8x8xbf16>, vector<2x8x8xf32> -> vector<2x8x8xf32>
    "tpu.trace_stop"() : () -> ()
    %107 = arith.truncf %106 : vector<2x8x8xf32> to vector<2x8x8xbf16>
    %c0_39 = arith.constant 0 : index
    %c0_40 = arith.constant 0 : index
    %c16 = arith.constant 16 : index
    %108 = vector.load %arg16[%c0_39, %c0_40, %c16] : memref<2x8x32xbf16, #tpu.memory_space<vmem>>, vector<2x8x8xbf16>
    tpu.vector_store %arg16[%c0_39, %c0_40, %c16], %107 {strides = array<i32>} : memref<2x8x32xbf16, #tpu.memory_space<vmem>>, vector<2x8x8xbf16>,
    %109 = vector.extract_strided_slice %42 {offsets = [0, 0, 24], sizes = [2, 8, 8], strides = [1, 1, 1]} : vector<2x8x32xbf16> to vector<2x8x8xbf16>
    %110 = vector.extract_strided_slice %45 {offsets = [0, 0, 24], sizes = [2, 8, 8], strides = [1, 1, 1]} : vector<2x8x32xbf16> to vector<2x8x8xbf16>
    %111 = vector.extract_strided_slice %48 {offsets = [0, 0, 24], sizes = [2, 8, 8], strides = [1, 1, 1]} : vector<2x8x32xbf16> to vector<2x8x8xbf16>
    "tpu.trace_start"() <{level = 10 : i32, message = "bqd,bkd->bqk"}> : () -> ()
    %cst_41 = arith.constant dense<0.000000e+00> : vector<2x8x8xf32>
    %112 = tpu.matmul %109, %110, %cst_41 {dimension_numbers = #tpu.dot_dimension_numbers<[2], [2], [1], [1], [0, 0, 0, 1, 1, 1], [0], [0]>} : vector<2x8x8xbf16>, vector<2x8x8xbf16>, vector<2x8x8xf32> -> vector<2x8x8xf32>
    "tpu.trace_stop"() : () -> ()
    %113 = vector.broadcast %7 : vector<2x1x8xf32> to vector<2x8x8xf32>
    %114 = arith.addf %112, %113 : vector<2x8x8xf32>
    %cst_42 = arith.constant dense<0xFF800000> : vector<2x8xf32>
    %115 = vector.multi_reduction <maximumf>, %114, %cst_42 [2] : vector<2x8x8xf32> to vector<2x8xf32>
    %116 = vector.shape_cast %115 : vector<2x8xf32> to vector<2x8x1xf32>
    %117 = vector.broadcast %116 : vector<2x8x1xf32> to vector<2x8x8xf32>
    %118 = arith.subf %114, %117 : vector<2x8x8xf32>
    %119 = math.exp %118 : vector<2x8x8xf32>
    %cst_43 = arith.constant dense<0.000000e+00> : vector<2x8xf32>
    %120 = vector.multi_reduction <add>, %119, %cst_43 [2] : vector<2x8x8xf32> to vector<2x8xf32>
    %121 = vector.shape_cast %120 : vector<2x8xf32> to vector<2x8x1xf32>
    %122 = tpu.reciprocal %121 {approx = true} : vector<2x8x1xf32> -> vector<2x8x1xf32>
    %123 = vector.broadcast %122 : vector<2x8x1xf32> to vector<2x8x8xf32>
    %124 = arith.mulf %119, %123 : vector<2x8x8xf32>
    %125 = arith.truncf %124 : vector<2x8x8xf32> to vector<2x8x8xbf16>
    "tpu.trace_start"() <{level = 10 : i32, message = "bqk,bkd->bqd"}> : () -> ()
    %cst_44 = arith.constant dense<0.000000e+00> : vector<2x8x8xf32>
    %126 = tpu.matmul %125, %111, %cst_44 {dimension_numbers = #tpu.dot_dimension_numbers<[2], [1], [1], [2], [0, 0, 0, 1, 1, 2], [0], [0]>} : vector<2x8x8xbf16>, vector<2x8x8xbf16>, vector<2x8x8xf32> -> vector<2x8x8xf32>
    "tpu.trace_stop"() : () -> ()
    %127 = arith.truncf %126 : vector<2x8x8xf32> to vector<2x8x8xbf16>
    %c0_45 = arith.constant 0 : index
    %c0_46 = arith.constant 0 : index
    %c24 = arith.constant 24 : index
    %128 = vector.load %arg16[%c0_45, %c0_46, %c24] : memref<2x8x32xbf16, #tpu.memory_space<vmem>>, vector<2x8x8xbf16>
    tpu.vector_store %arg16[%c0_45, %c0_46, %c24], %127 {strides = array<i32>} : memref<2x8x32xbf16, #tpu.memory_space<vmem>>, vector<2x8x8xbf16>,
    %c0_47 = arith.constant 0 : index
    %c0_48 = arith.constant 0 : index
    %c0_49 = arith.constant 0 : index
    %129 = vector.load %arg16[%c0_47, %c0_48, %c0_49] : memref<2x8x32xbf16, #tpu.memory_space<vmem>>, vector<2x8x32xbf16>
    %130 = vector.shape_cast %129 : vector<2x8x32xbf16> to vector<16x32xbf16>
    %c0_50 = arith.constant 0 : index
    %c0_51 = arith.constant 0 : index
    %131 = vector.load %arg5[%c0_50, %c0_51] : memref<32x32xbf16, #tpu.memory_space<vmem>>, vector<32x32xbf16>
    %cst_52 = arith.constant dense<0.000000e+00> : vector<16x32xf32>
    %132 = tpu.matmul %130, %131, %cst_52 {dimension_numbers = #tpu.dot_dimension_numbers<[1], [0], [0], [1], [0, 0, 1, 1], [], []>} : vector<16x32xbf16>, vector<32x32xbf16>, vector<16x32xf32> -> vector<16x32xf32>
    %c0_53 = arith.constant 0 : index
    %c0_54 = arith.constant 0 : index
    %133 = vector.load %arg6[%c0_53, %c0_54] : memref<1x32xf32, #tpu.memory_space<vmem>>, vector<1x32xf32>
    %134 = vector.broadcast %133 : vector<1x32xf32> to vector<16x32xf32>
    %135 = arith.addf %132, %134 : vector<16x32xf32>
    %136 = arith.addf %1, %135 : vector<16x32xf32>
    %cst_55 = arith.constant dense<0.000000e+00> : vector<16xf32>
    %137 = vector.multi_reduction <add>, %136, %cst_55 [1] : vector<16x32xf32> to vector<16xf32>
    %138 = vector.shape_cast %137 : vector<16xf32> to vector<16x1xf32>
    %cst_56 = arith.constant 3.200000e+01 : f32
    %139 = vector.broadcast %cst_56 : f32 to vector<16x1xf32>
    %140 = arith.divf %138, %139 : vector<16x1xf32>
    %141 = vector.broadcast %140 : vector<16x1xf32> to vector<16x32xf32>
    %142 = arith.subf %136, %141 : vector<16x32xf32>
    %143 = arith.mulf %142, %142 : vector<16x32xf32>
    %cst_57 = arith.constant dense<0.000000e+00> : vector<16xf32>
    %144 = vector.multi_reduction <add>, %143, %cst_57 [1] : vector<16x32xf32> to vector<16xf32>
    %145 = vector.shape_cast %144 : vector<16xf32> to vector<16x1xf32>
    %cst_58 = arith.constant 3.200000e+01 : f32
    %146 = vector.broadcast %cst_58 : f32 to vector<16x1xf32>
    %147 = arith.divf %145, %146 : vector<16x1xf32>
    %148 = vector.broadcast %140 : vector<16x1xf32> to vector<16x32xf32>
    %149 = arith.subf %136, %148 : vector<16x32xf32>
    %cst_59 = arith.constant 9.99999997E-7 : f32
    %150 = vector.broadcast %cst_59 : f32 to vector<16x1xf32>
    %151 = arith.addf %147, %150 : vector<16x1xf32>
    %152 = math.rsqrt %151 : vector<16x1xf32>
    %153 = vector.broadcast %152 : vector<16x1xf32> to vector<16x32xf32>
    %154 = arith.mulf %149, %153 : vector<16x32xf32>
    %c0_60 = arith.constant 0 : index
    %c0_61 = arith.constant 0 : index
    %155 = vector.load %arg9[%c0_60, %c0_61] : memref<1x32xf32, #tpu.memory_space<vmem>>, vector<1x32xf32>
    %156 = vector.broadcast %155 : vector<1x32xf32> to vector<16x32xf32>
    %157 = arith.mulf %154, %156 : vector<16x32xf32>
    %c0_62 = arith.constant 0 : index
    %c0_63 = arith.constant 0 : index
    %158 = vector.load %arg10[%c0_62, %c0_63] : memref<1x32xf32, #tpu.memory_space<vmem>>, vector<1x32xf32>
    %159 = vector.broadcast %158 : vector<1x32xf32> to vector<16x32xf32>
    %160 = arith.addf %157, %159 : vector<16x32xf32>
    %161 = arith.truncf %160 : vector<16x32xf32> to vector<16x32xbf16>
    %c0_64 = arith.constant 0 : index
    %c0_65 = arith.constant 0 : index
    %162 = vector.load %arg11[%c0_64, %c0_65] : memref<32x64xbf16, #tpu.memory_space<vmem>>, vector<32x64xbf16>
    %cst_66 = arith.constant dense<0.000000e+00> : vector<16x64xf32>
    %163 = tpu.matmul %161, %162, %cst_66 {dimension_numbers = #tpu.dot_dimension_numbers<[1], [0], [0], [1], [0, 0, 1, 1], [], []>} : vector<16x32xbf16>, vector<32x64xbf16>, vector<16x64xf32> -> vector<16x64xf32>
    %c0_67 = arith.constant 0 : index
    %c0_68 = arith.constant 0 : index
    %164 = vector.load %arg12[%c0_67, %c0_68] : memref<1x64xf32, #tpu.memory_space<vmem>>, vector<1x64xf32>
    %165 = vector.broadcast %164 : vector<1x64xf32> to vector<16x64xf32>
    %166 = arith.addf %163, %165 : vector<16x64xf32>
    %cst_69 = arith.constant 0.000000e+00 : f32
    %167 = vector.broadcast %cst_69 : f32 to vector<16x64xf32>
    %168 = arith.maximumf %166, %167 : vector<16x64xf32>
    %169 = arith.truncf %168 : vector<16x64xf32> to vector<16x64xbf16>
    %c0_70 = arith.constant 0 : index
    %c0_71 = arith.constant 0 : index
    %170 = vector.load %arg13[%c0_70, %c0_71] : memref<64x32xbf16, #tpu.memory_space<vmem>>, vector<64x32xbf16>
    %cst_72 = arith.constant dense<0.000000e+00> : vector<16x32xf32>
    %171 = tpu.matmul %169, %170, %cst_72 {dimension_numbers = #tpu.dot_dimension_numbers<[1], [0], [0], [1], [0, 0, 1, 1], [], []>} : vector<16x64xbf16>, vector<64x32xbf16>, vector<16x32xf32> -> vector<16x32xf32>
    %c0_73 = arith.constant 0 : index
    %c0_74 = arith.constant 0 : index
    %172 = vector.load %arg14[%c0_73, %c0_74] : memref<1x32xf32, #tpu.memory_space<vmem>>, vector<1x32xf32>
    %173 = vector.broadcast %172 : vector<1x32xf32> to vector<16x32xf32>
    %174 = arith.addf %171, %173 : vector<16x32xf32>
    %175 = arith.addf %136, %174 : vector<16x32xf32>
    %176 = vector.shape_cast %175 : vector<16x32xf32> to vector<2x8x32xf32>
    %c0_75 = arith.constant 0 : index
    %c0_76 = arith.constant 0 : index
    %c0_77 = arith.constant 0 : index
    %177 = vector.load %arg15[%c0_75, %c0_76, %c0_77] : memref<2x8x32xf32, #tpu.memory_space<vmem>>, vector<2x8x32xf32>
    tpu.vector_store %arg15[%c0_75, %c0_76, %c0_77], %176 {strides = array<i32>} : memref<2x8x32xf32, #tpu.memory_space<vmem>>, vector<2x8x32xf32>,
    return
  }
  func.func @transform_0(%arg0: i32) -> (i32, i32, i32) {
    %c0_i32 = arith.constant 0 : i32
    %c0_i32_0 = arith.constant 0 : i32
    %c0_i32_1 = arith.constant 0 : i32
    return %arg0, %c0_i32, %c0_i32_0 : i32, i32, i32
  }
  func.func @transform_1(%arg0: i32) -> (i32, i32, i32) {
    %c0_i32 = arith.constant 0 : i32
    %c0_i32_0 = arith.constant 0 : i32
    %c0_i32_1 = arith.constant 0 : i32
    return %arg0, %c0_i32, %c0_i32_0 : i32, i32, i32
  }
  func.func @transform_2(%arg0: i32) -> (i32, i32) {
    %c0_i32 = arith.constant 0 : i32
    %c0_i32_0 = arith.constant 0 : i32
    %c0_i32_1 = arith.constant 0 : i32
    return %c0_i32, %c0_i32_0 : i32, i32
  }
  func.func @transform_3(%arg0: i32) -> (i32, i32) {
    %c0_i32 = arith.constant 0 : i32
    %c0_i32_0 = arith.constant 0 : i32
    %c0_i32_1 = arith.constant 0 : i32
    return %c0_i32, %c0_i32_0 : i32, i32
  }
  func.func @transform_4(%arg0: i32) -> (i32, i32) {
    %c0_i32 = arith.constant 0 : i32
    %c0_i32_0 = arith.constant 0 : i32
    %c0_i32_1 = arith.constant 0 : i32
    return %c0_i32, %c0_i32_0 : i32, i32
  }
  func.func @transform_5(%arg0: i32) -> (i32, i32) {
    %c0_i32 = arith.constant 0 : i32
    %c0_i32_0 = arith.constant 0 : i32
    %c0_i32_1 = arith.constant 0 : i32
    return %c0_i32, %c0_i32_0 : i32, i32
  }
  func.func @transform_6(%arg0: i32) -> (i32, i32) {
    %c0_i32 = arith.constant 0 : i32
    %c0_i32_0 = arith.constant 0 : i32
    %c0_i32_1 = arith.constant 0 : i32
    return %c0_i32, %c0_i32_0 : i32, i32
  }
  func.func @transform_7(%arg0: i32) -> (i32, i32) {
    %c0_i32 = arith.constant 0 : i32
    %c0_i32_0 = arith.constant 0 : i32
    %c0_i32_1 = arith.constant 0 : i32
    return %c0_i32, %c0_i32_0 : i32, i32
  }
  func.func @transform_8(%arg0: i32) -> (i32, i32) {
    %c0_i32 = arith.constant 0 : i32
    %c0_i32_0 = arith.constant 0 : i32
    %c0_i32_1 = arith.constant 0 : i32
    return %c0_i32, %c0_i32_0 : i32, i32
  }
  func.func @transform_9(%arg0: i32) -> (i32, i32) {
    %c0_i32 = arith.constant 0 : i32
    %c0_i32_0 = arith.constant 0 : i32
    %c0_i32_1 = arith.constant 0 : i32
    return %c0_i32, %c0_i32_0 : i32, i32
  }
  func.func @transform_10(%arg0: i32) -> (i32, i32) {
    %c0_i32 = arith.constant 0 : i32
    %c0_i32_0 = arith.constant 0 : i32
    %c0_i32_1 = arith.constant 0 : i32
    return %c0_i32, %c0_i32_0 : i32, i32
  }
  func.func @transform_11(%arg0: i32) -> (i32, i32) {
    %c0_i32 = arith.constant 0 : i32
    %c0_i32_0 = arith.constant 0 : i32
    %c0_i32_1 = arith.constant 0 : i32
    return %c0_i32, %c0_i32_0 : i32, i32
  }
  func.func @transform_12(%arg0: i32) -> (i32, i32) {
    %c0_i32 = arith.constant 0 : i32
    %c0_i32_0 = arith.constant 0 : i32
    %c0_i32_1 = arith.constant 0 : i32
    return %c0_i32, %c0_i32_0 : i32, i32
  }
  func.func @transform_13(%arg0: i32) -> (i32, i32) {
    %c0_i32 = arith.constant 0 : i32
    %c0_i32_0 = arith.constant 0 : i32
    %c0_i32_1 = arith.constant 0 : i32
    return %c0_i32, %c0_i32_0 : i32, i32
  }
  func.func @transform_14(%arg0: i32) -> (i32, i32, i32) {
    %c0_i32 = arith.constant 0 : i32
    %c0_i32_0 = arith.constant 0 : i32
    %c0_i32_1 = arith.constant 0 : i32
    return %arg0, %c0_i32, %c0_i32_0 : i32, i32, i32
  }
}

</mosaic_0001>

<llo_original>
// kernel: tpu_custom_call.1
$region0: #{tpu_custom_call.1}
  #allocation0 [shape = 'u32[]', space=smem, size = 0x4, offset = 0x4, fixed_abs, tag = 'smem constant byte address 0x4 - core index']
  #allocation1 [shape = 'u32[144,128]{1,0:T(1,128)}', space=vmem, size = 0x12000, scoped, tag = 'internal scratch']
  #allocation2 [shape = 'bf16[2,8,32]{2,1,0:T(8,128)(2,1)}', space=vmem, size = 0x1000, scoped, tag = 'scratch operand']
  %s0 = inlined_call_operand.hbm [shape: f32[2,1,8], index: 0, kind: input, shape index: {}]
  %s1 = inlined_call_operand.vmem [shape: f32[2,8,32], index: 1, kind: input, shape index: {}]
  %s2 = inlined_call_operand.vmem [shape: bf16[32,96], index: 2, kind: input, shape index: {}]
  %s3 = inlined_call_operand.vmem [shape: f32[1,96], index: 3, kind: input, shape index: {}]
  %s4 = inlined_call_operand.vmem [shape: bf16[32,32], index: 4, kind: input, shape index: {}]
  %s5 = inlined_call_operand.vmem [shape: f32[1,32], index: 5, kind: input, shape index: {}]
  %s6 = inlined_call_operand.hbm [shape: f32[1,32], index: 6, kind: input, shape index: {}]
  %s7 = inlined_call_operand.hbm [shape: f32[1,32], index: 7, kind: input, shape index: {}]
  %s8 = inlined_call_operand.hbm [shape: f32[1,32], index: 8, kind: input, shape index: {}]
  %s9 = inlined_call_operand.hbm [shape: f32[1,32], index: 9, kind: input, shape index: {}]
  %s10 = inlined_call_operand.vmem [shape: bf16[32,64], index: 10, kind: input, shape index: {}]
  %s11 = inlined_call_operand.vmem [shape: f32[1,64], index: 11, kind: input, shape index: {}]
  %s12 = inlined_call_operand.vmem [shape: bf16[64,32], index: 12, kind: input, shape index: {}]
  %s13 = inlined_call_operand.vmem [shape: f32[1,32], index: 13, kind: input, shape index: {}]
  %s14 = inlined_call_operand.hbm [shape: f32[2,8,32], index: 14, kind: output, shape index: {}]
  %s15 = sld [smem:[#allocation0]]
  $region86: #{tpu_custom_call.1} parent=0
    _
  %s17 = ssub.s32 1, %s15
  %s18 = scalar_select 0, %s17, %s15
  $region1: #{tpu_custom_call.1} parent=0
    #allocation3 [shape = 'u8[1024]{0}', space=vmem, size = 0x400, scoped, tag = 'input window, operand 0, single buffered']
    #allocation4 [shape = 's32[1]{0}', space=sflag, size = 0x4, scoped, tag = 'scoped memory for tpu_custom_call.1']
    #allocation5 [shape = 's32[1]{0}', space=sflag, size = 0x4, scoped, tag = 'scoped memory for tpu_custom_call.1']
    #allocation6 [shape = 'u8[512]{0}', space=vmem, size = 0x400, scoped, tag = 'input window, operand 6, single buffered']
    #allocation7 [shape = 's32[1]{0}', space=sflag, size = 0x4, scoped, tag = 'scoped memory for tpu_custom_call.1']
    #allocation8 [shape = 'u8[512]{0}', space=vmem, size = 0x400, scoped, tag = 'input window, operand 7, single buffered']
    #allocation9 [shape = 'u8[512]{0}', space=vmem, size = 0x400, scoped, tag = 'input window, operand 8, single buffered']
    #allocation10 [shape = 's32[1]{0}', space=sflag, size = 0x4, scoped, tag = 'scoped memory for tpu_custom_call.1']
    #allocation11 [shape = 'u8[512]{0}', space=vmem, size = 0x400, scoped, tag = 'input window, operand 9, single buffered']
    #allocation12 [shape = 'u8[8192]{0}', space=vmem, size = 0x2000, scoped, tag = 'output window, operand 0, single buffered']
    %19 = vsyncpa [#allocation4], 0
    %20 = vsyncpa [#allocation7], 0
    %21 = vsyncpa [#allocation10], 0
    %22 = vsyncpa [#allocation5], 0
    // Predicated region
    $region2: #{tpu_custom_call.1} parent=1 // pred_check
      _
    $region3: #{tpu_custom_call.1} parent=1 // pred_check_branch
      %24 = sbr.rel (0) target = $region5
    $region4: #{tpu_custom_call.1} parent=1 // pred_region
      %s26 = ssub.s32 32, 32
      %27 = vsyncadd [#allocation4], %s26
      %s28 = sshll.u32 [#allocation3], 4
      %s29 = int_to_ptr.vmem [resolvable:$true] %s28
      %34 = dma.hbm_to_vmem [thread:$0]  %s0, 32, %s29, [#allocation4], 16, 16, 1
    $region5: #{tpu_custom_call.1} parent=1 // pred_fallthru
      _
    // Predicated region
    $region6: #{tpu_custom_call.1} parent=1 // pred_check
      _
    $region7: #{tpu_custom_call.1} parent=1 // pred_check_branch
      %36 = sbr.rel (0) target = $region9
    $region8: #{tpu_custom_call.1} parent=1 // pred_region
      _
    $region9: #{tpu_custom_call.1} parent=1 // pred_fallthru
      _
    // Predicated region
    $region10: #{tpu_custom_call.1} parent=1 // pred_check
      _
    $region11: #{tpu_custom_call.1} parent=1 // pred_check_branch
      %38 = sbr.rel (0) target = $region13
    $region12: #{tpu_custom_call.1} parent=1 // pred_region
      _
    $region13: #{tpu_custom_call.1} parent=1 // pred_fallthru
      _
    // Predicated region
    $region14: #{tpu_custom_call.1} parent=1 // pred_check
      _
    $region15: #{tpu_custom_call.1} parent=1 // pred_check_branch
      %40 = sbr.rel (0) target = $region17
    $region16: #{tpu_custom_call.1} parent=1 // pred_region
      _
    $region17: #{tpu_custom_call.1} parent=1 // pred_fallthru
      _
    // Predicated region
    $region18: #{tpu_custom_call.1} parent=1 // pred_check
      _
    $region19: #{tpu_custom_call.1} parent=1 // pred_check_branch
      %42 = sbr.rel (0) target = $region21
    $region20: #{tpu_custom_call.1} parent=1 // pred_region
      _
    $region21: #{tpu_custom_call.1} parent=1 // pred_fallthru
      _
    // Predicated region
    $region22: #{tpu_custom_call.1} parent=1 // pred_check
      _
    $region23: #{tpu_custom_call.1} parent=1 // pred_check_branch
      %44 = sbr.rel (0) target = $region25
    $region24: #{tpu_custom_call.1} parent=1 // pred_region
      _
    $region25: #{tpu_custom_call.1} parent=1 // pred_fallthru
      _
    // Predicated region
    $region26: #{tpu_custom_call.1} parent=1 // pred_check
      _
    $region27: #{tpu_custom_call.1} parent=1 // pred_check_branch
      %46 = sbr.rel (0) target = $region29
    $region28: #{tpu_custom_call.1} parent=1 // pred_region
      %s48 = ssub.s32 16, 16
      %49 = vsyncadd [#allocation7], %s48
      %s51 = sshll.u32 [#allocation6], 4
      %s52 = int_to_ptr.vmem [resolvable:$true] %s51
      %54 = dma.hbm_to_vmem [thread:$0]  %s6, 16, %s52, [#allocation7]
    $region29: #{tpu_custom_call.1} parent=1 // pred_fallthru
      _
    // Predicated region
    $region30: #{tpu_custom_call.1} parent=1 // pred_check
      _
    $region31: #{tpu_custom_call.1} parent=1 // pred_check_branch
      %56 = sbr.rel (0) target = $region33
    $region32: #{tpu_custom_call.1} parent=1 // pred_region
      %s58 = ssub.s32 16, 16
      %59 = vsyncadd [#allocation7], %s58
      %s61 = sshll.u32 [#allocation8], 4
      %s62 = int_to_ptr.vmem [resolvable:$true] %s61
      %64 = dma.hbm_to_vmem [thread:$0]  %s7, 16, %s62, [#allocation7]
    $region33: #{tpu_custom_call.1} parent=1 // pred_fallthru
      _
    // Predicated region
    $region34: #{tpu_custom_call.1} parent=1 // pred_check
      _
    $region35: #{tpu_custom_call.1} parent=1 // pred_check_branch
      %66 = sbr.rel (0) target = $region37
    $region36: #{tpu_custom_call.1} parent=1 // pred_region
      %s68 = ssub.s32 16, 16
      %69 = vsyncadd [#allocation10], %s68
      %s71 = sshll.u32 [#allocation9], 4
      %s72 = int_to_ptr.vmem [resolvable:$true] %s71
      %74 = dma.hbm_to_vmem [thread:$0]  %s8, 16, %s72, [#allocation10]
    $region37: #{tpu_custom_call.1} parent=1 // pred_fallthru
      _
    // Predicated region
    $region38: #{tpu_custom_call.1} parent=1 // pred_check
      _
    $region39: #{tpu_custom_call.1} parent=1 // pred_check_branch
      %76 = sbr.rel (0) target = $region41
    $region40: #{tpu_custom_call.1} parent=1 // pred_region
      %s78 = ssub.s32 16, 16
      %79 = vsyncadd [#allocation10], %s78
      %s81 = sshll.u32 [#allocation11], 4
      %s82 = int_to_ptr.vmem [resolvable:$true] %s81
      %84 = dma.hbm_to_vmem [thread:$0]  %s9, 16, %s82, [#allocation10]
    $region41: #{tpu_custom_call.1} parent=1 // pred_fallthru
      _
    // Predicated region
    $region42: #{tpu_custom_call.1} parent=1 // pred_check
      _
    $region43: #{tpu_custom_call.1} parent=1 // pred_check_branch
      %86 = sbr.rel (0) target = $region45
    $region44: #{tpu_custom_call.1} parent=1 // pred_region
      _
    $region45: #{tpu_custom_call.1} parent=1 // pred_fallthru
      _
    // Predicated region
    $region46: #{tpu_custom_call.1} parent=1 // pred_check
      _
    $region47: #{tpu_custom_call.1} parent=1 // pred_check_branch
      %88 = sbr.rel (0) target = $region49
    $region48: #{tpu_custom_call.1} parent=1 // pred_region
      _
    $region49: #{tpu_custom_call.1} parent=1 // pred_fallthru
      _
    // Predicated region
    $region50: #{tpu_custom_call.1} parent=1 // pred_check
      _
    $region51: #{tpu_custom_call.1} parent=1 // pred_check_branch
      %90 = sbr.rel (0) target = $region53
    $region52: #{tpu_custom_call.1} parent=1 // pred_region
      _
    $region53: #{tpu_custom_call.1} parent=1 // pred_fallthru
      _
    // Predicated region
    $region54: #{tpu_custom_call.1} parent=1 // pred_check
      _
    $region55: #{tpu_custom_call.1} parent=1 // pred_check_branch
      %92 = sbr.rel (0) target = $region57
    $region56: #{tpu_custom_call.1} parent=1 // pred_region
      _
    $region57: #{tpu_custom_call.1} parent=1 // pred_fallthru
      _
    // Predicated region
    $region58: #{tpu_custom_call.1} parent=1 // pred_check
      _
    $region59: #{tpu_custom_call.1} parent=1 // pred_check_branch
      %94 = sbr.rel (0) target = $region61
    $region60: #{tpu_custom_call.1} parent=1 // pred_region
      %95 = dma.done [#allocation4], 32
    $region61: #{tpu_custom_call.1} parent=1 // pred_fallthru
      _
    // Predicated region
    $region62: #{tpu_custom_call.1} parent=1 // pred_check
      _
    $region63: #{tpu_custom_call.1} parent=1 // pred_check_branch
      %97 = sbr.rel (0) target = $region65
    $region64: #{tpu_custom_call.1} parent=1 // pred_region
      %98 = dma.done [#allocation7], 16
    $region65: #{tpu_custom_call.1} parent=1 // pred_fallthru
      _
    // Predicated region
    $region66: #{tpu_custom_call.1} parent=1 // pred_check
      _
    $region67: #{tpu_custom_call.1} parent=1 // pred_check_branch
      %100 = sbr.rel (0) target = $region69
    $region68: #{tpu_custom_call.1} parent=1 // pred_region
      %101 = dma.done [#allocation7], 16
    $region69: #{tpu_custom_call.1} parent=1 // pred_fallthru
      _
    // Predicated region
    $region70: #{tpu_custom_call.1} parent=1 // pred_check
      _
    $region71: #{tpu_custom_call.1} parent=1 // pred_check_branch
      %103 = sbr.rel (0) target = $region73
    $region72: #{tpu_custom_call.1} parent=1 // pred_region
      %104 = dma.done [#allocation10], 16
    $region73: #{tpu_custom_call.1} parent=1 // pred_fallthru
      _
    // Predicated region
    $region74: #{tpu_custom_call.1} parent=1 // pred_check
      _
    $region75: #{tpu_custom_call.1} parent=1 // pred_check_branch
      %106 = sbr.rel (0) target = $region77
    $region76: #{tpu_custom_call.1} parent=1 // pred_region
      %107 = dma.done [#allocation10], 16
    $region77: #{tpu_custom_call.1} parent=1 // pred_fallthru
      _
    %v109 = vld [vmem:[%s1] sm:$0xff]
    %v110 = vld [vmem:[%s1 + $0x8] sm:$0xff]
    %v111 = vld [vmem:[#allocation3] sm:$0x1]
    %v112 = vld [vmem:[#allocation3 + $0x1] sm:$0x1]
    %vm113 = vcmp.gt.f32.partialorder %v111, 0.5
    %vm114 = vcmp.gt.f32.partialorder %v112, 0.5
    %v115 = vsel %vm113, -1e+30, 0.0
    %v116 = vsel %vm114, -1e+30, 0.0
    %vm117 = vcmask 261120
    %v118 = vsel %vm117, %v109, 0.0
    %119 = vadd.xlane.f32.xlu0 %v118
    %v120 = vpop.xlane.xlu0 %119
    %v121 = vsel %vm117, %v110, 0.0
    %122 = vadd.xlane.f32.xlu0 %v121
    %v123 = vpop.xlane.xlu0 %122
    %v124 = vrcp.pop 32.0
    %v125 = vmul.f32 %v120, %v124
    %v126 = vmul.f32 %v123, %v124
    %v127 = vsub.f32 %v109, %v125
    %v128 = vsub.f32 %v110, %v126
    %v129 = vmul.f32 %v127, %v127
    %v130 = vmul.f32 %v128, %v128
    %v131 = vsel %vm117, %v129, 0.0
    %132 = vadd.xlane.f32.xlu0 %v131
    %v133 = vpop.xlane.xlu0 %132
    %v134 = vsel %vm117, %v130, 0.0
    %135 = vadd.xlane.f32.xlu0 %v134
    %v136 = vpop.xlane.xlu0 %135
    %v137 = vmul.f32 %v133, %v124
    %v138 = vmul.f32 %v136, %v124
    %v139 = vadd.f32 %v137, 1e-06
    %v140 = vadd.f32 %v138, 1e-06
    %v141 = vrsqrt.pop %v139
    %v142 = vrsqrt.pop %v140
    %v143 = vmul.f32 %v127, %v141
    %v144 = vmul.f32 %v128, %v142
    %v145 = vld [vmem:[#allocation6] sm:$0x1]
    %v147 = vlaneseq
    %v148 = vshrl.u32 %v147, 7
    %v149 = vsub.s32 0, %v148
    %v150 = vrot.slane %v145, %v149
    %v152 = vmul.f32 %v143, %v150
    %v153 = vmul.f32 %v144, %v150
    %v154 = vld [vmem:[#allocation8] sm:$0x1]
    %v156 = vlaneseq
    %v157 = vshrl.u32 %v156, 7
    %v158 = vsub.s32 0, %v157
    %v159 = vrot.slane %v154, %v158
    %v161 = vadd.f32 %v152, %v159
    %v162 = vadd.f32 %v153, %v159
    %v163 = vpack.c.bf16 %v162, %v161
    %v164 = vld [vmem:[%s2] sm:$0xf]
    %v165 = vld [vmem:[%s2 + $0x4] sm:$0xf]
    %v166 = vld [vmem:[%s2 + $0x8] sm:$0xf]
    %v167 = vld [vmem:[%s2 + $0xc] sm:$0xf]
    %v168 = vld [vmem:[%s3] sm:$0x1]
    %v170 = vlaneseq
    %v171 = vshrl.u32 %v170, 7
    %v172 = vsub.s32 0, %v171
    %v173 = vrot.slane %v168, %v172
    %v179 = vunpack.c.l.b16 %v164
    %v180 = vunpack.c.l.b16 %v165
    %v181 = vunpack.c.l.b16 %v166
    %v182 = vunpack.c.l.b16 %v167
    %v183 = vpack.c.b16 %v180, %v179
    %v184 = vpack.c.b16 %v182, %v181
    %v188 = vsel %vm117, %v163, 0
    %190 = vmatprep.subr.bf16.mxu0 0
    %191 = vmatpush1.bf16.msra.mxu0 %v183
    %192 = vmatprep.subr.bf16.mxu0 0
    %193 = vmatpush1.bf16.msra.mxu0 %v184
    %194 = vmatprep.subr.bf16.mxu0 0
    %195 = vmatpush1.bf16.msra.mxu0 0
    %196 = vmatprep.subr.bf16.mxu0 0
    %197 = vmatpush1.bf16.msra.mxu0 0
    %198 = vmatprep.subr.bf16.mxu0 0
    %199 = vmatpush1.bf16.msra.mxu0 0
    %200 = vmatprep.subr.bf16.mxu0 0
    %201 = vmatpush1.bf16.msra.mxu0 0
    %202 = vmatprep.subr.bf16.mxu0 0
    %203 = vmatpush1.bf16.msra.mxu0 0
    %204 = vmatprep.subr.bf16.mxu0 0
    %205 = vmatpush1.bf16.msra.mxu0 0
    %206 = vmatprep.subr.bf16.mxu0 0
    %207 = vmatpush1.bf16.msra.mxu0 0
    %208 = vmatprep.subr.bf16.mxu0 0
    %209 = vmatpush1.bf16.msra.mxu0 0
    %210 = vmatprep.subr.bf16.mxu0 0
    %211 = vmatpush1.bf16.msra.mxu0 0
    %212 = vmatprep.subr.bf16.mxu0 0
    %213 = vmatpush1.bf16.msra.mxu0 0
    %214 = vmatprep.subr.bf16.mxu0 0
    %215 = vmatpush1.bf16.msra.mxu0 0
    %216 = vmatprep.subr.bf16.mxu0 0
    %217 = vmatpush1.bf16.msra.mxu0 0
    %218 = vmatprep.subr.bf16.mxu0 0
    %219 = vmatpush1.bf16.msra.mxu0 0
    %220 = vmatprep.subr.bf16.mxu0 0
    %221 = vmatpush1.bf16.msra.mxu0 0
    %222 = vmatprep.mubr.bf16.mxu0 0
    %223 = vmatmul.mubr.bf16.gmra.mrb[0].mxu0 %v188
    %v224 = vpop.f32.mrb[0].mxu0
    %v225 = vadd.f32 %v173, %v224
    %v226 = vpop.f32.mrb[0].mxu0
    %v227 = vpop.f32.mrb[0].mxu0
    %v228 = vadd.f32 %v173, %v227
    %v229 = vpop.f32.mrb[0].mxu0
    %230 = vdwg.mxu0
    %v231 = vmul.f32 %v225, 0.35355338
    %v232 = vmul.f32 %v228, 0.35355338
    %v233 = vpack.c.bf16 %v232, %v231
    %v235 = vunpack.c.l.b16 %v233
    %v236 = vunpack.c.h.b16 %v233
    %v237 = vpack.c.b16 %v235, %v235
    %v238 = vpack.c.b16 %v236, %v236
    %v239 = vpack.c.bf16 %v228, %v225
    %v241 = vunpack.c.l.b16 %v239
    %v242 = vunpack.c.h.b16 %v239
    %v245 = vlaneseq
    %v246 = vshrl.u32 %v245, 7
    %v247 = vsub.s32 0, %v246
    %v248 = vrot.slane %v115, %v247
    %v249 = vlaneseq
    %v250 = vshrl.u32 %v249, 7
    %v251 = vsub.s32 0, %v250
    %v252 = vrot.slane %v116, %v251
    %v255 = vpack.c.b16 %v241, %v241
    %256 = vrot.lane.b32.xlu0 %v255, 96
    %v257 = vpop.permute.xlu0 %256
    %vm258 = vcmask 64512
    %v260 = vsel %vm258, %v237, 0
    %v263 = vsel %vm258, %v257, 0
    %265 = vmatprep.subr.bf16.mxu0 0
    %266 = vmatpush1.bf16.xpose.msra.mxu0 %v263
    %267 = vmatprep.subr.bf16.mxu0 0
    %268 = vmatpush1.bf16.xpose.msra.mxu0 0
    %269 = vmatprep.subr.bf16.mxu0 0
    %270 = vmatpush1.bf16.xpose.msra.mxu0 0
    %271 = vmatprep.subr.bf16.mxu0 0
    %272 = vmatpush1.bf16.xpose.msra.mxu0 0
    %273 = vmatprep.subr.bf16.mxu0 0
    %274 = vmatpush1.bf16.xpose.msra.mxu0 0
    %275 = vmatprep.subr.bf16.mxu0 0
    %276 = vmatpush1.bf16.xpose.msra.mxu0 0
    %277 = vmatprep.subr.bf16.mxu0 0
    %278 = vmatpush1.bf16.xpose.msra.mxu0 0
    %279 = vmatprep.subr.bf16.mxu0 0
    %280 = vmatpush1.bf16.xpose.msra.mxu0 0
    %281 = vmatprep.subr.bf16.mxu0 0
    %282 = vmatpush1.bf16.xpose.msra.mxu0 0
    %283 = vmatprep.subr.bf16.mxu0 0
    %284 = vmatpush1.bf16.xpose.msra.mxu0 0
    %285 = vmatprep.subr.bf16.mxu0 0
    %286 = vmatpush1.bf16.xpose.msra.mxu0 0
    %287 = vmatprep.subr.bf16.mxu0 0
    %288 = vmatpush1.bf16.xpose.msra.mxu0 0
    %289 = vmatprep.subr.bf16.mxu0 0
    %290 = vmatpush1.bf16.xpose.msra.mxu0 0
    %291 = vmatprep.subr.bf16.mxu0 0
    %292 = vmatpush1.bf16.xpose.msra.mxu0 0
    %293 = vmatprep.subr.bf16.mxu0 0
    %294 = vmatpush1.bf16.xpose.msra.mxu0 0
    %295 = vmatprep.subr.bf16.mxu0 0
    %296 = vmatpush1.bf16.xpose.msra.mxu0 0
    %297 = vmatprep.mubr.bf16.mxu0 0
    %298 = vmatmul.mubr.bf16.gmra.mrb[0].mxu0 %v260
    %v299 = vpop.f32.mrb[0].mxu0
    %v300 = vadd.f32 %v248, %v299
    %v301 = vpop.f32.mrb[0].mxu0
    %v302 = vpop.f32.mrb[0].mxu0
    %v303 = vpop.f32.mrb[0].mxu0
    %304 = vdwg.mxu0
    %v305 = vpack.c.b16 %v242, %v242
    %306 = vrot.lane.b32.xlu0 %v305, 96
    %v307 = vpop.permute.xlu0 %306
    %v309 = vsel %vm258, %v238, 0
    %v312 = vsel %vm258, %v307, 0
    %314 = vmatprep.subr.bf16.mxu0 0
    %315 = vmatpush1.bf16.xpose.msra.mxu0 %v312
    %316 = vmatprep.subr.bf16.mxu0 0
    %317 = vmatpush1.bf16.xpose.msra.mxu0 0
    %318 = vmatprep.subr.bf16.mxu0 0
    %319 = vmatpush1.bf16.xpose.msra.mxu0 0
    %320 = vmatprep.subr.bf16.mxu0 0
    %321 = vmatpush1.bf16.xpose.msra.mxu0 0
    %322 = vmatprep.subr.bf16.mxu0 0
    %323 = vmatpush1.bf16.xpose.msra.mxu0 0
    %324 = vmatprep.subr.bf16.mxu0 0
    %325 = vmatpush1.bf16.xpose.msra.mxu0 0
    %326 = vmatprep.subr.bf16.mxu0 0
    %327 = vmatpush1.bf16.xpose.msra.mxu0 0
    %328 = vmatprep.subr.bf16.mxu0 0
    %329 = vmatpush1.bf16.xpose.msra.mxu0 0
    %330 = vmatprep.subr.bf16.mxu0 0
    %331 = vmatpush1.bf16.xpose.msra.mxu0 0
    %332 = vmatprep.subr.bf16.mxu0 0
    %333 = vmatpush1.bf16.xpose.msra.mxu0 0
    %334 = vmatprep.subr.bf16.mxu0 0
    %335 = vmatpush1.bf16.xpose.msra.mxu0 0
    %336 = vmatprep.subr.bf16.mxu0 0
    %337 = vmatpush1.bf16.xpose.msra.mxu0 0
    %338 = vmatprep.subr.bf16.mxu0 0
    %339 = vmatpush1.bf16.xpose.msra.mxu0 0
    %340 = vmatprep.subr.bf16.mxu0 0
    %341 = vmatpush1.bf16.xpose.msra.mxu0 0
    %342 = vmatprep.subr.bf16.mxu0 0
    %343 = vmatpush1.bf16.xpose.msra.mxu0 0
    %344 = vmatprep.subr.bf16.mxu0 0
    %345 = vmatpush1.bf16.xpose.msra.mxu0 0
    %346 = vmatprep.mubr.bf16.mxu0 0
    %347 = vmatmul.mubr.bf16.gmra.mrb[0].mxu0 %v309
    %v348 = vpop.f32.mrb[0].mxu0
    %v349 = vadd.f32 %v252, %v348
    %v350 = vpop.f32.mrb[0].mxu0
    %v351 = vpop.f32.mrb[0].mxu0
    %v352 = vpop.f32.mrb[0].mxu0
    %353 = vdwg.mxu0
    %v354 = vsel %vm258, %v300, -inf
    %355 = vmax.xlane.f32.xlu0 %v354
    %v356 = vpop.xlane.xlu0 %355
    %v357 = vsel %vm258, %v349, -inf
    %358 = vmax.xlane.f32.xlu0 %v357
    %v359 = vpop.xlane.xlu0 %358
    %v360 = vsub.f32 %v300, %v356
    %v361 = vsub.f32 %v349, %v359
    %v362 = vmul.f32 %v360, 1.442695
    %v363 = vpow.pop %v362
    %v364 = vmul.f32 %v361, 1.442695
    %v365 = vpow.pop %v364
    %v366 = vsel %vm258, %v363, 0.0
    %367 = vadd.xlane.f32.xlu0 %v366
    %v368 = vpop.xlane.xlu0 %367
    %v369 = vsel %vm258, %v365, 0.0
    %370 = vadd.xlane.f32.xlu0 %v369
    %v371 = vpop.xlane.xlu0 %370
    %v372 = vrcp.pop %v368
    %v373 = vrcp.pop %v371
    %v374 = vmul.f32 %v363, %v372
    %v375 = vmul.f32 %v365, %v373
    %v376 = vpack.c.bf16 %v374, %v374
    %v377 = vpack.c.bf16 %v375, %v375
    %378 = vrot.lane.b32.xlu0 %v255, 64
    %v379 = vpop.permute.xlu0 %378
    %v381 = vsel %vm258, %v376, 0
    %vm383 = vcmask 1043456
    %v385 = vsel %vm383, %v379, 0
    %387 = vmatprep.subr.bf16.mxu0 0
    %388 = vmatpush1.bf16.msra.mxu0 %v385
    %389 = vmatprep.subr.bf16.mxu0 0
    %390 = vmatpush1.bf16.msra.mxu0 0
    %391 = vmatprep.subr.bf16.mxu0 0
    %392 = vmatpush1.bf16.msra.mxu0 0
    %393 = vmatprep.subr.bf16.mxu0 0
    %394 = vmatpush1.bf16.msra.mxu0 0
    %395 = vmatprep.subr.bf16.mxu0 0
    %396 = vmatpush1.bf16.msra.mxu0 0
    %397 = vmatprep.subr.bf16.mxu0 0
    %398 = vmatpush1.bf16.msra.mxu0 0
    %399 = vmatprep.subr.bf16.mxu0 0
    %400 = vmatpush1.bf16.msra.mxu0 0
    %401 = vmatprep.subr.bf16.mxu0 0
    %402 = vmatpush1.bf16.msra.mxu0 0
    %403 = vmatprep.subr.bf16.mxu0 0
    %404 = vmatpush1.bf16.msra.mxu0 0
    %405 = vmatprep.subr.bf16.mxu0 0
    %406 = vmatpush1.bf16.msra.mxu0 0
    %407 = vmatprep.subr.bf16.mxu0 0
    %408 = vmatpush1.bf16.msra.mxu0 0
    %409 = vmatprep.subr.bf16.mxu0 0
    %410 = vmatpush1.bf16.msra.mxu0 0
    %411 = vmatprep.subr.bf16.mxu0 0
    %412 = vmatpush1.bf16.msra.mxu0 0
    %413 = vmatprep.subr.bf16.mxu0 0
    %414 = vmatpush1.bf16.msra.mxu0 0
    %415 = vmatprep.subr.bf16.mxu0 0
    %416 = vmatpush1.bf16.msra.mxu0 0
    %417 = vmatprep.subr.bf16.mxu0 0
    %418 = vmatpush1.bf16.msra.mxu0 0
    %419 = vmatprep.mubr.bf16.mxu0 0
    %420 = vmatmul.mubr.bf16.gmra.mrb[0].mxu0 %v381
    %v421 = vpop.f32.mrb[0].mxu0
    %v422 = vadd.f32 0.0, %v421
    %v423 = vpop.f32.mrb[0].mxu0
    %v424 = vpop.f32.mrb[0].mxu0
    %v425 = vpop.f32.mrb[0].mxu0
    %426 = vdwg.mxu0
    %427 = vrot.lane.b32.xlu0 %v305, 64
    %v428 = vpop.permute.xlu0 %427
    %v430 = vsel %vm258, %v377, 0
    %v433 = vsel %vm383, %v428, 0
    %435 = vmatprep.subr.bf16.mxu0 0
    %436 = vmatpush1.bf16.msra.mxu0 %v433
    %437 = vmatprep.subr.bf16.mxu0 0
    %438 = vmatpush1.bf16.msra.mxu0 0
    %439 = vmatprep.subr.bf16.mxu0 0
    %440 = vmatpush1.bf16.msra.mxu0 0
    %441 = vmatprep.subr.bf16.mxu0 0
    %442 = vmatpush1.bf16.msra.mxu0 0
    %443 = vmatprep.subr.bf16.mxu0 0
    %444 = vmatpush1.bf16.msra.mxu0 0
    %445 = vmatprep.subr.bf16.mxu0 0
    %446 = vmatpush1.bf16.msra.mxu0 0
    %447 = vmatprep.subr.bf16.mxu0 0
    %448 = vmatpush1.bf16.msra.mxu0 0
    %449 = vmatprep.subr.bf16.mxu0 0
    %450 = vmatpush1.bf16.msra.mxu0 0
    %451 = vmatprep.subr.bf16.mxu0 0
    %452 = vmatpush1.bf16.msra.mxu0 0
    %453 = vmatprep.subr.bf16.mxu0 0
    %454 = vmatpush1.bf16.msra.mxu0 0
    %455 = vmatprep.subr.bf16.mxu0 0
    %456 = vmatpush1.bf16.msra.mxu0 0
    %457 = vmatprep.subr.bf16.mxu0 0
    %458 = vmatpush1.bf16.msra.mxu0 0
    %459 = vmatprep.subr.bf16.mxu0 0
    %460 = vmatpush1.bf16.msra.mxu0 0
    %461 = vmatprep.subr.bf16.mxu0 0
    %462 = vmatpush1.bf16.msra.mxu0 0
    %463 = vmatprep.subr.bf16.mxu0 0
    %464 = vmatpush1.bf16.msra.mxu0 0
    %465 = vmatprep.subr.bf16.mxu0 0
    %466 = vmatpush1.bf16.msra.mxu0 0
    %467 = vmatprep.mubr.bf16.mxu0 0
    %468 = vmatmul.mubr.bf16.gmra.mrb[0].mxu0 %v430
    %v469 = vpop.f32.mrb[0].mxu0
    %v470 = vadd.f32 0.0, %v469
    %v471 = vpop.f32.mrb[0].mxu0
    %v472 = vpop.f32.mrb[0].mxu0
    %v473 = vpop.f32.mrb[0].mxu0
    %474 = vdwg.mxu0
    %v475 = vpack.c.bf16 %v422, %v422
    %v476 = vpack.c.bf16 %v470, %v470
    %vm477 = vcmask 60416
    %478 = vst.msk [vmem:[#allocation2] sm:$0xf] %vm477, %v475
    %479 = vst.msk [vmem:[#allocation2 + $0x4] sm:$0xf] %vm477, %v476
    %480 = vrot.lane.b32.xlu0 %v237, 120
    %v481 = vpop.permute.xlu0 %480
    %482 = vrot.lane.b32.xlu0 %v255, 88
    %v483 = vpop.permute.xlu0 %482
    %v485 = vsel %vm258, %v481, 0
    %v488 = vsel %vm258, %v483, 0
    %490 = vmatprep.subr.bf16.mxu0 0
    %491 = vmatpush1.bf16.xpose.msra.mxu0 %v488
    %492 = vmatprep.subr.bf16.mxu0 0
    %493 = vmatpush1.bf16.xpose.msra.mxu0 0
    %494 = vmatprep.subr.bf16.mxu0 0
    %495 = vmatpush1.bf16.xpose.msra.mxu0 0
    %496 = vmatprep.subr.bf16.mxu0 0
    %497 = vmatpush1.bf16.xpose.msra.mxu0 0
    %498 = vmatprep.subr.bf16.mxu0 0
    %499 = vmatpush1.bf16.xpose.msra.mxu0 0
    %500 = vmatprep.subr.bf16.mxu0 0
    %501 = vmatpush1.bf16.xpose.msra.mxu0 0
    %502 = vmatprep.subr.bf16.mxu0 0
    %503 = vmatpush1.bf16.xpose.msra.mxu0 0
    %504 = vmatprep.subr.bf16.mxu0 0
    %505 = vmatpush1.bf16.xpose.msra.mxu0 0
    %506 = vmatprep.subr.bf16.mxu0 0
    %507 = vmatpush1.bf16.xpose.msra.mxu0 0
    %508 = vmatprep.subr.bf16.mxu0 0
    %509 = vmatpush1.bf16.xpose.msra.mxu0 0
    %510 = vmatprep.subr.bf16.mxu0 0
    %511 = vmatpush1.bf16.xpose.msra.mxu0 0
    %512 = vmatprep.subr.bf16.mxu0 0
    %513 = vmatpush1.bf16.xpose.msra.mxu0 0
    %514 = vmatprep.subr.bf16.mxu0 0
    %515 = vmatpush1.bf16.xpose.msra.mxu0 0
    %516 = vmatprep.subr.bf16.mxu0 0
    %517 = vmatpush1.bf16.xpose.msra.mxu0 0
    %518 = vmatprep.subr.bf16.mxu0 0
    %519 = vmatpush1.bf16.xpose.msra.mxu0 0
    %520 = vmatprep.subr.bf16.mxu0 0
    %521 = vmatpush1.bf16.xpose.msra.mxu0 0
    %522 = vmatprep.mubr.bf16.mxu0 0
    %523 = vmatmul.mubr.bf16.gmra.mrb[0].mxu0 %v485
    %v524 = vpop.f32.mrb[0].mxu0
    %v525 = vadd.f32 %v248, %v524
    %v526 = vpop.f32.mrb[0].mxu0
    %v527 = vpop.f32.mrb[0].mxu0
    %v528 = vpop.f32.mrb[0].mxu0
    %529 = vdwg.mxu0
    %530 = vrot.lane.b32.xlu0 %v238, 120
    %v531 = vpop.permute.xlu0 %530
    %532 = vrot.lane.b32.xlu0 %v305, 88
    %v533 = vpop.permute.xlu0 %532
    %v535 = vsel %vm258, %v531, 0
    %v538 = vsel %vm258, %v533, 0
    %540 = vmatprep.subr.bf16.mxu0 0
    %541 = vmatpush1.bf16.xpose.msra.mxu0 %v538
    %542 = vmatprep.subr.bf16.mxu0 0
    %543 = vmatpush1.bf16.xpose.msra.mxu0 0
    %544 = vmatprep.subr.bf16.mxu0 0
    %545 = vmatpush1.bf16.xpose.msra.mxu0 0
    %546 = vmatprep.subr.bf16.mxu0 0
    %547 = vmatpush1.bf16.xpose.msra.mxu0 0
    %548 = vmatprep.subr.bf16.mxu0 0
    %549 = vmatpush1.bf16.xpose.msra.mxu0 0
    %550 = vmatprep.subr.bf16.mxu0 0
    %551 = vmatpush1.bf16.xpose.msra.mxu0 0
    %552 = vmatprep.subr.bf16.mxu0 0
    %553 = vmatpush1.bf16.xpose.msra.mxu0 0
    %554 = vmatprep.subr.bf16.mxu0 0
    %555 = vmatpush1.bf16.xpose.msra.mxu0 0
    %556 = vmatprep.subr.bf16.mxu0 0
    %557 = vmatpush1.bf16.xpose.msra.mxu0 0
    %558 = vmatprep.subr.bf16.mxu0 0
    %559 = vmatpush1.bf16.xpose.msra.mxu0 0
    %560 = vmatprep.subr.bf16.mxu0 0
    %561 = vmatpush1.bf16.xpose.msra.mxu0 0
    %562 = vmatprep.subr.bf16.mxu0 0
    %563 = vmatpush1.bf16.xpose.msra.mxu0 0
    %564 = vmatprep.subr.bf16.mxu0 0
    %565 = vmatpush1.bf16.xpose.msra.mxu0 0
    %566 = vmatprep.subr.bf16.mxu0 0
    %567 = vmatpush1.bf16.xpose.msra.mxu0 0
    %568 = vmatprep.subr.bf16.mxu0 0
    %569 = vmatpush1.bf16.xpose.msra.mxu0 0
    %570 = vmatprep.subr.bf16.mxu0 0
    %571 = vmatpush1.bf16.xpose.msra.mxu0 0
    %572 = vmatprep.mubr.bf16.mxu0 0
    %573 = vmatmul.mubr.bf16.gmra.mrb[0].mxu0 %v535
    %v574 = vpop.f32.mrb[0].mxu0
    %v575 = vadd.f32 %v252, %v574
    %v576 = vpop.f32.mrb[0].mxu0
    %v577 = vpop.f32.mrb[0].mxu0
    %v578 = vpop.f32.mrb[0].mxu0
    %579 = vdwg.mxu0
    %v580 = vsel %vm258, %v525, -inf
    %581 = vmax.xlane.f32.xlu0 %v580
    %v582 = vpop.xlane.xlu0 %581
    %v583 = vsel %vm258, %v575, -inf
    %584 = vmax.xlane.f32.xlu0 %v583
    %v585 = vpop.xlane.xlu0 %584
    %v586 = vsub.f32 %v525, %v582
    %v587 = vsub.f32 %v575, %v585
    %v588 = vmul.f32 %v586, 1.442695
    %v589 = vpow.pop %v588
    %v590 = vmul.f32 %v587, 1.442695
    %v591 = vpow.pop %v590
    %v592 = vsel %vm258, %v589, 0.0
    %593 = vadd.xlane.f32.xlu0 %v592
    %v594 = vpop.xlane.xlu0 %593
    %v595 = vsel %vm258, %v591, 0.0
    %596 = vadd.xlane.f32.xlu0 %v595
    %v597 = vpop.xlane.xlu0 %596
    %v598 = vrcp.pop %v594
    %v599 = vrcp.pop %v597
    %v600 = vmul.f32 %v589, %v598
    %v601 = vmul.f32 %v591, %v599
    %v602 = vpack.c.bf16 %v600, %v600
    %v603 = vpack.c.bf16 %v601, %v601
    %604 = vrot.lane.b32.xlu0 %v255, 56
    %v605 = vpop.permute.xlu0 %604
    %v607 = vsel %vm258, %v602, 0
    %v610 = vsel %vm383, %v605, 0
    %612 = vmatprep.subr.bf16.mxu0 0
    %613 = vmatpush1.bf16.msra.mxu0 %v610
    %614 = vmatprep.subr.bf16.mxu0 0
    %615 = vmatpush1.bf16.msra.mxu0 0
    %616 = vmatprep.subr.bf16.mxu0 0
    %617 = vmatpush1.bf16.msra.mxu0 0
    %618 = vmatprep.subr.bf16.mxu0 0
    %619 = vmatpush1.bf16.msra.mxu0 0
    %620 = vmatprep.subr.bf16.mxu0 0
    %621 = vmatpush1.bf16.msra.mxu0 0
    %622 = vmatprep.subr.bf16.mxu0 0
    %623 = vmatpush1.bf16.msra.mxu0 0
    %624 = vmatprep.subr.bf16.mxu0 0
    %625 = vmatpush1.bf16.msra.mxu0 0
    %626 = vmatprep.subr.bf16.mxu0 0
    %627 = vmatpush1.bf16.msra.mxu0 0
    %628 = vmatprep.subr.bf16.mxu0 0
    %629 = vmatpush1.bf16.msra.mxu0 0
    %630 = vmatprep.subr.bf16.mxu0 0
    %631 = vmatpush1.bf16.msra.mxu0 0
    %632 = vmatprep.subr.bf16.mxu0 0
    %633 = vmatpush1.bf16.msra.mxu0 0
    %634 = vmatprep.subr.bf16.mxu0 0
    %635 = vmatpush1.bf16.msra.mxu0 0
    %636 = vmatprep.subr.bf16.mxu0 0
    %637 = vmatpush1.bf16.msra.mxu0 0
    %638 = vmatprep.subr.bf16.mxu0 0
    %639 = vmatpush1.bf16.msra.mxu0 0
    %640 = vmatprep.subr.bf16.mxu0 0
    %641 = vmatpush1.bf16.msra.mxu0 0
    %642 = vmatprep.subr.bf16.mxu0 0
    %643 = vmatpush1.bf16.msra.mxu0 0
    %644 = vmatprep.mubr.bf16.mxu0 0
    %645 = vmatmul.mubr.bf16.gmra.mrb[0].mxu0 %v607
    %v646 = vpop.f32.mrb[0].mxu0
    %v647 = vadd.f32 0.0, %v646
    %v648 = vpop.f32.mrb[0].mxu0
    %v649 = vpop.f32.mrb[0].mxu0
    %v650 = vpop.f32.mrb[0].mxu0
    %651 = vdwg.mxu0
    %652 = vrot.lane.b32.xlu0 %v305, 56
    %v653 = vpop.permute.xlu0 %652
    %v655 = vsel %vm258, %v603, 0
    %v658 = vsel %vm383, %v653, 0
    %660 = vmatprep.subr.bf16.mxu0 0
    %661 = vmatpush1.bf16.msra.mxu0 %v658
    %662 = vmatprep.subr.bf16.mxu0 0
    %663 = vmatpush1.bf16.msra.mxu0 0
    %664 = vmatprep.subr.bf16.mxu0 0
    %665 = vmatpush1.bf16.msra.mxu0 0
    %666 = vmatprep.subr.bf16.mxu0 0
    %667 = vmatpush1.bf16.msra.mxu0 0
    %668 = vmatprep.subr.bf16.mxu0 0
    %669 = vmatpush1.bf16.msra.mxu0 0
    %670 = vmatprep.subr.bf16.mxu0 0
    %671 = vmatpush1.bf16.msra.mxu0 0
    %672 = vmatprep.subr.bf16.mxu0 0
    %673 = vmatpush1.bf16.msra.mxu0 0
    %674 = vmatprep.subr.bf16.mxu0 0
    %675 = vmatpush1.bf16.msra.mxu0 0
    %676 = vmatprep.subr.bf16.mxu0 0
    %677 = vmatpush1.bf16.msra.mxu0 0
    %678 = vmatprep.subr.bf16.mxu0 0
    %679 = vmatpush1.bf16.msra.mxu0 0
    %680 = vmatprep.subr.bf16.mxu0 0
    %681 = vmatpush1.bf16.msra.mxu0 0
    %682 = vmatprep.subr.bf16.mxu0 0
    %683 = vmatpush1.bf16.msra.mxu0 0
    %684 = vmatprep.subr.bf16.mxu0 0
    %685 = vmatpush1.bf16.msra.mxu0 0
    %686 = vmatprep.subr.bf16.mxu0 0
    %687 = vmatpush1.bf16.msra.mxu0 0
    %688 = vmatprep.subr.bf16.mxu0 0
    %689 = vmatpush1.bf16.msra.mxu0 0
    %690 = vmatprep.subr.bf16.mxu0 0
    %691 = vmatpush1.bf16.msra.mxu0 0
    %692 = vmatprep.mubr.bf16.mxu0 0
    %693 = vmatmul.mubr.bf16.gmra.mrb[0].mxu0 %v655
    %v694 = vpop.f32.mrb[0].mxu0
    %v695 = vadd.f32 0.0, %v694
    %v696 = vpop.f32.mrb[0].mxu0
    %v697 = vpop.f32.mrb[0].mxu0
    %v698 = vpop.f32.mrb[0].mxu0
    %699 = vdwg.mxu0
    %v700 = vpack.c.bf16 %v647, %v647
    %v701 = vpack.c.bf16 %v695, %v695
    %v704 = vunpack.c.l.b16 %v700
    %v705 = vunpack.c.l.b16 %v701
    %v706 = vpack.c.b16 %v704, %v704
    %v707 = vpack.c.b16 %v705, %v705
    %708 = vrot.lane.b32.xlu0 %v706, 8
    %v709 = vpop.permute.xlu0 %708
    %710 = vrot.lane.b32.xlu0 %v707, 8
    %v711 = vpop.permute.xlu0 %710
    %vm714 = vcmask 126016
    %715 = vst.msk [vmem:[#allocation2] sm:$0xf] %vm714, %v709
    %716 = vst.msk [vmem:[#allocation2 + $0x4] sm:$0xf] %vm714, %v711
    %717 = vrot.lane.b32.xlu0 %v237, 112
    %v718 = vpop.permute.xlu0 %717
    %719 = vrot.lane.b32.xlu0 %v255, 80
    %v720 = vpop.permute.xlu0 %719
    %v722 = vsel %vm258, %v718, 0
    %v725 = vsel %vm258, %v720, 0
    %727 = vmatprep.subr.bf16.mxu0 0
    %728 = vmatpush1.bf16.xpose.msra.mxu0 %v725
    %729 = vmatprep.subr.bf16.mxu0 0
    %730 = vmatpush1.bf16.xpose.msra.mxu0 0
    %731 = vmatprep.subr.bf16.mxu0 0
    %732 = vmatpush1.bf16.xpose.msra.mxu0 0
    %733 = vmatprep.subr.bf16.mxu0 0
    %734 = vmatpush1.bf16.xpose.msra.mxu0 0
    %735 = vmatprep.subr.bf16.mxu0 0
    %736 = vmatpush1.bf16.xpose.msra.mxu0 0
    %737 = vmatprep.subr.bf16.mxu0 0
    %738 = vmatpush1.bf16.xpose.msra.mxu0 0
    %739 = vmatprep.subr.bf16.mxu0 0
    %740 = vmatpush1.bf16.xpose.msra.mxu0 0
    %741 = vmatprep.subr.bf16.mxu0 0
    %742 = vmatpush1.bf16.xpose.msra.mxu0 0
    %743 = vmatprep.subr.bf16.mxu0 0
    %744 = vmatpush1.bf16.xpose.msra.mxu0 0
    %745 = vmatprep.subr.bf16.mxu0 0
    %746 = vmatpush1.bf16.xpose.msra.mxu0 0
    %747 = vmatprep.subr.bf16.mxu0 0
    %748 = vmatpush1.bf16.xpose.msra.mxu0 0
    %749 = vmatprep.subr.bf16.mxu0 0
    %750 = vmatpush1.bf16.xpose.msra.mxu0 0
    %751 = vmatprep.subr.bf16.mxu0 0
    %752 = vmatpush1.bf16.xpose.msra.mxu0 0
    %753 = vmatprep.subr.bf16.mxu0 0
    %754 = vmatpush1.bf16.xpose.msra.mxu0 0
    %755 = vmatprep.subr.bf16.mxu0 0
    %756 = vmatpush1.bf16.xpose.msra.mxu0 0
    %757 = vmatprep.subr.bf16.mxu0 0
    %758 = vmatpush1.bf16.xpose.msra.mxu0 0
    %759 = vmatprep.mubr.bf16.mxu0 0
    %760 = vmatmul.mubr.bf16.gmra.mrb[0].mxu0 %v722
    %v761 = vpop.f32.mrb[0].mxu0
    %v762 = vadd.f32 %v248, %v761
    %v763 = vpop.f32.mrb[0].mxu0
    %v764 = vpop.f32.mrb[0].mxu0
    %v765 = vpop.f32.mrb[0].mxu0
    %766 = vdwg.mxu0
    %767 = vrot.lane.b32.xlu0 %v238, 112
    %v768 = vpop.permute.xlu0 %767
    %769 = vrot.lane.b32.xlu0 %v305, 80
    %v770 = vpop.permute.xlu0 %769
    %v772 = vsel %vm258, %v768, 0
    %v775 = vsel %vm258, %v770, 0
    %777 = vmatprep.subr.bf16.mxu0 0
    %778 = vmatpush1.bf16.xpose.msra.mxu0 %v775
    %779 = vmatprep.subr.bf16.mxu0 0
    %780 = vmatpush1.bf16.xpose.msra.mxu0 0
    %781 = vmatprep.subr.bf16.mxu0 0
    %782 = vmatpush1.bf16.xpose.msra.mxu0 0
    %783 = vmatprep.subr.bf16.mxu0 0
    %784 = vmatpush1.bf16.xpose.msra.mxu0 0
    %785 = vmatprep.subr.bf16.mxu0 0
    %786 = vmatpush1.bf16.xpose.msra.mxu0 0
    %787 = vmatprep.subr.bf16.mxu0 0
    %788 = vmatpush1.bf16.xpose.msra.mxu0 0
    %789 = vmatprep.subr.bf16.mxu0 0
    %790 = vmatpush1.bf16.xpose.msra.mxu0 0
    %791 = vmatprep.subr.bf16.mxu0 0
    %792 = vmatpush1.bf16.xpose.msra.mxu0 0
    %793 = vmatprep.subr.bf16.mxu0 0
    %794 = vmatpush1.bf16.xpose.msra.mxu0 0
    %795 = vmatprep.subr.bf16.mxu0 0
    %796 = vmatpush1.bf16.xpose.msra.mxu0 0
    %797 = vmatprep.subr.bf16.mxu0 0
    %798 = vmatpush1.bf16.xpose.msra.mxu0 0
    %799 = vmatprep.subr.bf16.mxu0 0
    %800 = vmatpush1.bf16.xpose.msra.mxu0 0
    %801 = vmatprep.subr.bf16.mxu0 0
    %802 = vmatpush1.bf16.xpose.msra.mxu0 0
    %803 = vmatprep.subr.bf16.mxu0 0
    %804 = vmatpush1.bf16.xpose.msra.mxu0 0
    %805 = vmatprep.subr.bf16.mxu0 0
    %806 = vmatpush1.bf16.xpose.msra.mxu0 0
    %807 = vmatprep.subr.bf16.mxu0 0
    %808 = vmatpush1.bf16.xpose.msra.mxu0 0
    %809 = vmatprep.mubr.bf16.mxu0 0
    %810 = vmatmul.mubr.bf16.gmra.mrb[0].mxu0 %v772
    %v811 = vpop.f32.mrb[0].mxu0
    %v812 = vadd.f32 %v252, %v811
    %v813 = vpop.f32.mrb[0].mxu0
    %v814 = vpop.f32.mrb[0].mxu0
    %v815 = vpop.f32.mrb[0].mxu0
    %816 = vdwg.mxu0
    %v817 = vsel %vm258, %v762, -inf
    %818 = vmax.xlane.f32.xlu0 %v817
    %v819 = vpop.xlane.xlu0 %818
    %v820 = vsel %vm258, %v812, -inf
    %821 = vmax.xlane.f32.xlu0 %v820
    %v822 = vpop.xlane.xlu0 %821
    %v823 = vsub.f32 %v762, %v819
    %v824 = vsub.f32 %v812, %v822
    %v825 = vmul.f32 %v823, 1.442695
    %v826 = vpow.pop %v825
    %v827 = vmul.f32 %v824, 1.442695
    %v828 = vpow.pop %v827
    %v829 = vsel %vm258, %v826, 0.0
    %830 = vadd.xlane.f32.xlu0 %v829
    %v831 = vpop.xlane.xlu0 %830
    %v832 = vsel %vm258, %v828, 0.0
    %833 = vadd.xlane.f32.xlu0 %v832
    %v834 = vpop.xlane.xlu0 %833
    %v835 = vrcp.pop %v831
    %v836 = vrcp.pop %v834
    %v837 = vmul.f32 %v826, %v835
    %v838 = vmul.f32 %v828, %v836
    %v839 = vpack.c.bf16 %v837, %v837
    %v840 = vpack.c.bf16 %v838, %v838
    %841 = vrot.lane.b32.xlu0 %v255, 48
    %v842 = vpop.permute.xlu0 %841
    %v844 = vsel %vm258, %v839, 0
    %v847 = vsel %vm383, %v842, 0
    %849 = vmatprep.subr.bf16.mxu0 0
    %850 = vmatpush1.bf16.msra.mxu0 %v847
    %851 = vmatprep.subr.bf16.mxu0 0
    %852 = vmatpush1.bf16.msra.mxu0 0
    %853 = vmatprep.subr.bf16.mxu0 0
    %854 = vmatpush1.bf16.msra.mxu0 0
    %855 = vmatprep.subr.bf16.mxu0 0
    %856 = vmatpush1.bf16.msra.mxu0 0
    %857 = vmatprep.subr.bf16.mxu0 0
    %858 = vmatpush1.bf16.msra.mxu0 0
    %859 = vmatprep.subr.bf16.mxu0 0
    %860 = vmatpush1.bf16.msra.mxu0 0
    %861 = vmatprep.subr.bf16.mxu0 0
    %862 = vmatpush1.bf16.msra.mxu0 0
    %863 = vmatprep.subr.bf16.mxu0 0
    %864 = vmatpush1.bf16.msra.mxu0 0
    %865 = vmatprep.subr.bf16.mxu0 0
    %866 = vmatpush1.bf16.msra.mxu0 0
    %867 = vmatprep.subr.bf16.mxu0 0
    %868 = vmatpush1.bf16.msra.mxu0 0
    %869 = vmatprep.subr.bf16.mxu0 0
    %870 = vmatpush1.bf16.msra.mxu0 0
    %871 = vmatprep.subr.bf16.mxu0 0
    %872 = vmatpush1.bf16.msra.mxu0 0
    %873 = vmatprep.subr.bf16.mxu0 0
    %874 = vmatpush1.bf16.msra.mxu0 0
    %875 = vmatprep.subr.bf16.mxu0 0
    %876 = vmatpush1.bf16.msra.mxu0 0
    %877 = vmatprep.subr.bf16.mxu0 0
    %878 = vmatpush1.bf16.msra.mxu0 0
    %879 = vmatprep.subr.bf16.mxu0 0
    %880 = vmatpush1.bf16.msra.mxu0 0
    %881 = vmatprep.mubr.bf16.mxu0 0
    %882 = vmatmul.mubr.bf16.gmra.mrb[0].mxu0 %v844
    %v883 = vpop.f32.mrb[0].mxu0
    %v884 = vadd.f32 0.0, %v883
    %v885 = vpop.f32.mrb[0].mxu0
    %v886 = vpop.f32.mrb[0].mxu0
    %v887 = vpop.f32.mrb[0].mxu0
    %888 = vdwg.mxu0
    %889 = vrot.lane.b32.xlu0 %v305, 48
    %v890 = vpop.permute.xlu0 %889
    %v892 = vsel %vm258, %v840, 0
    %v895 = vsel %vm383, %v890, 0
    %897 = vmatprep.subr.bf16.mxu0 0
    %898 = vmatpush1.bf16.msra.mxu0 %v895
    %899 = vmatprep.subr.bf16.mxu0 0
    %900 = vmatpush1.bf16.msra.mxu0 0
    %901 = vmatprep.subr.bf16.mxu0 0
    %902 = vmatpush1.bf16.msra.mxu0 0
    %903 = vmatprep.subr.bf16.mxu0 0
    %904 = vmatpush1.bf16.msra.mxu0 0
    %905 = vmatprep.subr.bf16.mxu0 0
    %906 = vmatpush1.bf16.msra.mxu0 0
    %907 = vmatprep.subr.bf16.mxu0 0
    %908 = vmatpush1.bf16.msra.mxu0 0
    %909 = vmatprep.subr.bf16.mxu0 0
    %910 = vmatpush1.bf16.msra.mxu0 0
    %911 = vmatprep.subr.bf16.mxu0 0
    %912 = vmatpush1.bf16.msra.mxu0 0
    %913 = vmatprep.subr.bf16.mxu0 0
    %914 = vmatpush1.bf16.msra.mxu0 0
    %915 = vmatprep.subr.bf16.mxu0 0
    %916 = vmatpush1.bf16.msra.mxu0 0
    %917 = vmatprep.subr.bf16.mxu0 0
    %918 = vmatpush1.bf16.msra.mxu0 0
    %919 = vmatprep.subr.bf16.mxu0 0
    %920 = vmatpush1.bf16.msra.mxu0 0
    %921 = vmatprep.subr.bf16.mxu0 0
    %922 = vmatpush1.bf16.msra.mxu0 0
    %923 = vmatprep.subr.bf16.mxu0 0
    %924 = vmatpush1.bf16.msra.mxu0 0
    %925 = vmatprep.subr.bf16.mxu0 0
    %926 = vmatpush1.bf16.msra.mxu0 0
    %927 = vmatprep.subr.bf16.mxu0 0
    %928 = vmatpush1.bf16.msra.mxu0 0
    %929 = vmatprep.mubr.bf16.mxu0 0
    %930 = vmatmul.mubr.bf16.gmra.mrb[0].mxu0 %v892
    %v931 = vpop.f32.mrb[0].mxu0
    %v932 = vadd.f32 0.0, %v931
    %v933 = vpop.f32.mrb[0].mxu0
    %v934 = vpop.f32.mrb[0].mxu0
    %v935 = vpop.f32.mrb[0].mxu0
    %936 = vdwg.mxu0
    %v937 = vpack.c.bf16 %v884, %v884
    %v938 = vpack.c.bf16 %v932, %v932
    %v941 = vunpack.c.l.b16 %v937
    %v942 = vunpack.c.l.b16 %v938
    %v943 = vpack.c.b16 %v941, %v941
    %v944 = vpack.c.b16 %v942, %v942
    %945 = vrot.lane.b32.xlu0 %v943, 16
    %v946 = vpop.permute.xlu0 %945
    %947 = vrot.lane.b32.xlu0 %v944, 16
    %v948 = vpop.permute.xlu0 %947
    %vm951 = vcmask 191616
    %952 = vst.msk [vmem:[#allocation2] sm:$0xf] %vm951, %v946
    %953 = vst.msk [vmem:[#allocation2 + $0x4] sm:$0xf] %vm951, %v948
    %954 = vrot.lane.b32.xlu0 %v237, 104
    %v955 = vpop.permute.xlu0 %954
    %956 = vrot.lane.b32.xlu0 %v255, 72
    %v957 = vpop.permute.xlu0 %956
    %v959 = vsel %vm258, %v955, 0
    %v962 = vsel %vm258, %v957, 0
    %964 = vmatprep.subr.bf16.mxu0 0
    %965 = vmatpush1.bf16.xpose.msra.mxu0 %v962
    %966 = vmatprep.subr.bf16.mxu0 0
    %967 = vmatpush1.bf16.xpose.msra.mxu0 0
    %968 = vmatprep.subr.bf16.mxu0 0
    %969 = vmatpush1.bf16.xpose.msra.mxu0 0
    %970 = vmatprep.subr.bf16.mxu0 0
    %971 = vmatpush1.bf16.xpose.msra.mxu0 0
    %972 = vmatprep.subr.bf16.mxu0 0
    %973 = vmatpush1.bf16.xpose.msra.mxu0 0
    %974 = vmatprep.subr.bf16.mxu0 0
    %975 = vmatpush1.bf16.xpose.msra.mxu0 0
    %976 = vmatprep.subr.bf16.mxu0 0
    %977 = vmatpush1.bf16.xpose.msra.mxu0 0
    %978 = vmatprep.subr.bf16.mxu0 0
    %979 = vmatpush1.bf16.xpose.msra.mxu0 0
    %980 = vmatprep.subr.bf16.mxu0 0
    %981 = vmatpush1.bf16.xpose.msra.mxu0 0
    %982 = vmatprep.subr.bf16.mxu0 0
    %983 = vmatpush1.bf16.xpose.msra.mxu0 0
    %984 = vmatprep.subr.bf16.mxu0 0
    %985 = vmatpush1.bf16.xpose.msra.mxu0 0
    %986 = vmatprep.subr.bf16.mxu0 0
    %987 = vmatpush1.bf16.xpose.msra.mxu0 0
    %988 = vmatprep.subr.bf16.mxu0 0
    %989 = vmatpush1.bf16.xpose.msra.mxu0 0
    %990 = vmatprep.subr.bf16.mxu0 0
    %991 = vmatpush1.bf16.xpose.msra.mxu0 0
    %992 = vmatprep.subr.bf16.mxu0 0
    %993 = vmatpush1.bf16.xpose.msra.mxu0 0
    %994 = vmatprep.subr.bf16.mxu0 0
    %995 = vmatpush1.bf16.xpose.msra.mxu0 0
    %996 = vmatprep.mubr.bf16.mxu0 0
    %997 = vmatmul.mubr.bf16.gmra.mrb[0].mxu0 %v959
    %v998 = vpop.f32.mrb[0].mxu0
    %v999 = vadd.f32 %v248, %v998
    %v1000 = vpop.f32.mrb[0].mxu0
    %v1001 = vpop.f32.mrb[0].mxu0
    %v1002 = vpop.f32.mrb[0].mxu0
    %1003 = vdwg.mxu0
    %1004 = vrot.lane.b32.xlu0 %v238, 104
    %v1005 = vpop.permute.xlu0 %1004
    %1006 = vrot.lane.b32.xlu0 %v305, 72
    %v1007 = vpop.permute.xlu0 %1006
    %v1009 = vsel %vm258, %v1005, 0
    %v1012 = vsel %vm258, %v1007, 0
    %1014 = vmatprep.subr.bf16.mxu0 0
    %1015 = vmatpush1.bf16.xpose.msra.mxu0 %v1012
    %1016 = vmatprep.subr.bf16.mxu0 0
    %1017 = vmatpush1.bf16.xpose.msra.mxu0 0
    %1018 = vmatprep.subr.bf16.mxu0 0
    %1019 = vmatpush1.bf16.xpose.msra.mxu0 0
    %1020 = vmatprep.subr.bf16.mxu0 0
    %1021 = vmatpush1.bf16.xpose.msra.mxu0 0
    %1022 = vmatprep.subr.bf16.mxu0 0
    %1023 = vmatpush1.bf16.xpose.msra.mxu0 0
    %1024 = vmatprep.subr.bf16.mxu0 0
    %1025 = vmatpush1.bf16.xpose.msra.mxu0 0
    %1026 = vmatprep.subr.bf16.mxu0 0
    %1027 = vmatpush1.bf16.xpose.msra.mxu0 0
    %1028 = vmatprep.subr.bf16.mxu0 0
    %1029 = vmatpush1.bf16.xpose.msra.mxu0 0
    %1030 = vmatprep.subr.bf16.mxu0 0
    %1031 = vmatpush1.bf16.xpose.msra.mxu0 0
    %1032 = vmatprep.subr.bf16.mxu0 0
    %1033 = vmatpush1.bf16.xpose.msra.mxu0 0
    %1034 = vmatprep.subr.bf16.mxu0 0
    %1035 = vmatpush1.bf16.xpose.msra.mxu0 0
    %1036 = vmatprep.subr.bf16.mxu0 0
    %1037 = vmatpush1.bf16.xpose.msra.mxu0 0
    %1038 = vmatprep.subr.bf16.mxu0 0
    %1039 = vmatpush1.bf16.xpose.msra.mxu0 0
    %1040 = vmatprep.subr.bf16.mxu0 0
    %1041 = vmatpush1.bf16.xpose.msra.mxu0 0
    %1042 = vmatprep.subr.bf16.mxu0 0
    %1043 = vmatpush1.bf16.xpose.msra.mxu0 0
    %1044 = vmatprep.subr.bf16.mxu0 0
    %1045 = vmatpush1.bf16.xpose.msra.mxu0 0
    %1046 = vmatprep.mubr.bf16.mxu0 0
    %1047 = vmatmul.mubr.bf16.gmra.mrb[0].mxu0 %v1009
    %v1048 = vpop.f32.mrb[0].mxu0
    %v1049 = vadd.f32 %v252, %v1048
    %v1050 = vpop.f32.mrb[0].mxu0
    %v1051 = vpop.f32.mrb[0].mxu0
    %v1052 = vpop.f32.mrb[0].mxu0
    %1053 = vdwg.mxu0
    %v1054 = vsel %vm258, %v999, -inf
    %1055 = vmax.xlane.f32.xlu0 %v1054
    %v1056 = vpop.xlane.xlu0 %1055
    %v1057 = vsel %vm258, %v1049, -inf
    %1058 = vmax.xlane.f32.xlu0 %v1057
    %v1059 = vpop.xlane.xlu0 %1058
    %v1060 = vsub.f32 %v999, %v1056
    %v1061 = vsub.f32 %v1049, %v1059
    %v1062 = vmul.f32 %v1060, 1.442695
    %v1063 = vpow.pop %v1062
    %v1064 = vmul.f32 %v1061, 1.442695
    %v1065 = vpow.pop %v1064
    %v1066 = vsel %vm258, %v1063, 0.0
    %1067 = vadd.xlane.f32.xlu0 %v1066
    %v1068 = vpop.xlane.xlu0 %1067
    %v1069 = vsel %vm258, %v1065, 0.0
    %1070 = vadd.xlane.f32.xlu0 %v1069
    %v1071 = vpop.xlane.xlu0 %1070
    %v1072 = vrcp.pop %v1068
    %v1073 = vrcp.pop %v1071
    %v1074 = vmul.f32 %v1063, %v1072
    %v1075 = vmul.f32 %v1065, %v1073
    %v1076 = vpack.c.bf16 %v1074, %v1074
    %v1077 = vpack.c.bf16 %v1075, %v1075
    %1078 = vrot.lane.b32.xlu0 %v255, 40
    %v1079 = vpop.permute.xlu0 %1078
    %v1081 = vsel %vm258, %v1076, 0
    %v1084 = vsel %vm383, %v1079, 0
    %1086 = vmatprep.subr.bf16.mxu0 0
    %1087 = vmatpush1.bf16.msra.mxu0 %v1084
    %1088 = vmatprep.subr.bf16.mxu0 0
    %1089 = vmatpush1.bf16.msra.mxu0 0
    %1090 = vmatprep.subr.bf16.mxu0 0
    %1091 = vmatpush1.bf16.msra.mxu0 0
    %1092 = vmatprep.subr.bf16.mxu0 0
    %1093 = vmatpush1.bf16.msra.mxu0 0
    %1094 = vmatprep.subr.bf16.mxu0 0
    %1095 = vmatpush1.bf16.msra.mxu0 0
    %1096 = vmatprep.subr.bf16.mxu0 0
    %1097 = vmatpush1.bf16.msra.mxu0 0
    %1098 = vmatprep.subr.bf16.mxu0 0
    %1099 = vmatpush1.bf16.msra.mxu0 0
    %1100 = vmatprep.subr.bf16.mxu0 0
    %1101 = vmatpush1.bf16.msra.mxu0 0
    %1102 = vmatprep.subr.bf16.mxu0 0
    %1103 = vmatpush1.bf16.msra.mxu0 0
    %1104 = vmatprep.subr.bf16.mxu0 0
    %1105 = vmatpush1.bf16.msra.mxu0 0
    %1106 = vmatprep.subr.bf16.mxu0 0
    %1107 = vmatpush1.bf16.msra.mxu0 0
    %1108 = vmatprep.subr.bf16.mxu0 0
    %1109 = vmatpush1.bf16.msra.mxu0 0
    %1110 = vmatprep.subr.bf16.mxu0 0
    %1111 = vmatpush1.bf16.msra.mxu0 0
    %1112 = vmatprep.subr.bf16.mxu0 0
    %1113 = vmatpush1.bf16.msra.mxu0 0
    %1114 = vmatprep.subr.bf16.mxu0 0
    %1115 = vmatpush1.bf16.msra.mxu0 0
    %1116 = vmatprep.subr.bf16.mxu0 0
    %1117 = vmatpush1.bf16.msra.mxu0 0
    %1118 = vmatprep.mubr.bf16.mxu0 0
    %1119 = vmatmul.mubr.bf16.gmra.mrb[0].mxu0 %v1081
    %v1120 = vpop.f32.mrb[0].mxu0
    %v1121 = vadd.f32 0.0, %v1120
    %v1122 = vpop.f32.mrb[0].mxu0
    %v1123 = vpop.f32.mrb[0].mxu0
    %v1124 = vpop.f32.mrb[0].mxu0
    %1125 = vdwg.mxu0
    %1126 = vrot.lane.b32.xlu0 %v305, 40
    %v1127 = vpop.permute.xlu0 %1126
    %v1129 = vsel %vm258, %v1077, 0
    %v1132 = vsel %vm383, %v1127, 0
    %1134 = vmatprep.subr.bf16.mxu0 0
    %1135 = vmatpush1.bf16.msra.mxu0 %v1132
    %1136 = vmatprep.subr.bf16.mxu0 0
    %1137 = vmatpush1.bf16.msra.mxu0 0
    %1138 = vmatprep.subr.bf16.mxu0 0
    %1139 = vmatpush1.bf16.msra.mxu0 0
    %1140 = vmatprep.subr.bf16.mxu0 0
    %1141 = vmatpush1.bf16.msra.mxu0 0
    %1142 = vmatprep.subr.bf16.mxu0 0
    %1143 = vmatpush1.bf16.msra.mxu0 0
    %1144 = vmatprep.subr.bf16.mxu0 0
    %1145 = vmatpush1.bf16.msra.mxu0 0
    %1146 = vmatprep.subr.bf16.mxu0 0
    %1147 = vmatpush1.bf16.msra.mxu0 0
    %1148 = vmatprep.subr.bf16.mxu0 0
    %1149 = vmatpush1.bf16.msra.mxu0 0
    %1150 = vmatprep.subr.bf16.mxu0 0
    %1151 = vmatpush1.bf16.msra.mxu0 0
    %1152 = vmatprep.subr.bf16.mxu0 0
    %1153 = vmatpush1.bf16.msra.mxu0 0
    %1154 = vmatprep.subr.bf16.mxu0 0
    %1155 = vmatpush1.bf16.msra.mxu0 0
    %1156 = vmatprep.subr.bf16.mxu0 0
    %1157 = vmatpush1.bf16.msra.mxu0 0
    %1158 = vmatprep.subr.bf16.mxu0 0
    %1159 = vmatpush1.bf16.msra.mxu0 0
    %1160 = vmatprep.subr.bf16.mxu0 0
    %1161 = vmatpush1.bf16.msra.mxu0 0
    %1162 = vmatprep.subr.bf16.mxu0 0
    %1163 = vmatpush1.bf16.msra.mxu0 0
    %1164 = vmatprep.subr.bf16.mxu0 0
    %1165 = vmatpush1.bf16.msra.mxu0 0
    %1166 = vmatprep.mubr.bf16.mxu0 0
    %1167 = vmatmul.mubr.bf16.gmra.mrb[0].mxu0 %v1129
    %v1168 = vpop.f32.mrb[0].mxu0
    %v1169 = vadd.f32 0.0, %v1168
    %v1170 = vpop.f32.mrb[0].mxu0
    %v1171 = vpop.f32.mrb[0].mxu0
    %v1172 = vpop.f32.mrb[0].mxu0
    %1173 = vdwg.mxu0
    %v1174 = vpack.c.bf16 %v1121, %v1121
    %v1175 = vpack.c.bf16 %v1169, %v1169
    %v1178 = vunpack.c.l.b16 %v1174
    %v1179 = vunpack.c.l.b16 %v1175
    %v1180 = vpack.c.b16 %v1178, %v1178
    %v1181 = vpack.c.b16 %v1179, %v1179
    %1182 = vrot.lane.b32.xlu0 %v1180, 24
    %v1183 = vpop.permute.xlu0 %1182
    %1184 = vrot.lane.b32.xlu0 %v1181, 24
    %v1185 = vpop.permute.xlu0 %1184
    %vm1188 = vcmask 257216
    %1189 = vst.msk [vmem:[#allocation2] sm:$0xf] %vm1188, %v1183
    %1190 = vst.msk [vmem:[#allocation2 + $0x4] sm:$0xf] %vm1188, %v1185
    %v1191 = vld [vmem:[#allocation2] sm:$0xf]
    %v1192 = vld [vmem:[#allocation2 + $0x4] sm:$0xf]
    %v1193 = vld [vmem:[%s4] sm:$0xf]
    %v1194 = vld [vmem:[%s4 + $0x4] sm:$0xf]
    %v1195 = vld [vmem:[%s4 + $0x8] sm:$0xf]
    %v1196 = vld [vmem:[%s4 + $0xc] sm:$0xf]
    %v1197 = vld [vmem:[%s5] sm:$0x1]
    %v1199 = vlaneseq
    %v1200 = vshrl.u32 %v1199, 7
    %v1201 = vsub.s32 0, %v1200
    %v1202 = vrot.slane %v1197, %v1201
    %v1206 = vunpack.c.l.b16 %v1191
    %v1207 = vunpack.c.l.b16 %v1192
    %v1208 = vpack.c.b16 %v1207, %v1206
    %v1213 = vunpack.c.l.b16 %v1193
    %v1214 = vunpack.c.l.b16 %v1194
    %v1215 = vunpack.c.l.b16 %v1195
    %v1216 = vunpack.c.l.b16 %v1196
    %v1217 = vpack.c.b16 %v1214, %v1213
    %v1218 = vpack.c.b16 %v1216, %v1215
    %v1222 = vsel %vm117, %v1208, 0
    %1224 = vmatprep.subr.bf16.mxu0 0
    %1225 = vmatpush1.bf16.msra.mxu0 %v1217
    %1226 = vmatprep.subr.bf16.mxu0 0
    %1227 = vmatpush1.bf16.msra.mxu0 %v1218
    %1228 = vmatprep.subr.bf16.mxu0 0
    %1229 = vmatpush1.bf16.msra.mxu0 0
    %1230 = vmatprep.subr.bf16.mxu0 0
    %1231 = vmatpush1.bf16.msra.mxu0 0
    %1232 = vmatprep.subr.bf16.mxu0 0
    %1233 = vmatpush1.bf16.msra.mxu0 0
    %1234 = vmatprep.subr.bf16.mxu0 0
    %1235 = vmatpush1.bf16.msra.mxu0 0
    %1236 = vmatprep.subr.bf16.mxu0 0
    %1237 = vmatpush1.bf16.msra.mxu0 0
    %1238 = vmatprep.subr.bf16.mxu0 0
    %1239 = vmatpush1.bf16.msra.mxu0 0
    %1240 = vmatprep.subr.bf16.mxu0 0
    %1241 = vmatpush1.bf16.msra.mxu0 0
    %1242 = vmatprep.subr.bf16.mxu0 0
    %1243 = vmatpush1.bf16.msra.mxu0 0
    %1244 = vmatprep.subr.bf16.mxu0 0
    %1245 = vmatpush1.bf16.msra.mxu0 0
    %1246 = vmatprep.subr.bf16.mxu0 0
    %1247 = vmatpush1.bf16.msra.mxu0 0
    %1248 = vmatprep.subr.bf16.mxu0 0
    %1249 = vmatpush1.bf16.msra.mxu0 0
    %1250 = vmatprep.subr.bf16.mxu0 0
    %1251 = vmatpush1.bf16.msra.mxu0 0
    %1252 = vmatprep.subr.bf16.mxu0 0
    %1253 = vmatpush1.bf16.msra.mxu0 0
    %1254 = vmatprep.subr.bf16.mxu0 0
    %1255 = vmatpush1.bf16.msra.mxu0 0
    %1256 = vmatprep.mubr.bf16.mxu0 0
    %1257 = vmatmul.mubr.bf16.gmra.mrb[0].mxu0 %v1222
    %v1258 = vpop.f32.mrb[0].mxu0
    %v1259 = vadd.f32 %v1202, %v1258
    %v1260 = vpop.f32.mrb[0].mxu0
    %v1261 = vpop.f32.mrb[0].mxu0
    %v1262 = vadd.f32 %v1202, %v1261
    %v1263 = vpop.f32.mrb[0].mxu0
    %1264 = vdwg.mxu0
    %v1265 = vadd.f32 %v109, %v1259
    %v1266 = vadd.f32 %v110, %v1262
    %v1267 = vsel %vm117, %v1265, 0.0
    %1268 = vadd.xlane.f32.xlu0 %v1267
    %v1269 = vpop.xlane.xlu0 %1268
    %v1270 = vsel %vm117, %v1266, 0.0
    %1271 = vadd.xlane.f32.xlu0 %v1270
    %v1272 = vpop.xlane.xlu0 %1271
    %v1273 = vmul.f32 %v1269, %v124
    %v1274 = vmul.f32 %v1272, %v124
    %v1275 = vsub.f32 %v1265, %v1273
    %v1276 = vsub.f32 %v1266, %v1274
    %v1277 = vmul.f32 %v1275, %v1275
    %v1278 = vmul.f32 %v1276, %v1276
    %v1279 = vsel %vm117, %v1277, 0.0
    %1280 = vadd.xlane.f32.xlu0 %v1279
    %v1281 = vpop.xlane.xlu0 %1280
    %v1282 = vsel %vm117, %v1278, 0.0
    %1283 = vadd.xlane.f32.xlu0 %v1282
    %v1284 = vpop.xlane.xlu0 %1283
    %v1285 = vmul.f32 %v1281, %v124
    %v1286 = vmul.f32 %v1284, %v124
    %v1287 = vadd.f32 %v1285, 1e-06
    %v1288 = vadd.f32 %v1286, 1e-06
    %v1289 = vrsqrt.pop %v1287
    %v1290 = vrsqrt.pop %v1288
    %v1291 = vmul.f32 %v1275, %v1289
    %v1292 = vmul.f32 %v1276, %v1290
    %v1293 = vld [vmem:[#allocation9] sm:$0x1]
    %v1295 = vlaneseq
    %v1296 = vshrl.u32 %v1295, 7
    %v1297 = vsub.s32 0, %v1296
    %v1298 = vrot.slane %v1293, %v1297
    %v1300 = vmul.f32 %v1291, %v1298
    %v1301 = vmul.f32 %v1292, %v1298
    %v1302 = vld [vmem:[#allocation11] sm:$0x1]
    %v1304 = vlaneseq
    %v1305 = vshrl.u32 %v1304, 7
    %v1306 = vsub.s32 0, %v1305
    %v1307 = vrot.slane %v1302, %v1306
    %v1309 = vadd.f32 %v1300, %v1307
    %v1310 = vadd.f32 %v1301, %v1307
    %v1311 = vpack.c.bf16 %v1310, %v1309
    %v1312 = vld [vmem:[%s10] sm:$0xf]
    %v1313 = vld [vmem:[%s10 + $0x4] sm:$0xf]
    %v1314 = vld [vmem:[%s10 + $0x8] sm:$0xf]
    %v1315 = vld [vmem:[%s10 + $0xc] sm:$0xf]
    %v1316 = vld [vmem:[%s11] sm:$0x1]
    %v1318 = vlaneseq
    %v1319 = vshrl.u32 %v1318, 7
    %v1320 = vsub.s32 0, %v1319
    %v1321 = vrot.slane %v1316, %v1320
    %v1327 = vunpack.c.l.b16 %v1312
    %v1328 = vunpack.c.l.b16 %v1313
    %v1329 = vunpack.c.l.b16 %v1314
    %v1330 = vunpack.c.l.b16 %v1315
    %v1331 = vpack.c.b16 %v1328, %v1327
    %v1332 = vpack.c.b16 %v1330, %v1329
    %v1336 = vsel %vm117, %v1311, 0
    %1338 = vmatprep.subr.bf16.mxu0 0
    %1339 = vmatpush1.bf16.msra.mxu0 %v1331
    %1340 = vmatprep.subr.bf16.mxu0 0
    %1341 = vmatpush1.bf16.msra.mxu0 %v1332
    %1342 = vmatprep.subr.bf16.mxu0 0
    %1343 = vmatpush1.bf16.msra.mxu0 0
    %1344 = vmatprep.subr.bf16.mxu0 0
    %1345 = vmatpush1.bf16.msra.mxu0 0
    %1346 = vmatprep.subr.bf16.mxu0 0
    %1347 = vmatpush1.bf16.msra.mxu0 0
    %1348 = vmatprep.subr.bf16.mxu0 0
    %1349 = vmatpush1.bf16.msra.mxu0 0
    %1350 = vmatprep.subr.bf16.mxu0 0
    %1351 = vmatpush1.bf16.msra.mxu0 0
    %1352 = vmatprep.subr.bf16.mxu0 0
    %1353 = vmatpush1.bf16.msra.mxu0 0
    %1354 = vmatprep.subr.bf16.mxu0 0
    %1355 = vmatpush1.bf16.msra.mxu0 0
    %1356 = vmatprep.subr.bf16.mxu0 0
    %1357 = vmatpush1.bf16.msra.mxu0 0
    %1358 = vmatprep.subr.bf16.mxu0 0
    %1359 = vmatpush1.bf16.msra.mxu0 0
    %1360 = vmatprep.subr.bf16.mxu0 0
    %1361 = vmatpush1.bf16.msra.mxu0 0
    %1362 = vmatprep.subr.bf16.mxu0 0
    %1363 = vmatpush1.bf16.msra.mxu0 0
    %1364 = vmatprep.subr.bf16.mxu0 0
    %1365 = vmatpush1.bf16.msra.mxu0 0
    %1366 = vmatprep.subr.bf16.mxu0 0
    %1367 = vmatpush1.bf16.msra.mxu0 0
    %1368 = vmatprep.subr.bf16.mxu0 0
    %1369 = vmatpush1.bf16.msra.mxu0 0
    %1370 = vmatprep.mubr.bf16.mxu0 0
    %1371 = vmatmul.mubr.bf16.gmra.mrb[0].mxu0 %v1336
    %v1372 = vpop.f32.mrb[0].mxu0
    %v1373 = vadd.f32 %v1321, %v1372
    %v1374 = vpop.f32.mrb[0].mxu0
    %v1375 = vpop.f32.mrb[0].mxu0
    %v1376 = vadd.f32 %v1321, %v1375
    %v1377 = vpop.f32.mrb[0].mxu0
    %1378 = vdwg.mxu0
    %v1379 = vmax.f32 %v1373, 0.0
    %v1380 = vmax.f32 %v1376, 0.0
    %v1381 = vpack.c.bf16 %v1380, %v1379
    %v1382 = vld [vmem:[%s12] sm:$0xf]
    %v1383 = vld [vmem:[%s12 + $0x4] sm:$0xf]
    %v1384 = vld [vmem:[%s12 + $0x8] sm:$0xf]
    %v1385 = vld [vmem:[%s12 + $0xc] sm:$0xf]
    %v1386 = vld [vmem:[%s12 + $0x10] sm:$0xf]
    %v1387 = vld [vmem:[%s12 + $0x14] sm:$0xf]
    %v1388 = vld [vmem:[%s12 + $0x18] sm:$0xf]
    %v1389 = vld [vmem:[%s12 + $0x1c] sm:$0xf]
    %v1390 = vld [vmem:[%s13] sm:$0x1]
    %v1392 = vlaneseq
    %v1393 = vshrl.u32 %v1392, 7
    %v1394 = vsub.s32 0, %v1393
    %v1395 = vrot.slane %v1390, %v1394
    %v1405 = vunpack.c.l.b16 %v1382
    %v1406 = vunpack.c.l.b16 %v1383
    %v1407 = vunpack.c.l.b16 %v1384
    %v1408 = vunpack.c.l.b16 %v1385
    %v1409 = vunpack.c.l.b16 %v1386
    %v1410 = vunpack.c.l.b16 %v1387
    %v1411 = vunpack.c.l.b16 %v1388
    %v1412 = vunpack.c.l.b16 %v1389
    %v1413 = vpack.c.b16 %v1406, %v1405
    %v1414 = vpack.c.b16 %v1408, %v1407
    %v1415 = vpack.c.b16 %v1410, %v1409
    %v1416 = vpack.c.b16 %v1412, %v1411
    %vm1421 = vcmask 523264
    %v1423 = vsel %vm1421, %v1381, 0
    %1425 = vmatprep.subr.bf16.mxu0 0
    %1426 = vmatpush1.bf16.msra.mxu0 %v1413
    %1427 = vmatprep.subr.bf16.mxu0 0
    %1428 = vmatpush1.bf16.msra.mxu0 %v1414
    %1429 = vmatprep.subr.bf16.mxu0 0
    %1430 = vmatpush1.bf16.msra.mxu0 %v1415
    %1431 = vmatprep.subr.bf16.mxu0 0
    %1432 = vmatpush1.bf16.msra.mxu0 %v1416
    %1433 = vmatprep.subr.bf16.mxu0 0
    %1434 = vmatpush1.bf16.msra.mxu0 0
    %1435 = vmatprep.subr.bf16.mxu0 0
    %1436 = vmatpush1.bf16.msra.mxu0 0
    %1437 = vmatprep.subr.bf16.mxu0 0
    %1438 = vmatpush1.bf16.msra.mxu0 0
    %1439 = vmatprep.subr.bf16.mxu0 0
    %1440 = vmatpush1.bf16.msra.mxu0 0
    %1441 = vmatprep.subr.bf16.mxu0 0
    %1442 = vmatpush1.bf16.msra.mxu0 0
    %1443 = vmatprep.subr.bf16.mxu0 0
    %1444 = vmatpush1.bf16.msra.mxu0 0
    %1445 = vmatprep.subr.bf16.mxu0 0
    %1446 = vmatpush1.bf16.msra.mxu0 0
    %1447 = vmatprep.subr.bf16.mxu0 0
    %1448 = vmatpush1.bf16.msra.mxu0 0
    %1449 = vmatprep.subr.bf16.mxu0 0
    %1450 = vmatpush1.bf16.msra.mxu0 0
    %1451 = vmatprep.subr.bf16.mxu0 0
    %1452 = vmatpush1.bf16.msra.mxu0 0
    %1453 = vmatprep.subr.bf16.mxu0 0
    %1454 = vmatpush1.bf16.msra.mxu0 0
    %1455 = vmatprep.subr.bf16.mxu0 0
    %1456 = vmatpush1.bf16.msra.mxu0 0
    %1457 = vmatprep.mubr.bf16.mxu0 0
    %1458 = vmatmul.mubr.bf16.gmra.mrb[0].mxu0 %v1423
    %v1459 = vpop.f32.mrb[0].mxu0
    %v1460 = vadd.f32 %v1395, %v1459
    %v1461 = vpop.f32.mrb[0].mxu0
    %v1462 = vpop.f32.mrb[0].mxu0
    %v1463 = vadd.f32 %v1395, %v1462
    %v1464 = vpop.f32.mrb[0].mxu0
    %1465 = vdwg.mxu0
    %v1466 = vadd.f32 %v1265, %v1460
    %v1467 = vadd.f32 %v1266, %v1463
    %1468 = vst.msk [vmem:[#allocation12] sm:$0xff] %vm117, %v1466
    %1469 = vst.msk [vmem:[#allocation12 + $0x8] sm:$0xff] %vm117, %v1467
    // Predicated region
    $region78: #{tpu_custom_call.1} parent=1 // pred_check
      _
    $region79: #{tpu_custom_call.1} parent=1 // pred_check_branch
      %1471 = sbr.rel (0) target = $region81
    $region80: #{tpu_custom_call.1} parent=1 // pred_region
      %s1473 = ssub.s32 256, 256
      %1474 = vsyncadd [#allocation5], %s1473
      %s1475 = sshll.u32 [#allocation12], 4
      %s1476 = int_to_ptr.vmem [resolvable:$true] %s1475
      %1481 = dma.vmem_to_hbm [thread:$0]  %s1476, 256, %s14, [#allocation5], 128, 128, 8
    $region81: #{tpu_custom_call.1} parent=1 // pred_fallthru
      _
    // Predicated region
    $region82: #{tpu_custom_call.1} parent=1 // pred_check
      _
    $region83: #{tpu_custom_call.1} parent=1 // pred_check_branch
      %1483 = sbr.rel (0) target = $region85
    $region84: #{tpu_custom_call.1} parent=1 // pred_region
      %1484 = dma.done [#allocation5], 256
    $region85: #{tpu_custom_call.1} parent=1 // pred_fallthru
      _
    %1485 = vsyncpa [#allocation4], 1
    %1486 = vsyncpa [#allocation7], 1
    %1487 = vsyncpa [#allocation10], 1
    %1488 = vsyncpa [#allocation5], 1

// kernel: tpu_custom_call.1
$region0: #{tpu_custom_call.1}
  #allocation0 [shape = 'u32[]', space=smem, size = 0x4, offset = 0x4, fixed_abs, tag = 'smem constant byte address 0x4 - core index']
  #allocation1 [shape = 'u32[144,128]{1,0:T(1,128)}', space=vmem, size = 0x12000, scoped, tag = 'internal scratch']
  #allocation2 [shape = 'bf16[2,8,32]{2,1,0:T(8,128)(2,1)}', space=vmem, size = 0x1000, scoped, tag = 'scratch operand']
  %s0 = inlined_call_operand.hbm [shape: f32[2,1,8], index: 0, kind: input, shape index: {}]
  %s1 = inlined_call_operand.vmem [shape: f32[2,8,32], index: 1, kind: input, shape index: {}]
  %s2 = inlined_call_operand.vmem [shape: bf16[32,96], index: 2, kind: input, shape index: {}]
  %s3 = inlined_call_operand.vmem [shape: f32[1,96], index: 3, kind: input, shape index: {}]
  %s4 = inlined_call_operand.vmem [shape: bf16[32,32], index: 4, kind: input, shape index: {}]
  %s5 = inlined_call_operand.vmem [shape: f32[1,32], index: 5, kind: input, shape index: {}]
  %s6 = inlined_call_operand.hbm [shape: f32[1,32], index: 6, kind: input, shape index: {}]
  %s7 = inlined_call_operand.hbm [shape: f32[1,32], index: 7, kind: input, shape index: {}]
  %s8 = inlined_call_operand.hbm [shape: f32[1,32], index: 8, kind: input, shape index: {}]
  %s9 = inlined_call_operand.hbm [shape: f32[1,32], index: 9, kind: input, shape index: {}]
  %s10 = inlined_call_operand.vmem [shape: bf16[32,64], index: 10, kind: input, shape index: {}]
  %s11 = inlined_call_operand.vmem [shape: f32[1,64], index: 11, kind: input, shape index: {}]
  %s12 = inlined_call_operand.vmem [shape: bf16[64,32], index: 12, kind: input, shape index: {}]
  %s13 = inlined_call_operand.vmem [shape: f32[1,32], index: 13, kind: input, shape index: {}]
  %s14 = inlined_call_operand.hbm [shape: f32[2,8,32], index: 14, kind: output, shape index: {}]
  %s15 = sld [smem:[#allocation0]]
  $region86: #{tpu_custom_call.1} parent=0
    _
  %s17 = ssub.s32 1, %s15
  %s18 = scalar_select 0, %s17, %s15
  $region1: #{tpu_custom_call.1} parent=0
    #allocation3 [shape = 'u8[1024]{0}', space=vmem, size = 0x400, scoped, tag = 'input window, operand 0, single buffered']
    #allocation4 [shape = 's32[1]{0}', space=sflag, size = 0x4, scoped, tag = 'scoped memory for tpu_custom_call.1']
    #allocation5 [shape = 's32[1]{0}', space=sflag, size = 0x4, scoped, tag = 'scoped memory for tpu_custom_call.1']
    #allocation6 [shape = 'u8[512]{0}', space=vmem, size = 0x400, scoped, tag = 'input window, operand 6, single buffered']
    #allocation7 [shape = 's32[1]{0}', space=sflag, size = 0x4, scoped, tag = 'scoped memory for tpu_custom_call.1']
    #allocation8 [shape = 'u8[512]{0}', space=vmem, size = 0x400, scoped, tag = 'input window, operand 7, single buffered']
    #allocation9 [shape = 'u8[512]{0}', space=vmem, size = 0x400, scoped, tag = 'input window, operand 8, single buffered']
    #allocation10 [shape = 's32[1]{0}', space=sflag, size = 0x4, scoped, tag = 'scoped memory for tpu_custom_call.1']
    #allocation11 [shape = 'u8[512]{0}', space=vmem, size = 0x400, scoped, tag = 'input window, operand 9, single buffered']
    #allocation12 [shape = 'u8[8192]{0}', space=vmem, size = 0x2000, scoped, tag = 'output window, operand 0, single buffered']
    %19 = vsyncpa [#allocation4], 0
    %20 = vsyncpa [#allocation7], 0
    %21 = vsyncpa [#allocation10], 0
    %22 = vsyncpa [#allocation5], 0
    // Predicated region
    $region2: #{tpu_custom_call.1} parent=1 // pred_check
      _
    $region3: #{tpu_custom_call.1} parent=1 // pred_check_branch
      %24 = sbr.rel (0) target = $region5
    $region4: #{tpu_custom_call.1} parent=1 // pred_region
      %s26 = ssub.s32 32, 32
      %27 = vsyncadd [#allocation4], %s26
      %s28 = sshll.u32 [#allocation3], 4
      %s29 = int_to_ptr.vmem [resolvable:$true] %s28
      %34 = dma.hbm_to_vmem [thread:$0]  %s0, 32, %s29, [#allocation4], 16, 16, 1
    $region5: #{tpu_custom_call.1} parent=1 // pred_fallthru
      _
    // Predicated region
    $region6: #{tpu_custom_call.1} parent=1 // pred_check
      _
    $region7: #{tpu_custom_call.1} parent=1 // pred_check_branch
      %36 = sbr.rel (0) target = $region9
    $region8: #{tpu_custom_call.1} parent=1 // pred_region
      _
    $region9: #{tpu_custom_call.1} parent=1 // pred_fallthru
      _
    // Predicated region
    $region10: #{tpu_custom_call.1} parent=1 // pred_check
      _
    $region11: #{tpu_custom_call.1} parent=1 // pred_check_branch
      %38 = sbr.rel (0) target = $region13
    $region12: #{tpu_custom_call.1} parent=1 // pred_region
      _
    $region13: #{tpu_custom_call.1} parent=1 // pred_fallthru
      _
    // Predicated region
    $region14: #{tpu_custom_call.1} parent=1 // pred_check
      _
    $region15: #{tpu_custom_call.1} parent=1 // pred_check_branch
      %40 = sbr.rel (0) target = $region17
    $region16: #{tpu_custom_call.1} parent=1 // pred_region
      _
    $region17: #{tpu_custom_call.1} parent=1 // pred_fallthru
      _
    // Predicated region
    $region18: #{tpu_custom_call.1} parent=1 // pred_check
      _
    $region19: #{tpu_custom_call.1} parent=1 // pred_check_branch
      %42 = sbr.rel (0) target = $region21
    $region20: #{tpu_custom_call.1} parent=1 // pred_region
      _
    $region21: #{tpu_custom_call.1} parent=1 // pred_fallthru
      _
    // Predicated region
    $region22: #{tpu_custom_call.1} parent=1 // pred_check
      _
    $region23: #{tpu_custom_call.1} parent=1 // pred_check_branch
      %44 = sbr.rel (0) target = $region25
    $region24: #{tpu_custom_call.1} parent=1 // pred_region
      _
    $region25: #{tpu_custom_call.1} parent=1 // pred_fallthru
      _
    // Predicated region
    $region26: #{tpu_custom_call.1} parent=1 // pred_check
      _
    $region27: #{tpu_custom_call.1} parent=1 // pred_check_branch
      %46 = sbr.rel (0) target = $region29
    $region28: #{tpu_custom_call.1} parent=1 // pred_region
      %s48 = ssub.s32 16, 16
      %49 = vsyncadd [#allocation7], %s48
      %s51 = sshll.u32 [#allocation6], 4
      %s52 = int_to_ptr.vmem [resolvable:$true] %s51
      %54 = dma.hbm_to_vmem [thread:$0]  %s6, 16, %s52, [#allocation7]
    $region29: #{tpu_custom_call.1} parent=1 // pred_fallthru
      _
    // Predicated region
    $region30: #{tpu_custom_call.1} parent=1 // pred_check
      _
    $region31: #{tpu_custom_call.1} parent=1 // pred_check_branch
      %56 = sbr.rel (0) target = $region33
    $region32: #{tpu_custom_call.1} parent=1 // pred_region
      %s58 = ssub.s32 16, 16
      %59 = vsyncadd [#allocation7], %s58
      %s61 = sshll.u32 [#allocation8], 4
      %s62 = int_to_ptr.vmem [resolvable:$true] %s61
      %64 = dma.hbm_to_vmem [thread:$0]  %s7, 16, %s62, [#allocation7]
    $region33: #{tpu_custom_call.1} parent=1 // pred_fallthru
      _
    // Predicated region
    $region34: #{tpu_custom_call.1} parent=1 // pred_check
      _
    $region35: #{tpu_custom_call.1} parent=1 // pred_check_branch
      %66 = sbr.rel (0) target = $region37
    $region36: #{tpu_custom_call.1} parent=1 // pred_region
      %s68 = ssub.s32 16, 16
      %69 = vsyncadd [#allocation10], %s68
      %s71 = sshll.u32 [#allocation9], 4
      %s72 = int_to_ptr.vmem [resolvable:$true] %s71
      %74 = dma.hbm_to_vmem [thread:$0]  %s8, 16, %s72, [#allocation10]
    $region37: #{tpu_custom_call.1} parent=1 // pred_fallthru
      _
    // Predicated region
    $region38: #{tpu_custom_call.1} parent=1 // pred_check
      _
    $region39: #{tpu_custom_call.1} parent=1 // pred_check_branch
      %76 = sbr.rel (0) target = $region41
    $region40: #{tpu_custom_call.1} parent=1 // pred_region
      %s78 = ssub.s32 16, 16
      %79 = vsyncadd [#allocation10], %s78
      %s81 = sshll.u32 [#allocation11], 4
      %s82 = int_to_ptr.vmem [resolvable:$true] %s81
      %84 = dma.hbm_to_vmem [thread:$0]  %s9, 16, %s82, [#allocation10]
    $region41: #{tpu_custom_call.1} parent=1 // pred_fallthru
      _
    // Predicated region
    $region42: #{tpu_custom_call.1} parent=1 // pred_check
      _
    $region43: #{tpu_custom_call.1} parent=1 // pred_check_branch
      %86 = sbr.rel (0) target = $region45
    $region44: #{tpu_custom_call.1} parent=1 // pred_region
      _
    $region45: #{tpu_custom_call.1} parent=1 // pred_fallthru
      _
    // Predicated region
    $region46: #{tpu_custom_call.1} parent=1 // pred_check
      _
    $region47: #{tpu_custom_call.1} parent=1 // pred_check_branch
      %88 = sbr.rel (0) target = $region49
    $region48: #{tpu_custom_call.1} parent=1 // pred_region
      _
    $region49: #{tpu_custom_call.1} parent=1 // pred_fallthru
      _
    // Predicated region
    $region50: #{tpu_custom_call.1} parent=1 // pred_check
      _
    $region51: #{tpu_custom_call.1} parent=1 // pred_check_branch
      %90 = sbr.rel (0) target = $region53
    $region52: #{tpu_custom_call.1} parent=1 // pred_region
      _
    $region53: #{tpu_custom_call.1} parent=1 // pred_fallthru
      _
    // Predicated region
    $region54: #{tpu_custom_call.1} parent=1 // pred_check
      _
    $region55: #{tpu_custom_call.1} parent=1 // pred_check_branch
      %92 = sbr.rel (0) target = $region57
    $region56: #{tpu_custom_call.1} parent=1 // pred_region
      _
    $region57: #{tpu_custom_call.1} parent=1 // pred_fallthru
      _
    // Predicated region
    $region58: #{tpu_custom_call.1} parent=1 // pred_check
      _
    $region59: #{tpu_custom_call.1} parent=1 // pred_check_branch
      %94 = sbr.rel (0) target = $region61
    $region60: #{tpu_custom_call.1} parent=1 // pred_region
      %95 = dma.done [#allocation4], 32
    $region61: #{tpu_custom_call.1} parent=1 // pred_fallthru
      _
    // Predicated region
    $region62: #{tpu_custom_call.1} parent=1 // pred_check
      _
    $region63: #{tpu_custom_call.1} parent=1 // pred_check_branch
      %97 = sbr.rel (0) target = $region65
    $region64: #{tpu_custom_call.1} parent=1 // pred_region
      %98 = dma.done [#allocation7], 16
    $region65: #{tpu_custom_call.1} parent=1 // pred_fallthru
      _
    // Predicated region
    $region66: #{tpu_custom_call.1} parent=1 // pred_check
      _
    $region67: #{tpu_custom_call.1} parent=1 // pred_check_branch
      %100 = sbr.rel (0) target = $region69
    $region68: #{tpu_custom_call.1} parent=1 // pred_region
      %101 = dma.done [#allocation7], 16
    $region69: #{tpu_custom_call.1} parent=1 // pred_fallthru
      _
    // Predicated region
    $region70: #{tpu_custom_call.1} parent=1 // pred_check
      _
    $region71: #{tpu_custom_call.1} parent=1 // pred_check_branch
      %103 = sbr.rel (0) target = $region73
    $region72: #{tpu_custom_call.1} parent=1 // pred_region
      %104 = dma.done [#allocation10], 16
    $region73: #{tpu_custom_call.1} parent=1 // pred_fallthru
      _
    // Predicated region
    $region74: #{tpu_custom_call.1} parent=1 // pred_check
      _
    $region75: #{tpu_custom_call.1} parent=1 // pred_check_branch
      %106 = sbr.rel (0) target = $region77
    $region76: #{tpu_custom_call.1} parent=1 // pred_region
      %107 = dma.done [#allocation10], 16
    $region77: #{tpu_custom_call.1} parent=1 // pred_fallthru
      _
    %v109 = vld [vmem:[%s1] sm:$0xff]
    %v110 = vld [vmem:[%s1 + $0x8] sm:$0xff]
    %v111 = vld [vmem:[#allocation3] sm:$0x1]
    %v112 = vld [vmem:[#allocation3 + $0x1] sm:$0x1]
    %vm113 = vcmp.gt.f32.partialorder %v111, 0.5
    %vm114 = vcmp.gt.f32.partialorder %v112, 0.5
    %v115 = vsel %vm113, -1e+30, 0.0
    %v116 = vsel %vm114, -1e+30, 0.0
    %vm117 = vcmask 261120
    %v118 = vsel %vm117, %v109, 0.0
    %119 = vadd.xlane.f32.xlu0 %v118
    %v120 = vpop.xlane.xlu0 %119
    %v121 = vsel %vm117, %v110, 0.0
    %122 = vadd.xlane.f32.xlu0 %v121
    %v123 = vpop.xlane.xlu0 %122
    %v124 = vrcp.pop 32.0
    %v125 = vmul.f32 %v120, %v124
    %v126 = vmul.f32 %v123, %v124
    %v127 = vsub.f32 %v109, %v125
    %v128 = vsub.f32 %v110, %v126
    %v129 = vmul.f32 %v127, %v127
    %v130 = vmul.f32 %v128, %v128
    %v131 = vsel %vm117, %v129, 0.0
    %132 = vadd.xlane.f32.xlu0 %v131
    %v133 = vpop.xlane.xlu0 %132
    %v134 = vsel %vm117, %v130, 0.0
    %135 = vadd.xlane.f32.xlu0 %v134
    %v136 = vpop.xlane.xlu0 %135
    %v137 = vmul.f32 %v133, %v124
    %v138 = vmul.f32 %v136, %v124
    %v139 = vadd.f32 %v137, 1e-06
    %v140 = vadd.f32 %v138, 1e-06
    %v141 = vrsqrt.pop %v139
    %v142 = vrsqrt.pop %v140
    %v143 = vmul.f32 %v127, %v141
    %v144 = vmul.f32 %v128, %v142
    %v145 = vld [vmem:[#allocation6] sm:$0x1]
    %v147 = vlaneseq
    %v148 = vshrl.u32 %v147, 7
    %v149 = vsub.s32 0, %v148
    %v150 = vrot.slane %v145, %v149
    %v152 = vmul.f32 %v143, %v150
    %v153 = vmul.f32 %v144, %v150
    %v154 = vld [vmem:[#allocation8] sm:$0x1]
    %v156 = vlaneseq
    %v157 = vshrl.u32 %v156, 7
    %v158 = vsub.s32 0, %v157
    %v159 = vrot.slane %v154, %v158
    %v161 = vadd.f32 %v152, %v159
    %v162 = vadd.f32 %v153, %v159
    %v163 = vpack.c.bf16 %v162, %v161
    %v164 = vld [vmem:[%s2] sm:$0xf]
    %v165 = vld [vmem:[%s2 + $0x4] sm:$0xf]
    %v166 = vld [vmem:[%s2 + $0x8] sm:$0xf]
    %v167 = vld [vmem:[%s2 + $0xc] sm:$0xf]
    %v168 = vld [vmem:[%s3] sm:$0x1]
    %v170 = vlaneseq
    %v171 = vshrl.u32 %v170, 7
    %v172 = vsub.s32 0, %v171
    %v173 = vrot.slane %v168, %v172
    %v179 = vunpack.c.l.b16 %v164
    %v180 = vunpack.c.l.b16 %v165
    %v181 = vunpack.c.l.b16 %v166
    %v182 = vunpack.c.l.b16 %v167
    %v183 = vpack.c.b16 %v180, %v179
    %v184 = vpack.c.b16 %v182, %v181
    %v188 = vsel %vm117, %v163, 0
    %190 = vmatprep.subr.bf16.mxu0 0
    %191 = vmatpush1.bf16.msra.mxu0 %v183
    %192 = vmatprep.subr.bf16.mxu0 0
    %193 = vmatpush1.bf16.msra.mxu0 %v184
    %194 = vmatprep.subr.bf16.mxu0 0
    %195 = vmatpush1.bf16.msra.mxu0 0
    %196 = vmatprep.subr.bf16.mxu0 0
    %197 = vmatpush1.bf16.msra.mxu0 0
    %198 = vmatprep.subr.bf16.mxu0 0
    %199 = vmatpush1.bf16.msra.mxu0 0
    %200 = vmatprep.subr.bf16.mxu0 0
    %201 = vmatpush1.bf16.msra.mxu0 0
    %202 = vmatprep.subr.bf16.mxu0 0
    %203 = vmatpush1.bf16.msra.mxu0 0
    %204 = vmatprep.subr.bf16.mxu0 0
    %205 = vmatpush1.bf16.msra.mxu0 0
    %206 = vmatprep.subr.bf16.mxu0 0
    %207 = vmatpush1.bf16.msra.mxu0 0
    %208 = vmatprep.subr.bf16.mxu0 0
    %209 = vmatpush1.bf16.msra.mxu0 0
    %210 = vmatprep.subr.bf16.mxu0 0
    %211 = vmatpush1.bf16.msra.mxu0 0
    %212 = vmatprep.subr.bf16.mxu0 0
    %213 = vmatpush1.bf16.msra.mxu0 0
    %214 = vmatprep.subr.bf16.mxu0 0
    %215 = vmatpush1.bf16.msra.mxu0 0
    %216 = vmatprep.subr.bf16.mxu0 0
    %217 = vmatpush1.bf16.msra.mxu0 0
    %218 = vmatprep.subr.bf16.mxu0 0
    %219 = vmatpush1.bf16.msra.mxu0 0
    %220 = vmatprep.subr.bf16.mxu0 0
    %221 = vmatpush1.bf16.msra.mxu0 0
    %222 = vmatprep.mubr.bf16.mxu0 0
    %223 = vmatmul.mubr.bf16.gmra.mrb[0].mxu0 %v188
    %v224 = vpop.f32.mrb[0].mxu0
    %v225 = vadd.f32 %v173, %v224
    %v226 = vpop.f32.mrb[0].mxu0
    %v227 = vpop.f32.mrb[0].mxu0
    %v228 = vadd.f32 %v173, %v227
    %v229 = vpop.f32.mrb[0].mxu0
    %230 = vdwg.mxu0
    %v231 = vmul.f32 %v225, 0.35355338
    %v232 = vmul.f32 %v228, 0.35355338
    %v233 = vpack.c.bf16 %v232, %v231
    %v235 = vunpack.c.l.b16 %v233
    %v236 = vunpack.c.h.b16 %v233
    %v237 = vpack.c.b16 %v235, %v235
    %v238 = vpack.c.b16 %v236, %v236
    %v239 = vpack.c.bf16 %v228, %v225
    %v241 = vunpack.c.l.b16 %v239
    %v242 = vunpack.c.h.b16 %v239
    %v245 = vlaneseq
    %v246 = vshrl.u32 %v245, 7
    %v247 = vsub.s32 0, %v246
    %v248 = vrot.slane %v115, %v247
    %v249 = vlaneseq
    %v250 = vshrl.u32 %v249, 7
    %v251 = vsub.s32 0, %v250
    %v252 = vrot.slane %v116, %v251
    %v255 = vpack.c.b16 %v241, %v241
    %256 = vrot.lane.b32.xlu0 %v255, 96
    %v257 = vpop.permute.xlu0 %256
    %vm258 = vcmask 64512
    %v260 = vsel %vm258, %v237, 0
    %v263 = vsel %vm258, %v257, 0
    %265 = vmatprep.subr.bf16.mxu0 0
    %266 = vmatpush1.bf16.xpose.msra.mxu0 %v263
    %267 = vmatprep.subr.bf16.mxu0 0
    %268 = vmatpush1.bf16.xpose.msra.mxu0 0
    %269 = vmatprep.subr.bf16.mxu0 0
    %270 = vmatpush1.bf16.xpose.msra.mxu0 0
    %271 = vmatprep.subr.bf16.mxu0 0
    %272 = vmatpush1.bf16.xpose.msra.mxu0 0
    %273 = vmatprep.subr.bf16.mxu0 0
    %274 = vmatpush1.bf16.xpose.msra.mxu0 0
    %275 = vmatprep.subr.bf16.mxu0 0
    %276 = vmatpush1.bf16.xpose.msra.mxu0 0
    %277 = vmatprep.subr.bf16.mxu0 0
    %278 = vmatpush1.bf16.xpose.msra.mxu0 0
    %279 = vmatprep.subr.bf16.mxu0 0
    %280 = vmatpush1.bf16.xpose.msra.mxu0 0
    %281 = vmatprep.subr.bf16.mxu0 0
    %282 = vmatpush1.bf16.xpose.msra.mxu0 0
    %283 = vmatprep.subr.bf16.mxu0 0
    %284 = vmatpush1.bf16.xpose.msra.mxu0 0
    %285 = vmatprep.subr.bf16.mxu0 0
    %286 = vmatpush1.bf16.xpose.msra.mxu0 0
    %287 = vmatprep.subr.bf16.mxu0 0
    %288 = vmatpush1.bf16.xpose.msra.mxu0 0
    %289 = vmatprep.subr.bf16.mxu0 0
    %290 = vmatpush1.bf16.xpose.msra.mxu0 0
    %291 = vmatprep.subr.bf16.mxu0 0
    %292 = vmatpush1.bf16.xpose.msra.mxu0 0
    %293 = vmatprep.subr.bf16.mxu0 0
    %294 = vmatpush1.bf16.xpose.msra.mxu0 0
    %295 = vmatprep.subr.bf16.mxu0 0
    %296 = vmatpush1.bf16.xpose.msra.mxu0 0
    %297 = vmatprep.mubr.bf16.mxu0 0
    %298 = vmatmul.mubr.bf16.gmra.mrb[0].mxu0 %v260
    %v299 = vpop.f32.mrb[0].mxu0
    %v300 = vadd.f32 %v248, %v299
    %v301 = vpop.f32.mrb[0].mxu0
    %v302 = vpop.f32.mrb[0].mxu0
    %v303 = vpop.f32.mrb[0].mxu0
    %304 = vdwg.mxu0
    %v305 = vpack.c.b16 %v242, %v242
    %306 = vrot.lane.b32.xlu0 %v305, 96
    %v307 = vpop.permute.xlu0 %306
    %v309 = vsel %vm258, %v238, 0
    %v312 = vsel %vm258, %v307, 0
    %314 = vmatprep.subr.bf16.mxu0 0
    %315 = vmatpush1.bf16.xpose.msra.mxu0 %v312
    %316 = vmatprep.subr.bf16.mxu0 0
    %317 = vmatpush1.bf16.xpose.msra.mxu0 0
    %318 = vmatprep.subr.bf16.mxu0 0
    %319 = vmatpush1.bf16.xpose.msra.mxu0 0
    %320 = vmatprep.subr.bf16.mxu0 0
    %321 = vmatpush1.bf16.xpose.msra.mxu0 0
    %322 = vmatprep.subr.bf16.mxu0 0
    %323 = vmatpush1.bf16.xpose.msra.mxu0 0
    %324 = vmatprep.subr.bf16.mxu0 0
    %325 = vmatpush1.bf16.xpose.msra.mxu0 0
    %326 = vmatprep.subr.bf16.mxu0 0
    %327 = vmatpush1.bf16.xpose.msra.mxu0 0
    %328 = vmatprep.subr.bf16.mxu0 0
    %329 = vmatpush1.bf16.xpose.msra.mxu0 0
    %330 = vmatprep.subr.bf16.mxu0 0
    %331 = vmatpush1.bf16.xpose.msra.mxu0 0
    %332 = vmatprep.subr.bf16.mxu0 0
    %333 = vmatpush1.bf16.xpose.msra.mxu0 0
    %334 = vmatprep.subr.bf16.mxu0 0
    %335 = vmatpush1.bf16.xpose.msra.mxu0 0
    %336 = vmatprep.subr.bf16.mxu0 0
    %337 = vmatpush1.bf16.xpose.msra.mxu0 0
    %338 = vmatprep.subr.bf16.mxu0 0
    %339 = vmatpush1.bf16.xpose.msra.mxu0 0
    %340 = vmatprep.subr.bf16.mxu0 0
    %341 = vmatpush1.bf16.xpose.msra.mxu0 0
    %342 = vmatprep.subr.bf16.mxu0 0
    %343 = vmatpush1.bf16.xpose.msra.mxu0 0
    %344 = vmatprep.subr.bf16.mxu0 0
    %345 = vmatpush1.bf16.xpose.msra.mxu0 0
    %346 = vmatprep.mubr.bf16.mxu0 0
    %347 = vmatmul.mubr.bf16.gmra.mrb[0].mxu0 %v309
    %v348 = vpop.f32.mrb[0].mxu0
    %v349 = vadd.f32 %v252, %v348
    %v350 = vpop.f32.mrb[0].mxu0
    %v351 = vpop.f32.mrb[0].mxu0
    %v352 = vpop.f32.mrb[0].mxu0
    %353 = vdwg.mxu0
    %v354 = vsel %vm258, %v300, -inf
    %355 = vmax.xlane.f32.xlu0 %v354
    %v356 = vpop.xlane.xlu0 %355
    %v357 = vsel %vm258, %v349, -inf
    %358 = vmax.xlane.f32.xlu0 %v357
    %v359 = vpop.xlane.xlu0 %358
    %v360 = vsub.f32 %v300, %v356
    %v361 = vsub.f32 %v349, %v359
    %v362 = vmul.f32 %v360, 1.442695
    %v363 = vpow.pop %v362
    %v364 = vmul.f32 %v361, 1.442695
    %v365 = vpow.pop %v364
    %v366 = vsel %vm258, %v363, 0.0
    %367 = vadd.xlane.f32.xlu0 %v366
    %v368 = vpop.xlane.xlu0 %367
    %v369 = vsel %vm258, %v365, 0.0
    %370 = vadd.xlane.f32.xlu0 %v369
    %v371 = vpop.xlane.xlu0 %370
    %v372 = vrcp.pop %v368
    %v373 = vrcp.pop %v371
    %v374 = vmul.f32 %v363, %v372
    %v375 = vmul.f32 %v365, %v373
    %v376 = vpack.c.bf16 %v374, %v374
    %v377 = vpack.c.bf16 %v375, %v375
    %378 = vrot.lane.b32.xlu0 %v255, 64
    %v379 = vpop.permute.xlu0 %378
    %v381 = vsel %vm258, %v376, 0
    %vm383 = vcmask 1043456
    %v385 = vsel %vm383, %v379, 0
    %387 = vmatprep.subr.bf16.mxu0 0
    %388 = vmatpush1.bf16.msra.mxu0 %v385
    %389 = vmatprep.subr.bf16.mxu0 0
    %390 = vmatpush1.bf16.msra.mxu0 0
    %391 = vmatprep.subr.bf16.mxu0 0
    %392 = vmatpush1.bf16.msra.mxu0 0
    %393 = vmatprep.subr.bf16.mxu0 0
    %394 = vmatpush1.bf16.msra.mxu0 0
    %395 = vmatprep.subr.bf16.mxu0 0
    %396 = vmatpush1.bf16.msra.mxu0 0
    %397 = vmatprep.subr.bf16.mxu0 0
    %398 = vmatpush1.bf16.msra.mxu0 0
    %399 = vmatprep.subr.bf16.mxu0 0
    %400 = vmatpush1.bf16.msra.mxu0 0
    %401 = vmatprep.subr.bf16.mxu0 0
    %402 = vmatpush1.bf16.msra.mxu0 0
    %403 = vmatprep.subr.bf16.mxu0 0
    %404 = vmatpush1.bf16.msra.mxu0 0
    %405 = vmatprep.subr.bf16.mxu0 0
    %406 = vmatpush1.bf16.msra.mxu0 0
    %407 = vmatprep.subr.bf16.mxu0 0
    %408 = vmatpush1.bf16.msra.mxu0 0
    %409 = vmatprep.subr.bf16.mxu0 0
    %410 = vmatpush1.bf16.msra.mxu0 0
    %411 = vmatprep.subr.bf16.mxu0 0
    %412 = vmatpush1.bf16.msra.mxu0 0
    %413 = vmatprep.subr.bf16.mxu0 0
    %414 = vmatpush1.bf16.msra.mxu0 0
    %415 = vmatprep.subr.bf16.mxu0 0
    %416 = vmatpush1.bf16.msra.mxu0 0
    %417 = vmatprep.subr.bf16.mxu0 0
    %418 = vmatpush1.bf16.msra.mxu0 0
    %419 = vmatprep.mubr.bf16.mxu0 0
    %420 = vmatmul.mubr.bf16.gmra.mrb[0].mxu0 %v381
    %v421 = vpop.f32.mrb[0].mxu0
    %v422 = vadd.f32 0.0, %v421
    %v423 = vpop.f32.mrb[0].mxu0
    %v424 = vpop.f32.mrb[0].mxu0
    %v425 = vpop.f32.mrb[0].mxu0
    %426 = vdwg.mxu0
    %427 = vrot.lane.b32.xlu0 %v305, 64
    %v428 = vpop.permute.xlu0 %427
    %v430 = vsel %vm258, %v377, 0
    %v433 = vsel %vm383, %v428, 0
    %435 = vmatprep.subr.bf16.mxu0 0
    %436 = vmatpush1.bf16.msra.mxu0 %v433
    %437 = vmatprep.subr.bf16.mxu0 0
    %438 = vmatpush1.bf16.msra.mxu0 0
    %439 = vmatprep.subr.bf16.mxu0 0
    %440 = vmatpush1.bf16.msra.mxu0 0
    %441 = vmatprep.subr.bf16.mxu0 0
    %442 = vmatpush1.bf16.msra.mxu0 0
    %443 = vmatprep.subr.bf16.mxu0 0
    %444 = vmatpush1.bf16.msra.mxu0 0
    %445 = vmatprep.subr.bf16.mxu0 0
    %446 = vmatpush1.bf16.msra.mxu0 0
    %447 = vmatprep.subr.bf16.mxu0 0
    %448 = vmatpush1.bf16.msra.mxu0 0
    %449 = vmatprep.subr.bf16.mxu0 0
    %450 = vmatpush1.bf16.msra.mxu0 0
    %451 = vmatprep.subr.bf16.mxu0 0
    %452 = vmatpush1.bf16.msra.mxu0 0
    %453 = vmatprep.subr.bf16.mxu0 0
    %454 = vmatpush1.bf16.msra.mxu0 0
    %455 = vmatprep.subr.bf16.mxu0 0
    %456 = vmatpush1.bf16.msra.mxu0 0
    %457 = vmatprep.subr.bf16.mxu0 0
    %458 = vmatpush1.bf16.msra.mxu0 0
    %459 = vmatprep.subr.bf16.mxu0 0
    %460 = vmatpush1.bf16.msra.mxu0 0
    %461 = vmatprep.subr.bf16.mxu0 0
    %462 = vmatpush1.bf16.msra.mxu0 0
    %463 = vmatprep.subr.bf16.mxu0 0
    %464 = vmatpush1.bf16.msra.mxu0 0
    %465 = vmatprep.subr.bf16.mxu0 0
    %466 = vmatpush1.bf16.msra.mxu0 0
    %467 = vmatprep.mubr.bf16.mxu0 0
    %468 = vmatmul.mubr.bf16.gmra.mrb[0].mxu0 %v430
    %v469 = vpop.f32.mrb[0].mxu0
    %v470 = vadd.f32 0.0, %v469
    %v471 = vpop.f32.mrb[0].mxu0
    %v472 = vpop.f32.mrb[0].mxu0
    %v473 = vpop.f32.mrb[0].mxu0
    %474 = vdwg.mxu0
    %v475 = vpack.c.bf16 %v422, %v422
    %v476 = vpack.c.bf16 %v470, %v470
    %vm477 = vcmask 60416
    %478 = vst.msk [vmem:[#allocation2] sm:$0xf] %vm477, %v475
    %479 = vst.msk [vmem:[#allocation2 + $0x4] sm:$0xf] %vm477, %v476
    %480 = vrot.lane.b32.xlu0 %v237, 120
    %v481 = vpop.permute.xlu0 %480
    %482 = vrot.lane.b32.xlu0 %v255, 88
    %v483 = vpop.permute.xlu0 %482
    %v485 = vsel %vm258, %v481, 0
    %v488 = vsel %vm258, %v483, 0
    %490 = vmatprep.subr.bf16.mxu0 0
    %491 = vmatpush1.bf16.xpose.msra.mxu0 %v488
    %492 = vmatprep.subr.bf16.mxu0 0
    %493 = vmatpush1.bf16.xpose.msra.mxu0 0
    %494 = vmatprep.subr.bf16.mxu0 0
    %495 = vmatpush1.bf16.xpose.msra.mxu0 0
    %496 = vmatprep.subr.bf16.mxu0 0
    %497 = vmatpush1.bf16.xpose.msra.mxu0 0
    %498 = vmatprep.subr.bf16.mxu0 0
    %499 = vmatpush1.bf16.xpose.msra.mxu0 0
    %500 = vmatprep.subr.bf16.mxu0 0
    %501 = vmatpush1.bf16.xpose.msra.mxu0 0
    %502 = vmatprep.subr.bf16.mxu0 0
    %503 = vmatpush1.bf16.xpose.msra.mxu0 0
    %504 = vmatprep.subr.bf16.mxu0 0
    %505 = vmatpush1.bf16.xpose.msra.mxu0 0
    %506 = vmatprep.subr.bf16.mxu0 0
    %507 = vmatpush1.bf16.xpose.msra.mxu0 0
    %508 = vmatprep.subr.bf16.mxu0 0
    %509 = vmatpush1.bf16.xpose.msra.mxu0 0
    %510 = vmatprep.subr.bf16.mxu0 0
    %511 = vmatpush1.bf16.xpose.msra.mxu0 0
    %512 = vmatprep.subr.bf16.mxu0 0
    %513 = vmatpush1.bf16.xpose.msra.mxu0 0
    %514 = vmatprep.subr.bf16.mxu0 0
    %515 = vmatpush1.bf16.xpose.msra.mxu0 0
    %516 = vmatprep.subr.bf16.mxu0 0
    %517 = vmatpush1.bf16.xpose.msra.mxu0 0
    %518 = vmatprep.subr.bf16.mxu0 0
    %519 = vmatpush1.bf16.xpose.msra.mxu0 0
    %520 = vmatprep.subr.bf16.mxu0 0
    %521 = vmatpush1.bf16.xpose.msra.mxu0 0
    %522 = vmatprep.mubr.bf16.mxu0 0
    %523 = vmatmul.mubr.bf16.gmra.mrb[0].mxu0 %v485
    %v524 = vpop.f32.mrb[0].mxu0
    %v525 = vadd.f32 %v248, %v524
    %v526 = vpop.f32.mrb[0].mxu0
    %v527 = vpop.f32.mrb[0].mxu0
    %v528 = vpop.f32.mrb[0].mxu0
    %529 = vdwg.mxu0
    %530 = vrot.lane.b32.xlu0 %v238, 120
    %v531 = vpop.permute.xlu0 %530
    %532 = vrot.lane.b32.xlu0 %v305, 88
    %v533 = vpop.permute.xlu0 %532
    %v535 = vsel %vm258, %v531, 0
    %v538 = vsel %vm258, %v533, 0
    %540 = vmatprep.subr.bf16.mxu0 0
    %541 = vmatpush1.bf16.xpose.msra.mxu0 %v538
    %542 = vmatprep.subr.bf16.mxu0 0
    %543 = vmatpush1.bf16.xpose.msra.mxu0 0
    %544 = vmatprep.subr.bf16.mxu0 0
    %545 = vmatpush1.bf16.xpose.msra.mxu0 0
    %546 = vmatprep.subr.bf16.mxu0 0
    %547 = vmatpush1.bf16.xpose.msra.mxu0 0
    %548 = vmatprep.subr.bf16.mxu0 0
    %549 = vmatpush1.bf16.xpose.msra.mxu0 0
    %550 = vmatprep.subr.bf16.mxu0 0
    %551 = vmatpush1.bf16.xpose.msra.mxu0 0
    %552 = vmatprep.subr.bf16.mxu0 0
    %553 = vmatpush1.bf16.xpose.msra.mxu0 0
    %554 = vmatprep.subr.bf16.mxu0 0
    %555 = vmatpush1.bf16.xpose.msra.mxu0 0
    %556 = vmatprep.subr.bf16.mxu0 0
    %557 = vmatpush1.bf16.xpose.msra.mxu0 0
    %558 = vmatprep.subr.bf16.mxu0 0
    %559 = vmatpush1.bf16.xpose.msra.mxu0 0
    %560 = vmatprep.subr.bf16.mxu0 0
    %561 = vmatpush1.bf16.xpose.msra.mxu0 0
    %562 = vmatprep.subr.bf16.mxu0 0
    %563 = vmatpush1.bf16.xpose.msra.mxu0 0
    %564 = vmatprep.subr.bf16.mxu0 0
    %565 = vmatpush1.bf16.xpose.msra.mxu0 0
    %566 = vmatprep.subr.bf16.mxu0 0
    %567 = vmatpush1.bf16.xpose.msra.mxu0 0
    %568 = vmatprep.subr.bf16.mxu0 0
    %569 = vmatpush1.bf16.xpose.msra.mxu0 0
    %570 = vmatprep.subr.bf16.mxu0 0
    %571 = vmatpush1.bf16.xpose.msra.mxu0 0
    %572 = vmatprep.mubr.bf16.mxu0 0
    %573 = vmatmul.mubr.bf16.gmra.mrb[0].mxu0 %v535
    %v574 = vpop.f32.mrb[0].mxu0
    %v575 = vadd.f32 %v252, %v574
    %v576 = vpop.f32.mrb[0].mxu0
    %v577 = vpop.f32.mrb[0].mxu0
    %v578 = vpop.f32.mrb[0].mxu0
    %579 = vdwg.mxu0
    %v580 = vsel %vm258, %v525, -inf
    %581 = vmax.xlane.f32.xlu0 %v580
    %v582 = vpop.xlane.xlu0 %581
    %v583 = vsel %vm258, %v575, -inf
    %584 = vmax.xlane.f32.xlu0 %v583
    %v585 = vpop.xlane.xlu0 %584
    %v586 = vsub.f32 %v525, %v582
    %v587 = vsub.f32 %v575, %v585
    %v588 = vmul.f32 %v586, 1.442695
    %v589 = vpow.pop %v588
    %v590 = vmul.f32 %v587, 1.442695
    %v591 = vpow.pop %v590
    %v592 = vsel %vm258, %v589, 0.0
    %593 = vadd.xlane.f32.xlu0 %v592
    %v594 = vpop.xlane.xlu0 %593
    %v595 = vsel %vm258, %v591, 0.0
    %596 = vadd.xlane.f32.xlu0 %v595
    %v597 = vpop.xlane.xlu0 %596
    %v598 = vrcp.pop %v594
    %v599 = vrcp.pop %v597
    %v600 = vmul.f32 %v589, %v598
    %v601 = vmul.f32 %v591, %v599
    %v602 = vpack.c.bf16 %v600, %v600
    %v603 = vpack.c.bf16 %v601, %v601
    %604 = vrot.lane.b32.xlu0 %v255, 56
    %v605 = vpop.permute.xlu0 %604
    %v607 = vsel %vm258, %v602, 0
    %v610 = vsel %vm383, %v605, 0
    %612 = vmatprep.subr.bf16.mxu0 0
    %613 = vmatpush1.bf16.msra.mxu0 %v610
    %614 = vmatprep.subr.bf16.mxu0 0
    %615 = vmatpush1.bf16.msra.mxu0 0
    %616 = vmatprep.subr.bf16.mxu0 0
    %617 = vmatpush1.bf16.msra.mxu0 0
    %618 = vmatprep.subr.bf16.mxu0 0
    %619 = vmatpush1.bf16.msra.mxu0 0
    %620 = vmatprep.subr.bf16.mxu0 0
    %621 = vmatpush1.bf16.msra.mxu0 0
    %622 = vmatprep.subr.bf16.mxu0 0
    %623 = vmatpush1.bf16.msra.mxu0 0
    %624 = vmatprep.subr.bf16.mxu0 0
    %625 = vmatpush1.bf16.msra.mxu0 0
    %626 = vmatprep.subr.bf16.mxu0 0
    %627 = vmatpush1.bf16.msra.mxu0 0
    %628 = vmatprep.subr.bf16.mxu0 0
    %629 = vmatpush1.bf16.msra.mxu0 0
    %630 = vmatprep.subr.bf16.mxu0 0
    %631 = vmatpush1.bf16.msra.mxu0 0
    %632 = vmatprep.subr.bf16.mxu0 0
    %633 = vmatpush1.bf16.msra.mxu0 0
    %634 = vmatprep.subr.bf16.mxu0 0
    %635 = vmatpush1.bf16.msra.mxu0 0
    %636 = vmatprep.subr.bf16.mxu0 0
    %637 = vmatpush1.bf16.msra.mxu0 0
    %638 = vmatprep.subr.bf16.mxu0 0
    %639 = vmatpush1.bf16.msra.mxu0 0
    %640 = vmatprep.subr.bf16.mxu0 0
    %641 = vmatpush1.bf16.msra.mxu0 0
    %642 = vmatprep.subr.bf16.mxu0 0
    %643 = vmatpush1.bf16.msra.mxu0 0
    %644 = vmatprep.mubr.bf16.mxu0 0
    %645 = vmatmul.mubr.bf16.gmra.mrb[0].mxu0 %v607
    %v646 = vpop.f32.mrb[0].mxu0
    %v647 = vadd.f32 0.0, %v646
    %v648 = vpop.f32.mrb[0].mxu0
    %v649 = vpop.f32.mrb[0].mxu0
    %v650 = vpop.f32.mrb[0].mxu0
    %651 = vdwg.mxu0
    %652 = vrot.lane.b32.xlu0 %v305, 56
    %v653 = vpop.permute.xlu0 %652
    %v655 = vsel %vm258, %v603, 0
    %v658 = vsel %vm383, %v653, 0
    %660 = vmatprep.subr.bf16.mxu0 0
    %661 = vmatpush1.bf16.msra.mxu0 %v658
    %662 = vmatprep.subr.bf16.mxu0 0
    %663 = vmatpush1.bf16.msra.mxu0 0
    %664 = vmatprep.subr.bf16.mxu0 0
    %665 = vmatpush1.bf16.msra.mxu0 0
    %666 = vmatprep.subr.bf16.mxu0 0
    %667 = vmatpush1.bf16.msra.mxu0 0
    %668 = vmatprep.subr.bf16.mxu0 0
    %669 = vmatpush1.bf16.msra.mxu0 0
    %670 = vmatprep.subr.bf16.mxu0 0
    %671 = vmatpush1.bf16.msra.mxu0 0
    %672 = vmatprep.subr.bf16.mxu0 0
    %673 = vmatpush1.bf16.msra.mxu0 0
    %674 = vmatprep.subr.bf16.mxu0 0
    %675 = vmatpush1.bf16.msra.mxu0 0
    %676 = vmatprep.subr.bf16.mxu0 0
    %677 = vmatpush1.bf16.msra.mxu0 0
    %678 = vmatprep.subr.bf16.mxu0 0
    %679 = vmatpush1.bf16.msra.mxu0 0
    %680 = vmatprep.subr.bf16.mxu0 0
    %681 = vmatpush1.bf16.msra.mxu0 0
    %682 = vmatprep.subr.bf16.mxu0 0
    %683 = vmatpush1.bf16.msra.mxu0 0
    %684 = vmatprep.subr.bf16.mxu0 0
    %685 = vmatpush1.bf16.msra.mxu0 0
    %686 = vmatprep.subr.bf16.mxu0 0
    %687 = vmatpush1.bf16.msra.mxu0 0
    %688 = vmatprep.subr.bf16.mxu0 0
    %689 = vmatpush1.bf16.msra.mxu0 0
    %690 = vmatprep.subr.bf16.mxu0 0
    %691 = vmatpush1.bf16.msra.mxu0 0
    %692 = vmatprep.mubr.bf16.mxu0 0
    %693 = vmatmul.mubr.bf16.gmra.mrb[0].mxu0 %v655
    %v694 = vpop.f32.mrb[0].mxu0
    %v695 = vadd.f32 0.0, %v694
    %v696 = vpop.f32.mrb[0].mxu0
    %v697 = vpop.f32.mrb[0].mxu0
    %v698 = vpop.f32.mrb[0].mxu0
    %699 = vdwg.mxu0
    %v700 = vpack.c.bf16 %v647, %v647
    %v701 = vpack.c.bf16 %v695, %v695
    %v704 = vunpack.c.l.b16 %v700
    %v705 = vunpack.c.l.b16 %v701
    %v706 = vpack.c.b16 %v704, %v704
    %v707 = vpack.c.b16 %v705, %v705
    %708 = vrot.lane.b32.xlu0 %v706, 8
    %v709 = vpop.permute.xlu0 %708
    %710 = vrot.lane.b32.xlu0 %v707, 8
    %v711 = vpop.permute.xlu0 %710
    %vm714 = vcmask 126016
    %715 = vst.msk [vmem:[#allocation2] sm:$0xf] %vm714, %v709
    %716 = vst.msk [vmem:[#allocation2 + $0x4] sm:$0xf] %vm714, %v711
    %717 = vrot.lane.b32.xlu0 %v237, 112
    %v718 = vpop.permute.xlu0 %717
    %719 = vrot.lane.b32.xlu0 %v255, 80
    %v720 = vpop.permute.xlu0 %719
    %v722 = vsel %vm258, %v718, 0
    %v725 = vsel %vm258, %v720, 0
    %727 = vmatprep.subr.bf16.mxu0 0
    %728 = vmatpush1.bf16.xpose.msra.mxu0 %v725
    %729 = vmatprep.subr.bf16.mxu0 0
    %730 = vmatpush1.bf16.xpose.msra.mxu0 0
    %731 = vmatprep.subr.bf16.mxu0 0
    %732 = vmatpush1.bf16.xpose.msra.mxu0 0
    %733 = vmatprep.subr.bf16.mxu0 0
    %734 = vmatpush1.bf16.xpose.msra.mxu0 0
    %735 = vmatprep.subr.bf16.mxu0 0
    %736 = vmatpush1.bf16.xpose.msra.mxu0 0
    %737 = vmatprep.subr.bf16.mxu0 0
    %738 = vmatpush1.bf16.xpose.msra.mxu0 0
    %739 = vmatprep.subr.bf16.mxu0 0
    %740 = vmatpush1.bf16.xpose.msra.mxu0 0
    %741 = vmatprep.subr.bf16.mxu0 0
    %742 = vmatpush1.bf16.xpose.msra.mxu0 0
    %743 = vmatprep.subr.bf16.mxu0 0
    %744 = vmatpush1.bf16.xpose.msra.mxu0 0
    %745 = vmatprep.subr.bf16.mxu0 0
    %746 = vmatpush1.bf16.xpose.msra.mxu0 0
    %747 = vmatprep.subr.bf16.mxu0 0
    %748 = vmatpush1.bf16.xpose.msra.mxu0 0
    %749 = vmatprep.subr.bf16.mxu0 0
    %750 = vmatpush1.bf16.xpose.msra.mxu0 0
    %751 = vmatprep.subr.bf16.mxu0 0
    %752 = vmatpush1.bf16.xpose.msra.mxu0 0
    %753 = vmatprep.subr.bf16.mxu0 0
    %754 = vmatpush1.bf16.xpose.msra.mxu0 0
    %755 = vmatprep.subr.bf16.mxu0 0
    %756 = vmatpush1.bf16.xpose.msra.mxu0 0
    %757 = vmatprep.subr.bf16.mxu0 0
    %758 = vmatpush1.bf16.xpose.msra.mxu0 0
    %759 = vmatprep.mubr.bf16.mxu0 0
    %760 = vmatmul.mubr.bf16.gmra.mrb[0].mxu0 %v722
    %v761 = vpop.f32.mrb[0].mxu0
    %v762 = vadd.f32 %v248, %v761
    %v763 = vpop.f32.mrb[0].mxu0
    %v764 = vpop.f32.mrb[0].mxu0
    %v765 = vpop.f32.mrb[0].mxu0
    %766 = vdwg.mxu0
    %767 = vrot.lane.b32.xlu0 %v238, 112
    %v768 = vpop.permute.xlu0 %767
    %769 = vrot.lane.b32.xlu0 %v305, 80
    %v770 = vpop.permute.xlu0 %769
    %v772 = vsel %vm258, %v768, 0
    %v775 = vsel %vm258, %v770, 0
    %777 = vmatprep.subr.bf16.mxu0 0
    %778 = vmatpush1.bf16.xpose.msra.mxu0 %v775
    %779 = vmatprep.subr.bf16.mxu0 0
    %780 = vmatpush1.bf16.xpose.msra.mxu0 0
    %781 = vmatprep.subr.bf16.mxu0 0
    %782 = vmatpush1.bf16.xpose.msra.mxu0 0
    %783 = vmatprep.subr.bf16.mxu0 0
    %784 = vmatpush1.bf16.xpose.msra.mxu0 0
    %785 = vmatprep.subr.bf16.mxu0 0
    %786 = vmatpush1.bf16.xpose.msra.mxu0 0
    %787 = vmatprep.subr.bf16.mxu0 0
    %788 = vmatpush1.bf16.xpose.msra.mxu0 0
    %789 = vmatprep.subr.bf16.mxu0 0
    %790 = vmatpush1.bf16.xpose.msra.mxu0 0
    %791 = vmatprep.subr.bf16.mxu0 0
    %792 = vmatpush1.bf16.xpose.msra.mxu0 0
    %793 = vmatprep.subr.bf16.mxu0 0
    %794 = vmatpush1.bf16.xpose.msra.mxu0 0
    %795 = vmatprep.subr.bf16.mxu0 0
    %796 = vmatpush1.bf16.xpose.msra.mxu0 0
    %797 = vmatprep.subr.bf16.mxu0 0
    %798 = vmatpush1.bf16.xpose.msra.mxu0 0
    %799 = vmatprep.subr.bf16.mxu0 0
    %800 = vmatpush1.bf16.xpose.msra.mxu0 0
    %801 = vmatprep.subr.bf16.mxu0 0
    %802 = vmatpush1.bf16.xpose.msra.mxu0 0
    %803 = vmatprep.subr.bf16.mxu0 0
    %804 = vmatpush1.bf16.xpose.msra.mxu0 0
    %805 = vmatprep.subr.bf16.mxu0 0
    %806 = vmatpush1.bf16.xpose.msra.mxu0 0
    %807 = vmatprep.subr.bf16.mxu0 0
    %808 = vmatpush1.bf16.xpose.msra.mxu0 0
    %809 = vmatprep.mubr.bf16.mxu0 0
    %810 = vmatmul.mubr.bf16.gmra.mrb[0].mxu0 %v772
    %v811 = vpop.f32.mrb[0].mxu0
    %v812 = vadd.f32 %v252, %v811
    %v813 = vpop.f32.mrb[0].mxu0
    %v814 = vpop.f32.mrb[0].mxu0
    %v815 = vpop.f32.mrb[0].mxu0
    %816 = vdwg.mxu0
    %v817 = vsel %vm258, %v762, -inf
    %818 = vmax.xlane.f32.xlu0 %v817
    %v819 = vpop.xlane.xlu0 %818
    %v820 = vsel %vm258, %v812, -inf
    %821 = vmax.xlane.f32.xlu0 %v820
    %v822 = vpop.xlane.xlu0 %821
    %v823 = vsub.f32 %v762, %v819
    %v824 = vsub.f32 %v812, %v822
    %v825 = vmul.f32 %v823, 1.442695
    %v826 = vpow.pop %v825
    %v827 = vmul.f32 %v824, 1.442695
    %v828 = vpow.pop %v827
    %v829 = vsel %vm258, %v826, 0.0
    %830 = vadd.xlane.f32.xlu0 %v829
    %v831 = vpop.xlane.xlu0 %830
    %v832 = vsel %vm258, %v828, 0.0
    %833 = vadd.xlane.f32.xlu0 %v832
    %v834 = vpop.xlane.xlu0 %833
    %v835 = vrcp.pop %v831
    %v836 = vrcp.pop %v834
    %v837 = vmul.f32 %v826, %v835
    %v838 = vmul.f32 %v828, %v836
    %v839 = vpack.c.bf16 %v837, %v837
    %v840 = vpack.c.bf16 %v838, %v838
    %841 = vrot.lane.b32.xlu0 %v255, 48
    %v842 = vpop.permute.xlu0 %841
    %v844 = vsel %vm258, %v839, 0
    %v847 = vsel %vm383, %v842, 0
    %849 = vmatprep.subr.bf16.mxu0 0
    %850 = vmatpush1.bf16.msra.mxu0 %v847
    %851 = vmatprep.subr.bf16.mxu0 0
    %852 = vmatpush1.bf16.msra.mxu0 0
    %853 = vmatprep.subr.bf16.mxu0 0
    %854 = vmatpush1.bf16.msra.mxu0 0
    %855 = vmatprep.subr.bf16.mxu0 0
    %856 = vmatpush1.bf16.msra.mxu0 0
    %857 = vmatprep.subr.bf16.mxu0 0
    %858 = vmatpush1.bf16.msra.mxu0 0
    %859 = vmatprep.subr.bf16.mxu0 0
    %860 = vmatpush1.bf16.msra.mxu0 0
    %861 = vmatprep.subr.bf16.mxu0 0
    %862 = vmatpush1.bf16.msra.mxu0 0
    %863 = vmatprep.subr.bf16.mxu0 0
    %864 = vmatpush1.bf16.msra.mxu0 0
    %865 = vmatprep.subr.bf16.mxu0 0
    %866 = vmatpush1.bf16.msra.mxu0 0
    %867 = vmatprep.subr.bf16.mxu0 0
    %868 = vmatpush1.bf16.msra.mxu0 0
    %869 = vmatprep.subr.bf16.mxu0 0
    %870 = vmatpush1.bf16.msra.mxu0 0
    %871 = vmatprep.subr.bf16.mxu0 0
    %872 = vmatpush1.bf16.msra.mxu0 0
    %873 = vmatprep.subr.bf16.mxu0 0
    %874 = vmatpush1.bf16.msra.mxu0 0
    %875 = vmatprep.subr.bf16.mxu0 0
    %876 = vmatpush1.bf16.msra.mxu0 0
    %877 = vmatprep.subr.bf16.mxu0 0
    %878 = vmatpush1.bf16.msra.mxu0 0
    %879 = vmatprep.subr.bf16.mxu0 0
    %880 = vmatpush1.bf16.msra.mxu0 0
    %881 = vmatprep.mubr.bf16.mxu0 0
    %882 = vmatmul.mubr.bf16.gmra.mrb[0].mxu0 %v844
    %v883 = vpop.f32.mrb[0].mxu0
    %v884 = vadd.f32 0.0, %v883
    %v885 = vpop.f32.mrb[0].mxu0
    %v886 = vpop.f32.mrb[0].mxu0
    %v887 = vpop.f32.mrb[0].mxu0
    %888 = vdwg.mxu0
    %889 = vrot.lane.b32.xlu0 %v305, 48
    %v890 = vpop.permute.xlu0 %889
    %v892 = vsel %vm258, %v840, 0
    %v895 = vsel %vm383, %v890, 0
    %897 = vmatprep.subr.bf16.mxu0 0
    %898 = vmatpush1.bf16.msra.mxu0 %v895
    %899 = vmatprep.subr.bf16.mxu0 0
    %900 = vmatpush1.bf16.msra.mxu0 0
    %901 = vmatprep.subr.bf16.mxu0 0
    %902 = vmatpush1.bf16.msra.mxu0 0
    %903 = vmatprep.subr.bf16.mxu0 0
    %904 = vmatpush1.bf16.msra.mxu0 0
    %905 = vmatprep.subr.bf16.mxu0 0
    %906 = vmatpush1.bf16.msra.mxu0 0
    %907 = vmatprep.subr.bf16.mxu0 0
    %908 = vmatpush1.bf16.msra.mxu0 0
    %909 = vmatprep.subr.bf16.mxu0 0
    %910 = vmatpush1.bf16.msra.mxu0 0
    %911 = vmatprep.subr.bf16.mxu0 0
    %912 = vmatpush1.bf16.msra.mxu0 0
    %913 = vmatprep.subr.bf16.mxu0 0
    %914 = vmatpush1.bf16.msra.mxu0 0
    %915 = vmatprep.subr.bf16.mxu0 0
    %916 = vmatpush1.bf16.msra.mxu0 0
    %917 = vmatprep.subr.bf16.mxu0 0
    %918 = vmatpush1.bf16.msra.mxu0 0
    %919 = vmatprep.subr.bf16.mxu0 0
    %920 = vmatpush1.bf16.msra.mxu0 0
    %921 = vmatprep.subr.bf16.mxu0 0
    %922 = vmatpush1.bf16.msra.mxu0 0
    %923 = vmatprep.subr.bf16.mxu0 0
    %924 = vmatpush1.bf16.msra.mxu0 0
    %925 = vmatprep.subr.bf16.mxu0 0
    %926 = vmatpush1.bf16.msra.mxu0 0
    %927 = vmatprep.subr.bf16.mxu0 0
    %928 = vmatpush1.bf16.msra.mxu0 0
    %929 = vmatprep.mubr.bf16.mxu0 0
    %930 = vmatmul.mubr.bf16.gmra.mrb[0].mxu0 %v892
    %v931 = vpop.f32.mrb[0].mxu0
    %v932 = vadd.f32 0.0, %v931
    %v933 = vpop.f32.mrb[0].mxu0
    %v934 = vpop.f32.mrb[0].mxu0
    %v935 = vpop.f32.mrb[0].mxu0
    %936 = vdwg.mxu0
    %v937 = vpack.c.bf16 %v884, %v884
    %v938 = vpack.c.bf16 %v932, %v932
    %v941 = vunpack.c.l.b16 %v937
    %v942 = vunpack.c.l.b16 %v938
    %v943 = vpack.c.b16 %v941, %v941
    %v944 = vpack.c.b16 %v942, %v942
    %945 = vrot.lane.b32.xlu0 %v943, 16
    %v946 = vpop.permute.xlu0 %945
    %947 = vrot.lane.b32.xlu0 %v944, 16
    %v948 = vpop.permute.xlu0 %947
    %vm951 = vcmask 191616
    %952 = vst.msk [vmem:[#allocation2] sm:$0xf] %vm951, %v946
    %953 = vst.msk [vmem:[#allocation2 + $0x4] sm:$0xf] %vm951, %v948
    %954 = vrot.lane.b32.xlu0 %v237, 104
    %v955 = vpop.permute.xlu0 %954
    %956 = vrot.lane.b32.xlu0 %v255, 72
    %v957 = vpop.permute.xlu0 %956
    %v959 = vsel %vm258, %v955, 0
    %v962 = vsel %vm258, %v957, 0
    %964 = vmatprep.subr.bf16.mxu0 0
    %965 = vmatpush1.bf16.xpose.msra.mxu0 %v962
    %966 = vmatprep.subr.bf16.mxu0 0
    %967 = vmatpush1.bf16.xpose.msra.mxu0 0
    %968 = vmatprep.subr.bf16.mxu0 0
    %969 = vmatpush1.bf16.xpose.msra.mxu0 0
    %970 = vmatprep.subr.bf16.mxu0 0
    %971 = vmatpush1.bf16.xpose.msra.mxu0 0
    %972 = vmatprep.subr.bf16.mxu0 0
    %973 = vmatpush1.bf16.xpose.msra.mxu0 0
    %974 = vmatprep.subr.bf16.mxu0 0
    %975 = vmatpush1.bf16.xpose.msra.mxu0 0
    %976 = vmatprep.subr.bf16.mxu0 0
    %977 = vmatpush1.bf16.xpose.msra.mxu0 0
    %978 = vmatprep.subr.bf16.mxu0 0
    %979 = vmatpush1.bf16.xpose.msra.mxu0 0
    %980 = vmatprep.subr.bf16.mxu0 0
    %981 = vmatpush1.bf16.xpose.msra.mxu0 0
    %982 = vmatprep.subr.bf16.mxu0 0
    %983 = vmatpush1.bf16.xpose.msra.mxu0 0
    %984 = vmatprep.subr.bf16.mxu0 0
    %985 = vmatpush1.bf16.xpose.msra.mxu0 0
    %986 = vmatprep.subr.bf16.mxu0 0
    %987 = vmatpush1.bf16.xpose.msra.mxu0 0
    %988 = vmatprep.subr.bf16.mxu0 0
    %989 = vmatpush1.bf16.xpose.msra.mxu0 0
    %990 = vmatprep.subr.bf16.mxu0 0
    %991 = vmatpush1.bf16.xpose.msra.mxu0 0
    %992 = vmatprep.subr.bf16.mxu0 0
    %993 = vmatpush1.bf16.xpose.msra.mxu0 0
    %994 = vmatprep.subr.bf16.mxu0 0
    %995 = vmatpush1.bf16.xpose.msra.mxu0 0
    %996 = vmatprep.mubr.bf16.mxu0 0
    %997 = vmatmul.mubr.bf16.gmra.mrb[0].mxu0 %v959
    %v998 = vpop.f32.mrb[0].mxu0
    %v999 = vadd.f32 %v248, %v998
    %v1000 = vpop.f32.mrb[0].mxu0
    %v1001 = vpop.f32.mrb[0].mxu0
    %v1002 = vpop.f32.mrb[0].mxu0
    %1003 = vdwg.mxu0
    %1004 = vrot.lane.b32.xlu0 %v238, 104
    %v1005 = vpop.permute.xlu0 %1004
    %1006 = vrot.lane.b32.xlu0 %v305, 72
    %v1007 = vpop.permute.xlu0 %1006
    %v1009 = vsel %vm258, %v1005, 0
    %v1012 = vsel %vm258, %v1007, 0
    %1014 = vmatprep.subr.bf16.mxu0 0
    %1015 = vmatpush1.bf16.xpose.msra.mxu0 %v1012
    %1016 = vmatprep.subr.bf16.mxu0 0
    %1017 = vmatpush1.bf16.xpose.msra.mxu0 0
    %1018 = vmatprep.subr.bf16.mxu0 0
    %1019 = vmatpush1.bf16.xpose.msra.mxu0 0
    %1020 = vmatprep.subr.bf16.mxu0 0
    %1021 = vmatpush1.bf16.xpose.msra.mxu0 0
    %1022 = vmatprep.subr.bf16.mxu0 0
    %1023 = vmatpush1.bf16.xpose.msra.mxu0 0
    %1024 = vmatprep.subr.bf16.mxu0 0
    %1025 = vmatpush1.bf16.xpose.msra.mxu0 0
    %1026 = vmatprep.subr.bf16.mxu0 0
    %1027 = vmatpush1.bf16.xpose.msra.mxu0 0
    %1028 = vmatprep.subr.bf16.mxu0 0
    %1029 = vmatpush1.bf16.xpose.msra.mxu0 0
    %1030 = vmatprep.subr.bf16.mxu0 0
    %1031 = vmatpush1.bf16.xpose.msra.mxu0 0
    %1032 = vmatprep.subr.bf16.mxu0 0
    %1033 = vmatpush1.bf16.xpose.msra.mxu0 0
    %1034 = vmatprep.subr.bf16.mxu0 0
    %1035 = vmatpush1.bf16.xpose.msra.mxu0 0
    %1036 = vmatprep.subr.bf16.mxu0 0
    %1037 = vmatpush1.bf16.xpose.msra.mxu0 0
    %1038 = vmatprep.subr.bf16.mxu0 0
    %1039 = vmatpush1.bf16.xpose.msra.mxu0 0
    %1040 = vmatprep.subr.bf16.mxu0 0
    %1041 = vmatpush1.bf16.xpose.msra.mxu0 0
    %1042 = vmatprep.subr.bf16.mxu0 0
    %1043 = vmatpush1.bf16.xpose.msra.mxu0 0
    %1044 = vmatprep.subr.bf16.mxu0 0
    %1045 = vmatpush1.bf16.xpose.msra.mxu0 0
    %1046 = vmatprep.mubr.bf16.mxu0 0
    %1047 = vmatmul.mubr.bf16.gmra.mrb[0].mxu0 %v1009
    %v1048 = vpop.f32.mrb[0].mxu0
    %v1049 = vadd.f32 %v252, %v1048
    %v1050 = vpop.f32.mrb[0].mxu0
    %v1051 = vpop.f32.mrb[0].mxu0
    %v1052 = vpop.f32.mrb[0].mxu0
    %1053 = vdwg.mxu0
    %v1054 = vsel %vm258, %v999, -inf
    %1055 = vmax.xlane.f32.xlu0 %v1054
    %v1056 = vpop.xlane.xlu0 %1055
    %v1057 = vsel %vm258, %v1049, -inf
    %1058 = vmax.xlane.f32.xlu0 %v1057
    %v1059 = vpop.xlane.xlu0 %1058
    %v1060 = vsub.f32 %v999, %v1056
    %v1061 = vsub.f32 %v1049, %v1059
    %v1062 = vmul.f32 %v1060, 1.442695
    %v1063 = vpow.pop %v1062
    %v1064 = vmul.f32 %v1061, 1.442695
    %v1065 = vpow.pop %v1064
    %v1066 = vsel %vm258, %v1063, 0.0
    %1067 = vadd.xlane.f32.xlu0 %v1066
    %v1068 = vpop.xlane.xlu0 %1067
    %v1069 = vsel %vm258, %v1065, 0.0
    %1070 = vadd.xlane.f32.xlu0 %v1069
    %v1071 = vpop.xlane.xlu0 %1070
    %v1072 = vrcp.pop %v1068
    %v1073 = vrcp.pop %v1071
    %v1074 = vmul.f32 %v1063, %v1072
    %v1075 = vmul.f32 %v1065, %v1073
    %v1076 = vpack.c.bf16 %v1074, %v1074
    %v1077 = vpack.c.bf16 %v1075, %v1075
    %1078 = vrot.lane.b32.xlu0 %v255, 40
    %v1079 = vpop.permute.xlu0 %1078
    %v1081 = vsel %vm258, %v1076, 0
    %v1084 = vsel %vm383, %v1079, 0
    %1086 = vmatprep.subr.bf16.mxu0 0
    %1087 = vmatpush1.bf16.msra.mxu0 %v1084
    %1088 = vmatprep.subr.bf16.mxu0 0
    %1089 = vmatpush1.bf16.msra.mxu0 0
    %1090 = vmatprep.subr.bf16.mxu0 0
    %1091 = vmatpush1.bf16.msra.mxu0 0
    %1092 = vmatprep.subr.bf16.mxu0 0
    %1093 = vmatpush1.bf16.msra.mxu0 0
    %1094 = vmatprep.subr.bf16.mxu0 0
    %1095 = vmatpush1.bf16.msra.mxu0 0
    %1096 = vmatprep.subr.bf16.mxu0 0
    %1097 = vmatpush1.bf16.msra.mxu0 0
    %1098 = vmatprep.subr.bf16.mxu0 0
    %1099 = vmatpush1.bf16.msra.mxu0 0
    %1100 = vmatprep.subr.bf16.mxu0 0
    %1101 = vmatpush1.bf16.msra.mxu0 0
    %1102 = vmatprep.subr.bf16.mxu0 0
    %1103 = vmatpush1.bf16.msra.mxu0 0
    %1104 = vmatprep.subr.bf16.mxu0 0
    %1105 = vmatpush1.bf16.msra.mxu0 0
    %1106 = vmatprep.subr.bf16.mxu0 0
    %1107 = vmatpush1.bf16.msra.mxu0 0
    %1108 = vmatprep.subr.bf16.mxu0 0
    %1109 = vmatpush1.bf16.msra.mxu0 0
    %1110 = vmatprep.subr.bf16.mxu0 0
    %1111 = vmatpush1.bf16.msra.mxu0 0
    %1112 = vmatprep.subr.bf16.mxu0 0
    %1113 = vmatpush1.bf16.msra.mxu0 0
    %1114 = vmatprep.subr.bf16.mxu0 0
    %1115 = vmatpush1.bf16.msra.mxu0 0
    %1116 = vmatprep.subr.bf16.mxu0 0
    %1117 = vmatpush1.bf16.msra.mxu0 0
    %1118 = vmatprep.mubr.bf16.mxu0 0
    %1119 = vmatmul.mubr.bf16.gmra.mrb[0].mxu0 %v1081
    %v1120 = vpop.f32.mrb[0].mxu0
    %v1121 = vadd.f32 0.0, %v1120
    %v1122 = vpop.f32.mrb[0].mxu0
    %v1123 = vpop.f32.mrb[0].mxu0
    %v1124 = vpop.f32.mrb[0].mxu0
    %1125 = vdwg.mxu0
    %1126 = vrot.lane.b32.xlu0 %v305, 40
    %v1127 = vpop.permute.xlu0 %1126
    %v1129 = vsel %vm258, %v1077, 0
    %v1132 = vsel %vm383, %v1127, 0
    %1134 = vmatprep.subr.bf16.mxu0 0
    %1135 = vmatpush1.bf16.msra.mxu0 %v1132
    %1136 = vmatprep.subr.bf16.mxu0 0
    %1137 = vmatpush1.bf16.msra.mxu0 0
    %1138 = vmatprep.subr.bf16.mxu0 0
    %1139 = vmatpush1.bf16.msra.mxu0 0
    %1140 = vmatprep.subr.bf16.mxu0 0
    %1141 = vmatpush1.bf16.msra.mxu0 0
    %1142 = vmatprep.subr.bf16.mxu0 0
    %1143 = vmatpush1.bf16.msra.mxu0 0
    %1144 = vmatprep.subr.bf16.mxu0 0
    %1145 = vmatpush1.bf16.msra.mxu0 0
    %1146 = vmatprep.subr.bf16.mxu0 0
    %1147 = vmatpush1.bf16.msra.mxu0 0
    %1148 = vmatprep.subr.bf16.mxu0 0
    %1149 = vmatpush1.bf16.msra.mxu0 0
    %1150 = vmatprep.subr.bf16.mxu0 0
    %1151 = vmatpush1.bf16.msra.mxu0 0
    %1152 = vmatprep.subr.bf16.mxu0 0
    %1153 = vmatpush1.bf16.msra.mxu0 0
    %1154 = vmatprep.subr.bf16.mxu0 0
    %1155 = vmatpush1.bf16.msra.mxu0 0
    %1156 = vmatprep.subr.bf16.mxu0 0
    %1157 = vmatpush1.bf16.msra.mxu0 0
    %1158 = vmatprep.subr.bf16.mxu0 0
    %1159 = vmatpush1.bf16.msra.mxu0 0
    %1160 = vmatprep.subr.bf16.mxu0 0
    %1161 = vmatpush1.bf16.msra.mxu0 0
    %1162 = vmatprep.subr.bf16.mxu0 0
    %1163 = vmatpush1.bf16.msra.mxu0 0
    %1164 = vmatprep.subr.bf16.mxu0 0
    %1165 = vmatpush1.bf16.msra.mxu0 0
    %1166 = vmatprep.mubr.bf16.mxu0 0
    %1167 = vmatmul.mubr.bf16.gmra.mrb[0].mxu0 %v1129
    %v1168 = vpop.f32.mrb[0].mxu0
    %v1169 = vadd.f32 0.0, %v1168
    %v1170 = vpop.f32.mrb[0].mxu0
    %v1171 = vpop.f32.mrb[0].mxu0
    %v1172 = vpop.f32.mrb[0].mxu0
    %1173 = vdwg.mxu0
    %v1174 = vpack.c.bf16 %v1121, %v1121
    %v1175 = vpack.c.bf16 %v1169, %v1169
    %v1178 = vunpack.c.l.b16 %v1174
    %v1179 = vunpack.c.l.b16 %v1175
    %v1180 = vpack.c.b16 %v1178, %v1178
    %v1181 = vpack.c.b16 %v1179, %v1179
    %1182 = vrot.lane.b32.xlu0 %v1180, 24
    %v1183 = vpop.permute.xlu0 %1182
    %1184 = vrot.lane.b32.xlu0 %v1181, 24
    %v1185 = vpop.permute.xlu0 %1184
    %vm1188 = vcmask 257216
    %1189 = vst.msk [vmem:[#allocation2] sm:$0xf] %vm1188, %v1183
    %1190 = vst.msk [vmem:[#allocation2 + $0x4] sm:$0xf] %vm1188, %v1185
    %v1191 = vld [vmem:[#allocation2] sm:$0xf]
    %v1192 = vld [vmem:[#allocation2 + $0x4] sm:$0xf]
    %v1193 = vld [vmem:[%s4] sm:$0xf]
    %v1194 = vld [vmem:[%s4 + $0x4] sm:$0xf]
    %v1195 = vld [vmem:[%s4 + $0x8] sm:$0xf]
    %v1196 = vld [vmem:[%s4 + $0xc] sm:$0xf]
    %v1197 = vld [vmem:[%s5] sm:$0x1]
    %v1199 = vlaneseq
    %v1200 = vshrl.u32 %v1199, 7
    %v1201 = vsub.s32 0, %v1200
    %v1202 = vrot.slane %v1197, %v1201
    %v1206 = vunpack.c.l.b16 %v1191
    %v1207 = vunpack.c.l.b16 %v1192
    %v1208 = vpack.c.b16 %v1207, %v1206
    %v1213 = vunpack.c.l.b16 %v1193
    %v1214 = vunpack.c.l.b16 %v1194
    %v1215 = vunpack.c.l.b16 %v1195
    %v1216 = vunpack.c.l.b16 %v1196
    %v1217 = vpack.c.b16 %v1214, %v1213
    %v1218 = vpack.c.b16 %v1216, %v1215
    %v1222 = vsel %vm117, %v1208, 0
    %1224 = vmatprep.subr.bf16.mxu0 0
    %1225 = vmatpush1.bf16.msra.mxu0 %v1217
    %1226 = vmatprep.subr.bf16.mxu0 0
    %1227 = vmatpush1.bf16.msra.mxu0 %v1218
    %1228 = vmatprep.subr.bf16.mxu0 0
    %1229 = vmatpush1.bf16.msra.mxu0 0
    %1230 = vmatprep.subr.bf16.mxu0 0
    %1231 = vmatpush1.bf16.msra.mxu0 0
    %1232 = vmatprep.subr.bf16.mxu0 0
    %1233 = vmatpush1.bf16.msra.mxu0 0
    %1234 = vmatprep.subr.bf16.mxu0 0
    %1235 = vmatpush1.bf16.msra.mxu0 0
    %1236 = vmatprep.subr.bf16.mxu0 0
    %1237 = vmatpush1.bf16.msra.mxu0 0
    %1238 = vmatprep.subr.bf16.mxu0 0
    %1239 = vmatpush1.bf16.msra.mxu0 0
    %1240 = vmatprep.subr.bf16.mxu0 0
    %1241 = vmatpush1.bf16.msra.mxu0 0
    %1242 = vmatprep.subr.bf16.mxu0 0
    %1243 = vmatpush1.bf16.msra.mxu0 0
    %1244 = vmatprep.subr.bf16.mxu0 0
    %1245 = vmatpush1.bf16.msra.mxu0 0
    %1246 = vmatprep.subr.bf16.mxu0 0
    %1247 = vmatpush1.bf16.msra.mxu0 0
    %1248 = vmatprep.subr.bf16.mxu0 0
    %1249 = vmatpush1.bf16.msra.mxu0 0
    %1250 = vmatprep.subr.bf16.mxu0 0
    %1251 = vmatpush1.bf16.msra.mxu0 0
    %1252 = vmatprep.subr.bf16.mxu0 0
    %1253 = vmatpush1.bf16.msra.mxu0 0
    %1254 = vmatprep.subr.bf16.mxu0 0
    %1255 = vmatpush1.bf16.msra.mxu0 0
    %1256 = vmatprep.mubr.bf16.mxu0 0
    %1257 = vmatmul.mubr.bf16.gmra.mrb[0].mxu0 %v1222
    %v1258 = vpop.f32.mrb[0].mxu0
    %v1259 = vadd.f32 %v1202, %v1258
    %v1260 = vpop.f32.mrb[0].mxu0
    %v1261 = vpop.f32.mrb[0].mxu0
    %v1262 = vadd.f32 %v1202, %v1261
    %v1263 = vpop.f32.mrb[0].mxu0
    %1264 = vdwg.mxu0
    %v1265 = vadd.f32 %v109, %v1259
    %v1266 = vadd.f32 %v110, %v1262
    %v1267 = vsel %vm117, %v1265, 0.0
    %1268 = vadd.xlane.f32.xlu0 %v1267
    %v1269 = vpop.xlane.xlu0 %1268
    %v1270 = vsel %vm117, %v1266, 0.0
    %1271 = vadd.xlane.f32.xlu0 %v1270
    %v1272 = vpop.xlane.xlu0 %1271
    %v1273 = vmul.f32 %v1269, %v124
    %v1274 = vmul.f32 %v1272, %v124
    %v1275 = vsub.f32 %v1265, %v1273
    %v1276 = vsub.f32 %v1266, %v1274
    %v1277 = vmul.f32 %v1275, %v1275
    %v1278 = vmul.f32 %v1276, %v1276
    %v1279 = vsel %vm117, %v1277, 0.0
    %1280 = vadd.xlane.f32.xlu0 %v1279
    %v1281 = vpop.xlane.xlu0 %1280
    %v1282 = vsel %vm117, %v1278, 0.0
    %1283 = vadd.xlane.f32.xlu0 %v1282
    %v1284 = vpop.xlane.xlu0 %1283
    %v1285 = vmul.f32 %v1281, %v124
    %v1286 = vmul.f32 %v1284, %v124
    %v1287 = vadd.f32 %v1285, 1e-06
    %v1288 = vadd.f32 %v1286, 1e-06
    %v1289 = vrsqrt.pop %v1287
    %v1290 = vrsqrt.pop %v1288
    %v1291 = vmul.f32 %v1275, %v1289
    %v1292 = vmul.f32 %v1276, %v1290
    %v1293 = vld [vmem:[#allocation9] sm:$0x1]
    %v1295 = vlaneseq
    %v1296 = vshrl.u32 %v1295, 7
    %v1297 = vsub.s32 0, %v1296
    %v1298 = vrot.slane %v1293, %v1297
    %v1300 = vmul.f32 %v1291, %v1298
    %v1301 = vmul.f32 %v1292, %v1298
    %v1302 = vld [vmem:[#allocation11] sm:$0x1]
    %v1304 = vlaneseq
    %v1305 = vshrl.u32 %v1304, 7
    %v1306 = vsub.s32 0, %v1305
    %v1307 = vrot.slane %v1302, %v1306
    %v1309 = vadd.f32 %v1300, %v1307
    %v1310 = vadd.f32 %v1301, %v1307
    %v1311 = vpack.c.bf16 %v1310, %v1309
    %v1312 = vld [vmem:[%s10] sm:$0xf]
    %v1313 = vld [vmem:[%s10 + $0x4] sm:$0xf]
    %v1314 = vld [vmem:[%s10 + $0x8] sm:$0xf]
    %v1315 = vld [vmem:[%s10 + $0xc] sm:$0xf]
    %v1316 = vld [vmem:[%s11] sm:$0x1]
    %v1318 = vlaneseq
    %v1319 = vshrl.u32 %v1318, 7
    %v1320 = vsub.s32 0, %v1319
    %v1321 = vrot.slane %v1316, %v1320
    %v1327 = vunpack.c.l.b16 %v1312
    %v1328 = vunpack.c.l.b16 %v1313
    %v1329 = vunpack.c.l.b16 %v1314
    %v1330 = vunpack.c.l.b16 %v1315
    %v1331 = vpack.c.b16 %v1328, %v1327
    %v1332 = vpack.c.b16 %v1330, %v1329
    %v1336 = vsel %vm117, %v1311, 0
    %1338 = vmatprep.subr.bf16.mxu0 0
    %1339 = vmatpush1.bf16.msra.mxu0 %v1331
    %1340 = vmatprep.subr.bf16.mxu0 0
    %1341 = vmatpush1.bf16.msra.mxu0 %v1332
    %1342 = vmatprep.subr.bf16.mxu0 0
    %1343 = vmatpush1.bf16.msra.mxu0 0
    %1344 = vmatprep.subr.bf16.mxu0 0
    %1345 = vmatpush1.bf16.msra.mxu0 0
    %1346 = vmatprep.subr.bf16.mxu0 0
    %1347 = vmatpush1.bf16.msra.mxu0 0
    %1348 = vmatprep.subr.bf16.mxu0 0
    %1349 = vmatpush1.bf16.msra.mxu0 0
    %1350 = vmatprep.subr.bf16.mxu0 0
    %1351 = vmatpush1.bf16.msra.mxu0 0
    %1352 = vmatprep.subr.bf16.mxu0 0
    %1353 = vmatpush1.bf16.msra.mxu0 0
    %1354 = vmatprep.subr.bf16.mxu0 0
    %1355 = vmatpush1.bf16.msra.mxu0 0
    %1356 = vmatprep.subr.bf16.mxu0 0
    %1357 = vmatpush1.bf16.msra.mxu0 0
    %1358 = vmatprep.subr.bf16.mxu0 0
    %1359 = vmatpush1.bf16.msra.mxu0 0
    %1360 = vmatprep.subr.bf16.mxu0 0
    %1361 = vmatpush1.bf16.msra.mxu0 0
    %1362 = vmatprep.subr.bf16.mxu0 0
    %1363 = vmatpush1.bf16.msra.mxu0 0
    %1364 = vmatprep.subr.bf16.mxu0 0
    %1365 = vmatpush1.bf16.msra.mxu0 0
    %1366 = vmatprep.subr.bf16.mxu0 0
    %1367 = vmatpush1.bf16.msra.mxu0 0
    %1368 = vmatprep.subr.bf16.mxu0 0
    %1369 = vmatpush1.bf16.msra.mxu0 0
    %1370 = vmatprep.mubr.bf16.mxu0 0
    %1371 = vmatmul.mubr.bf16.gmra.mrb[0].mxu0 %v1336
    %v1372 = vpop.f32.mrb[0].mxu0
    %v1373 = vadd.f32 %v1321, %v1372
    %v1374 = vpop.f32.mrb[0].mxu0
    %v1375 = vpop.f32.mrb[0].mxu0
    %v1376 = vadd.f32 %v1321, %v1375
    %v1377 = vpop.f32.mrb[0].mxu0
    %1378 = vdwg.mxu0
    %v1379 = vmax.f32 %v1373, 0.0
    %v1380 = vmax.f32 %v1376, 0.0
    %v1381 = vpack.c.bf16 %v1380, %v1379
    %v1382 = vld [vmem:[%s12] sm:$0xf]
    %v1383 = vld [vmem:[%s12 + $0x4] sm:$0xf]
    %v1384 = vld [vmem:[%s12 + $0x8] sm:$0xf]
    %v1385 = vld [vmem:[%s12 + $0xc] sm:$0xf]
    %v1386 = vld [vmem:[%s12 + $0x10] sm:$0xf]
    %v1387 = vld [vmem:[%s12 + $0x14] sm:$0xf]
    %v1388 = vld [vmem:[%s12 + $0x18] sm:$0xf]
    %v1389 = vld [vmem:[%s12 + $0x1c] sm:$0xf]
    %v1390 = vld [vmem:[%s13] sm:$0x1]
    %v1392 = vlaneseq
    %v1393 = vshrl.u32 %v1392, 7
    %v1394 = vsub.s32 0, %v1393
    %v1395 = vrot.slane %v1390, %v1394
    %v1405 = vunpack.c.l.b16 %v1382
    %v1406 = vunpack.c.l.b16 %v1383
    %v1407 = vunpack.c.l.b16 %v1384
    %v1408 = vunpack.c.l.b16 %v1385
    %v1409 = vunpack.c.l.b16 %v1386
    %v1410 = vunpack.c.l.b16 %v1387
    %v1411 = vunpack.c.l.b16 %v1388
    %v1412 = vunpack.c.l.b16 %v1389
    %v1413 = vpack.c.b16 %v1406, %v1405
    %v1414 = vpack.c.b16 %v1408, %v1407
    %v1415 = vpack.c.b16 %v1410, %v1409
    %v1416 = vpack.c.b16 %v1412, %v1411
    %vm1421 = vcmask 523264
    %v1423 = vsel %vm1421, %v1381, 0
    %1425 = vmatprep.subr.bf16.mxu0 0
    %1426 = vmatpush1.bf16.msra.mxu0 %v1413
    %1427 = vmatprep.subr.bf16.mxu0 0
    %1428 = vmatpush1.bf16.msra.mxu0 %v1414
    %1429 = vmatprep.subr.bf16.mxu0 0
    %1430 = vmatpush1.bf16.msra.mxu0 %v1415
    %1431 = vmatprep.subr.bf16.mxu0 0
    %1432 = vmatpush1.bf16.msra.mxu0 %v1416
    %1433 = vmatprep.subr.bf16.mxu0 0
    %1434 = vmatpush1.bf16.msra.mxu0 0
    %1435 = vmatprep.subr.bf16.mxu0 0
    %1436 = vmatpush1.bf16.msra.mxu0 0
    %1437 = vmatprep.subr.bf16.mxu0 0
    %1438 = vmatpush1.bf16.msra.mxu0 0
    %1439 = vmatprep.subr.bf16.mxu0 0
    %1440 = vmatpush1.bf16.msra.mxu0 0
    %1441 = vmatprep.subr.bf16.mxu0 0
    %1442 = vmatpush1.bf16.msra.mxu0 0
    %1443 = vmatprep.subr.bf16.mxu0 0
    %1444 = vmatpush1.bf16.msra.mxu0 0
    %1445 = vmatprep.subr.bf16.mxu0 0
    %1446 = vmatpush1.bf16.msra.mxu0 0
    %1447 = vmatprep.subr.bf16.mxu0 0
    %1448 = vmatpush1.bf16.msra.mxu0 0
    %1449 = vmatprep.subr.bf16.mxu0 0
    %1450 = vmatpush1.bf16.msra.mxu0 0
    %1451 = vmatprep.subr.bf16.mxu0 0
    %1452 = vmatpush1.bf16.msra.mxu0 0
    %1453 = vmatprep.subr.bf16.mxu0 0
    %1454 = vmatpush1.bf16.msra.mxu0 0
    %1455 = vmatprep.subr.bf16.mxu0 0
    %1456 = vmatpush1.bf16.msra.mxu0 0
    %1457 = vmatprep.mubr.bf16.mxu0 0
    %1458 = vmatmul.mubr.bf16.gmra.mrb[0].mxu0 %v1423
    %v1459 = vpop.f32.mrb[0].mxu0
    %v1460 = vadd.f32 %v1395, %v1459
    %v1461 = vpop.f32.mrb[0].mxu0
    %v1462 = vpop.f32.mrb[0].mxu0
    %v1463 = vadd.f32 %v1395, %v1462
    %v1464 = vpop.f32.mrb[0].mxu0
    %1465 = vdwg.mxu0
    %v1466 = vadd.f32 %v1265, %v1460
    %v1467 = vadd.f32 %v1266, %v1463
    %1468 = vst.msk [vmem:[#allocation12] sm:$0xff] %vm117, %v1466
    %1469 = vst.msk [vmem:[#allocation12 + $0x8] sm:$0xff] %vm117, %v1467
    // Predicated region
    $region78: #{tpu_custom_call.1} parent=1 // pred_check
      _
    $region79: #{tpu_custom_call.1} parent=1 // pred_check_branch
      %1471 = sbr.rel (0) target = $region81
    $region80: #{tpu_custom_call.1} parent=1 // pred_region
      %s1473 = ssub.s32 256, 256
      %1474 = vsyncadd [#allocation5], %s1473
      %s1475 = sshll.u32 [#allocation12], 4
      %s1476 = int_to_ptr.vmem [resolvable:$true] %s1475
      %1481 = dma.vmem_to_hbm [thread:$0]  %s1476, 256, %s14, [#allocation5], 128, 128, 8
    $region81: #{tpu_custom_call.1} parent=1 // pred_fallthru
      _
    // Predicated region
    $region82: #{tpu_custom_call.1} parent=1 // pred_check
      _
    $region83: #{tpu_custom_call.1} parent=1 // pred_check_branch
      %1483 = sbr.rel (0) target = $region85
    $region84: #{tpu_custom_call.1} parent=1 // pred_region
      %1484 = dma.done [#allocation5], 256
    $region85: #{tpu_custom_call.1} parent=1 // pred_fallthru
      _
    %1485 = vsyncpa [#allocation4], 1
    %1486 = vsyncpa [#allocation7], 1
    %1487 = vsyncpa [#allocation10], 1
    %1488 = vsyncpa [#allocation5], 1

</llo_original>
